<compile_context>
chip_gen: v5e
topology: v5e:2x2
jax: 0.10.0
libtpu: 0.0.40
codegen_flags: <defaults>
</compile_context>

<pallas_src>
import functools
import math

import jax
import jax.numpy as jnp
from jax.experimental import pallas as pl
from jax.experimental.pallas import tpu as pltpu

LN_EPS = 1e-5                       # torch.nn.LayerNorm default eps
_GELU_C = math.sqrt(2.0 / math.pi)  # tanh-GELU constant


def _gelu(x):
    # tanh-approximate GELU: tanh runs on the EUP (its own VLIW slot), freeing VALU.
    # Deviates from torch's exact erf GELU by <~1e-3 absolute.
    return 0.5 * x * (1.0 + jnp.tanh(_GELU_C * (x + 0.044715 * (x * x * x))))


def _layernorm(x, gamma, beta):
    # var = E[x^2] - E[x]^2 removes the dependent (x - mean)^2 pass before the second
    # cross-lane reduction (values here are O(1), so this is numerically safe).
    mean = jnp.mean(x, axis=-1, keepdims=True)
    var = jnp.mean(x * x, axis=-1, keepdims=True) - mean * mean
    return (x - mean) * jax.lax.rsqrt(var + LN_EPS) * gamma + beta


def transformer_layer_kernel(
    x_ref,
    ln1_g, ln1_b,
    wqkv, wo,
    ln2_g, ln2_b,
    wr1, br1, wr2, br2, lnr_g, lnr_b,
    wd_h, bd_eff, lnw_g, lnw_b,
    wm1, bm1, wm2, bm2,
    out_ref,
    *, num_heads,
):
    f32, bf16 = jnp.float32, jnp.bfloat16
    B, S, D = x_ref.shape
    H = num_heads
    hd = D // H

    # Whole batch in one grid step: fold B into the matmul M dimension.
    x = x_ref[...].reshape(B * S, D)                      # (B*S, D) f32

    # ---- input LayerNorm + fused QKV projection (one lane-dense N=3D MXU push) ----
    h = _layernorm(x, ln1_g[...], ln1_b[...])
    qkv = jnp.dot(h.astype(bf16), wqkv[...], preferred_element_type=f32)   # (B*S, 3D)

    def to_heads(t):                                      # (B*S, D) -> (B*H, S, hd)
        t = t.reshape(B, S, H, hd).transpose(0, 2, 1, 3)  # head-major relayout (XLU)
        return t.reshape(B * H, S, hd).astype(bf16)

    q = to_heads(qkv[:, :D])          # 1/sqrt(hd) already folded into the Q columns
    k = to_heads(qkv[:, D:2 * D])
    v = to_heads(qkv[:, 2 * D:])

    # ---- attention, batched over (batch * head); f32 accumulation ----
    scores = jnp.einsum("gqe,gke->gqk", q, k, preferred_element_type=f32)
    scores = scores - jnp.max(scores, axis=-1, keepdims=True)
    p = jnp.exp(scores)
    attn = p * pl.reciprocal(jnp.sum(p, axis=-1, keepdims=True), approx=True)
    o = jnp.einsum("gqk,gke->gqe", attn.astype(bf16), v, preferred_element_type=f32)

    # Merge heads back onto lanes; the full (D, D) output projection turns the head
    # reduction into the MXU K dimension (K = D instead of hd).
    o = o.reshape(B, H, S, hd).transpose(0, 2, 1, 3).reshape(B * S, D)
    attn_out = jnp.dot(o.astype(bf16), wo[...], preferred_element_type=f32)

    hidden = x + attn_out                                 # residual 1
    residual2 = hidden

    # ---- post-attention LayerNorm ----
    h = _layernorm(hidden, ln2_g[...], ln2_b[...])

    # ---- ReasoningLayer: LN(h + Linear(GELU(Linear(h)))) ----
    r = jnp.dot(h.astype(bf16), wr1[...], preferred_element_type=f32) + br1[...]
    r = _gelu(r)
    r = jnp.dot(r.astype(bf16), wr2[...], preferred_element_type=f32) + br2[...]
    h = _layernorm(h + r, lnr_g[...], lnr_b[...])

    # ---- WillModule: concat([h, pers]) @ Wd == h @ Wd_h + (pers @ Wd_p + bd) ----
    # (personality term is constant -> folded into bd_eff in the wrapper)
    dec = jnp.dot(h.astype(bf16), wd_h[...], preferred_element_type=f32) + bd_eff[...]
    h = _layernorm(h + dec, lnw_g[...], lnw_b[...])

    # ---- MLP: Linear(D,4D) -> GELU -> Linear(4D,D) ----
    u = jnp.dot(h.astype(bf16), wm1[...], preferred_element_type=f32) + bm1[...]
    u = _gelu(u)
    mlp = jnp.dot(u.astype(bf16), wm2[...], preferred_element_type=f32) + bm2[...]

    out_ref[...] = (residual2 + mlp).reshape(B, S, D).astype(out_ref.dtype)


_KERNEL_PARAM_ORDER = [
    "ln1_g", "ln1_b",
    "wqkv", "wo",
    "ln2_g", "ln2_b",
    "wr1", "br1", "wr2", "br2", "lnr_g", "lnr_b",
    "wd_h", "bd_eff", "lnw_g", "lnw_b",
    "wm1", "bm1", "wm2", "bm2",
]


def prepare_params(raw, num_heads, trait_idx):
    """One-time parameter prep: fuse QKV (with 1/sqrt(hd) folded into Q), fold the
    personality projection into the will bias, cast matmul weights to bf16."""
    D = raw["wq"].shape[0]
    hd = D // num_heads
    scale = hd ** -0.5
    bf16 = jnp.bfloat16

    pvec = raw["emb_table"][trait_idx][None, :]            # (1, D) personality row
    bd_eff = raw["bd"] + pvec @ raw["wd_full"][D:]         # fold pvec @ Wd_p into bias
    wqkv = jnp.concatenate([raw["wq"] * scale, raw["wk"], raw["wv"]], axis=1)  # (D, 3D)

    return {
        "ln1_g": raw["ln1_g"], "ln1_b": raw["ln1_b"],
        "wqkv": wqkv.astype(bf16),
        "wo": raw["wo"].astype(bf16),
        "ln2_g": raw["ln2_g"], "ln2_b": raw["ln2_b"],
        "wr1": raw["wr1"].astype(bf16), "br1": raw["br1"],
        "wr2": raw["wr2"].astype(bf16), "br2": raw["br2"],
        "lnr_g": raw["lnr_g"], "lnr_b": raw["lnr_b"],
        "wd_h": raw["wd_full"][:D].astype(bf16),
        "bd_eff": bd_eff,
        "lnw_g": raw["lnw_g"], "lnw_b": raw["lnw_b"],
        "wm1": raw["wm1"].astype(bf16), "bm1": raw["bm1"],
        "wm2": raw["wm2"].astype(bf16), "bm2": raw["bm2"],
    }


def transformer_layer(x, prepared, num_heads):
    B, S, D = x.shape
    weights = [prepared[n] for n in _KERNEL_PARAM_ORDER]

    def full_spec(shape):
        zeros = (0,) * len(shape)
        return pl.BlockSpec(shape, lambda b, _z=zeros: _z)

    in_specs = [full_spec((B, S, D))] + [full_spec(w.shape) for w in weights]

    # vmem limit derived from the actual resident set (weights + in/out blocks),
    # with 2x for pipeline buffering and a few MiB of headroom for intermediates.
    param_bytes = sum(int(w.size) * jnp.dtype(w.dtype).itemsize for w in weights)
    io_bytes = 2 * int(x.size) * jnp.dtype(x.dtype).itemsize
    vmem_limit = min(32 * 1024 * 1024,
                     max(8 * 1024 * 1024, 2 * (param_bytes + io_bytes) + (4 << 20)))

    kernel = functools.partial(transformer_layer_kernel, num_heads=num_heads)
    return pl.pallas_call(
        kernel,
        out_shape=jax.ShapeDtypeStruct((B, S, D), x.dtype),
        grid=(1,),
        in_specs=in_specs,
        out_specs=full_spec((B, S, D)),
        compiler_params=pltpu.CompilerParams(
            # single grid step: keep the tiny problem on one TC (don't duplicate the
            # weight DMA across v7x's two TensorCores).
            dimension_semantics=("arbitrary",),
            vmem_limit_bytes=int(vmem_limit),
        ),
    )(x, *weights)


def init_params(key, D, num_traits):
    names = ["wq", "wk", "wv", "wo", "wr1", "br1", "wr2", "br2",
             "wd", "bd", "emb", "wm1", "bm1", "wm2", "bm2"]
    ks = dict(zip(names, jax.random.split(key, len(names))))
    std = 0.02
    nrm = lambda k, s: std * jax.random.normal(k, s, jnp.float32)
    ones = lambda s: jnp.ones(s, jnp.float32)
    zeros = lambda s: jnp.zeros(s, jnp.float32)
    return {
        "ln1_g": ones((1, D)), "ln1_b": zeros((1, D)),
        "wq": nrm(ks["wq"], (D, D)), "wk": nrm(ks["wk"], (D, D)),
        "wv": nrm(ks["wv"], (D, D)), "wo": nrm(ks["wo"], (D, D)),
        "ln2_g": ones((1, D)), "ln2_b": zeros((1, D)),
        "wr1": nrm(ks["wr1"], (D, 2 * D)), "br1": nrm(ks["br1"], (1, 2 * D)),
        "wr2": nrm(ks["wr2"], (2 * D, D)), "br2": nrm(ks["br2"], (1, D)),
        "lnr_g": ones((1, D)), "lnr_b": zeros((1, D)),
        "wd_full": nrm(ks["wd"], (2 * D, D)), "bd": nrm(ks["bd"], (1, D)),
        "emb_table": jax.random.normal(ks["emb"], (num_traits, D), jnp.float32),
        "lnw_g": ones((1, D)), "lnw_b": zeros((1, D)),
        "wm1": nrm(ks["wm1"], (D, 4 * D)), "bm1": nrm(ks["bm1"], (1, 4 * D)),
        "wm2": nrm(ks["wm2"], (4 * D, D)), "bm2": nrm(ks["bm2"], (1, D)),
    }


def ref_forward(x, params, num_heads, trait_idx):
    """Plain-JAX f32 reference mirroring the PyTorch forward (exact erf GELU)."""
    B, S, D = x.shape
    hd = D // num_heads
    scale = hd ** -0.5
    gelu = lambda v: jax.nn.gelu(v, approximate=False)

    def ln(v, g, b):
        m = jnp.mean(v, -1, keepdims=True)
        var = jnp.mean((v - m) ** 2, -1, keepdims=True)
        return (v - m) / jnp.sqrt(var + LN_EPS) * g[0] + b[0]

    residual = x
    h = ln(x, params["ln1_g"], params["ln1_b"])
    q, k, v = h @ params["wq"], h @ params["wk"], h @ params["wv"]
    split = lambda t: t.reshape(B, S, num_heads, hd).transpose(0, 2, 1, 3)
    q, k, v = split(q), split(k), split(v)
    scores = jnp.einsum("bhqd,bhkd->bhqk", q, k) * scale
    attn = jax.nn.softmax(scores, axis=-1)
    o = jnp.einsum("bhqk,bhkd->bhqd", attn, v)
    o = o.transpose(0, 2, 1, 3).reshape(B, S, D) @ params["wo"]
    hidden = residual + o
    residual = hidden
    h = ln(hidden, params["ln2_g"], params["ln2_b"])
    # reasoning
    r = gelu(h @ params["wr1"] + params["br1"][0]) @ params["wr2"] + params["br2"][0]
    h = ln(h + r, params["lnr_g"], params["lnr_b"])
    # will
    pvec = jnp.broadcast_to(params["emb_table"][trait_idx], (B, S, D))
    combined = jnp.concatenate([h, pvec], axis=-1)
    dec = combined @ params["wd_full"] + params["bd"][0]
    h = ln(h + dec, params["lnw_g"], params["lnw_b"])
    # mlp
    u = gelu(h @ params["wm1"] + params["bm1"][0])
    mlp = u @ params["wm2"] + params["bm2"][0]
    return residual + mlp


if __name__ == "__main__":
    # lane-dense demo shapes: hidden_dim is a multiple of 128 so every block's last
    # dim fills the 128-lane vregs; S is a multiple of 8 (and 16 for bf16 packing).
    B, S, D, H = 2, 16, 128, 4
    num_traits, trait_idx = 4, 2

    key = jax.random.PRNGKey(0)
    kx, kp = jax.random.split(key)
    x = jax.random.normal(kx, (B, S, D), jnp.float32)
    raw_params = init_params(kp, D, num_traits)
    prepared = prepare_params(raw_params, H, trait_idx)

    out = transformer_layer(x, prepared, H)
    out = jax.block_until_ready(out)

    ref = ref_forward(x, raw_params, H, trait_idx)
    assert out.shape == (B, S, D)
    # tolerance covers bf16 matmul operands + tanh-GELU + approx softmax reciprocal
    max_err = float(jnp.max(jnp.abs(out - ref)))
    assert jnp.allclose(out, ref, rtol=2e-2, atol=2e-2), max_err
    print("KERNEL_OK")
</pallas_src>

<mosaic_0001>
module attributes {stable_mosaic.version = 11 : i64} {
  func.func @transformer_layer_kernel(%arg0: i32, %arg1: memref<2x16x128xf32, #tpu.memory_space<vmem>>, %arg2: memref<1x128xf32, #tpu.memory_space<vmem>>, %arg3: memref<1x128xf32, #tpu.memory_space<vmem>>, %arg4: memref<128x384xbf16, #tpu.memory_space<vmem>>, %arg5: memref<128x128xbf16, #tpu.memory_space<vmem>>, %arg6: memref<1x128xf32, #tpu.memory_space<vmem>>, %arg7: memref<1x128xf32, #tpu.memory_space<vmem>>, %arg8: memref<128x256xbf16, #tpu.memory_space<vmem>>, %arg9: memref<1x256xf32, #tpu.memory_space<vmem>>, %arg10: memref<256x128xbf16, #tpu.memory_space<vmem>>, %arg11: memref<1x128xf32, #tpu.memory_space<vmem>>, %arg12: memref<1x128xf32, #tpu.memory_space<vmem>>, %arg13: memref<1x128xf32, #tpu.memory_space<vmem>>, %arg14: memref<128x128xbf16, #tpu.memory_space<vmem>>, %arg15: memref<1x128xf32, #tpu.memory_space<vmem>>, %arg16: memref<1x128xf32, #tpu.memory_space<vmem>>, %arg17: memref<1x128xf32, #tpu.memory_space<vmem>>, %arg18: memref<128x512xbf16, #tpu.memory_space<vmem>>, %arg19: memref<1x512xf32, #tpu.memory_space<vmem>>, %arg20: memref<512x128xbf16, #tpu.memory_space<vmem>>, %arg21: memref<1x128xf32, #tpu.memory_space<vmem>>, %arg22: memref<2x16x128xf32, #tpu.memory_space<vmem>>) attributes {dimension_semantics = [#tpu.dimension_semantics<arbitrary>], iteration_bounds = array<i64: 1>, scalar_prefetch = 0 : i64, scratch_operands = 0 : i64, tpu.core_type = #tpu.core_type<tc>, window_params = [{pipeline_mode = #tpu.pipeline_mode<synchronous>, transform_indices = @transform_0, window_bounds = array<i64: 2, 16, 128>}, {pipeline_mode = #tpu.pipeline_mode<synchronous>, transform_indices = @transform_1, window_bounds = array<i64: 1, 128>}, {pipeline_mode = #tpu.pipeline_mode<synchronous>, transform_indices = @transform_2, window_bounds = array<i64: 1, 128>}, {pipeline_mode = #tpu.pipeline_mode<synchronous>, transform_indices = @transform_3, window_bounds = array<i64: 128, 384>}, {pipeline_mode = #tpu.pipeline_mode<synchronous>, transform_indices = @transform_4, window_bounds = array<i64: 128, 128>}, {pipeline_mode = #tpu.pipeline_mode<synchronous>, transform_indices = @transform_5, window_bounds = array<i64: 1, 128>}, {pipeline_mode = #tpu.pipeline_mode<synchronous>, transform_indices = @transform_6, window_bounds = array<i64: 1, 128>}, {pipeline_mode = #tpu.pipeline_mode<synchronous>, transform_indices = @transform_7, window_bounds = array<i64: 128, 256>}, {pipeline_mode = #tpu.pipeline_mode<synchronous>, transform_indices = @transform_8, window_bounds = array<i64: 1, 256>}, {pipeline_mode = #tpu.pipeline_mode<synchronous>, transform_indices = @transform_9, window_bounds = array<i64: 256, 128>}, {pipeline_mode = #tpu.pipeline_mode<synchronous>, transform_indices = @transform_10, window_bounds = array<i64: 1, 128>}, {pipeline_mode = #tpu.pipeline_mode<synchronous>, transform_indices = @transform_11, window_bounds = array<i64: 1, 128>}, {pipeline_mode = #tpu.pipeline_mode<synchronous>, transform_indices = @transform_12, window_bounds = array<i64: 1, 128>}, {pipeline_mode = #tpu.pipeline_mode<synchronous>, transform_indices = @transform_13, window_bounds = array<i64: 128, 128>}, {pipeline_mode = #tpu.pipeline_mode<synchronous>, transform_indices = @transform_14, window_bounds = array<i64: 1, 128>}, {pipeline_mode = #tpu.pipeline_mode<synchronous>, transform_indices = @transform_15, window_bounds = array<i64: 1, 128>}, {pipeline_mode = #tpu.pipeline_mode<synchronous>, transform_indices = @transform_16, window_bounds = array<i64: 1, 128>}, {pipeline_mode = #tpu.pipeline_mode<synchronous>, transform_indices = @transform_17, window_bounds = array<i64: 128, 512>}, {pipeline_mode = #tpu.pipeline_mode<synchronous>, transform_indices = @transform_18, window_bounds = array<i64: 1, 512>}, {pipeline_mode = #tpu.pipeline_mode<synchronous>, transform_indices = @transform_19, window_bounds = array<i64: 512, 128>}, {pipeline_mode = #tpu.pipeline_mode<synchronous>, transform_indices = @transform_20, window_bounds = array<i64: 1, 128>}, {pipeline_mode = #tpu.pipeline_mode<synchronous>, transform_indices = @transform_21, window_bounds = array<i64: 2, 16, 128>}]} {
    %c0 = arith.constant 0 : index
    %c0_0 = arith.constant 0 : index
    %c0_1 = arith.constant 0 : index
    %0 = vector.load %arg1[%c0, %c0_0, %c0_1] : memref<2x16x128xf32, #tpu.memory_space<vmem>>, vector<2x16x128xf32>
    %1 = vector.shape_cast %0 : vector<2x16x128xf32> to vector<32x128xf32>
    %c0_2 = arith.constant 0 : index
    %c0_3 = arith.constant 0 : index
    %2 = vector.load %arg2[%c0_2, %c0_3] : memref<1x128xf32, #tpu.memory_space<vmem>>, vector<1x128xf32>
    %c0_4 = arith.constant 0 : index
    %c0_5 = arith.constant 0 : index
    %3 = vector.load %arg3[%c0_4, %c0_5] : memref<1x128xf32, #tpu.memory_space<vmem>>, vector<1x128xf32>
    %cst = arith.constant dense<0.000000e+00> : vector<32xf32>
    %4 = vector.multi_reduction <add>, %1, %cst [1] : vector<32x128xf32> to vector<32xf32>
    %5 = vector.shape_cast %4 : vector<32xf32> to vector<32x1xf32>
    %cst_6 = arith.constant 1.280000e+02 : f32
    %6 = vector.broadcast %cst_6 : f32 to vector<32x1xf32>
    %7 = arith.divf %5, %6 : vector<32x1xf32>
    %8 = arith.mulf %1, %1 : vector<32x128xf32>
    %cst_7 = arith.constant dense<0.000000e+00> : vector<32xf32>
    %9 = vector.multi_reduction <add>, %8, %cst_7 [1] : vector<32x128xf32> to vector<32xf32>
    %10 = vector.shape_cast %9 : vector<32xf32> to vector<32x1xf32>
    %cst_8 = arith.constant 1.280000e+02 : f32
    %11 = vector.broadcast %cst_8 : f32 to vector<32x1xf32>
    %12 = arith.divf %10, %11 : vector<32x1xf32>
    %13 = arith.mulf %7, %7 : vector<32x1xf32>
    %14 = arith.subf %12, %13 : vector<32x1xf32>
    %15 = vector.broadcast %7 : vector<32x1xf32> to vector<32x128xf32>
    %16 = arith.subf %1, %15 : vector<32x128xf32>
    %cst_9 = arith.constant 9.99999974E-6 : f32
    %17 = vector.broadcast %cst_9 : f32 to vector<32x1xf32>
    %18 = arith.addf %14, %17 : vector<32x1xf32>
    %19 = math.rsqrt %18 : vector<32x1xf32>
    %20 = vector.broadcast %19 : vector<32x1xf32> to vector<32x128xf32>
    %21 = arith.mulf %16, %20 : vector<32x128xf32>
    %22 = vector.broadcast %2 : vector<1x128xf32> to vector<32x128xf32>
    %23 = arith.mulf %21, %22 : vector<32x128xf32>
    %24 = vector.broadcast %3 : vector<1x128xf32> to vector<32x128xf32>
    %25 = arith.addf %23, %24 : vector<32x128xf32>
    %26 = arith.truncf %25 : vector<32x128xf32> to vector<32x128xbf16>
    %c0_10 = arith.constant 0 : index
    %c0_11 = arith.constant 0 : index
    %27 = vector.load %arg4[%c0_10, %c0_11] : memref<128x384xbf16, #tpu.memory_space<vmem>>, vector<128x384xbf16>
    %cst_12 = arith.constant dense<0.000000e+00> : vector<32x384xf32>
    %28 = tpu.matmul %26, %27, %cst_12 {dimension_numbers = #tpu.dot_dimension_numbers<[1], [0], [0], [1], [0, 0, 1, 1], [], []>} : vector<32x128xbf16>, vector<128x384xbf16>, vector<32x384xf32> -> vector<32x384xf32>
    %29 = vector.extract_strided_slice %28 {offsets = [0, 0], sizes = [32, 128], strides = [1, 1]} : vector<32x384xf32> to vector<32x128xf32>
    %30 = vector.shape_cast %29 : vector<32x128xf32> to vector<2x16x4x32xf32>
    %31 = tpu.transpose %30, [0, 2, 1, 3] : vector<2x16x4x32xf32> -> vector<2x4x16x32xf32>
    %32 = vector.shape_cast %31 : vector<2x4x16x32xf32> to vector<8x16x32xf32>
    %33 = arith.truncf %32 : vector<8x16x32xf32> to vector<8x16x32xbf16>
    %34 = vector.extract_strided_slice %28 {offsets = [0, 128], sizes = [32, 128], strides = [1, 1]} : vector<32x384xf32> to vector<32x128xf32>
    %35 = vector.shape_cast %34 : vector<32x128xf32> to vector<2x16x4x32xf32>
    %36 = tpu.transpose %35, [0, 2, 1, 3] : vector<2x16x4x32xf32> -> vector<2x4x16x32xf32>
    %37 = vector.shape_cast %36 : vector<2x4x16x32xf32> to vector<8x16x32xf32>
    %38 = arith.truncf %37 : vector<8x16x32xf32> to vector<8x16x32xbf16>
    %39 = vector.extract_strided_slice %28 {offsets = [0, 256], sizes = [32, 128], strides = [1, 1]} : vector<32x384xf32> to vector<32x128xf32>
    %40 = vector.shape_cast %39 : vector<32x128xf32> to vector<2x16x4x32xf32>
    %41 = tpu.transpose %40, [0, 2, 1, 3] : vector<2x16x4x32xf32> -> vector<2x4x16x32xf32>
    %42 = vector.shape_cast %41 : vector<2x4x16x32xf32> to vector<8x16x32xf32>
    %43 = arith.truncf %42 : vector<8x16x32xf32> to vector<8x16x32xbf16>
    "tpu.trace_start"() <{level = 10 : i32, message = "gqe,gke->gqk"}> : () -> ()
    %cst_13 = arith.constant dense<0.000000e+00> : vector<8x16x16xf32>
    %44 = tpu.matmul %33, %38, %cst_13 {dimension_numbers = #tpu.dot_dimension_numbers<[2], [2], [1], [1], [0, 0, 0, 1, 1, 1], [0], [0]>} : vector<8x16x32xbf16>, vector<8x16x32xbf16>, vector<8x16x16xf32> -> vector<8x16x16xf32>
    "tpu.trace_stop"() : () -> ()
    %cst_14 = arith.constant dense<0xFF800000> : vector<8x16xf32>
    %45 = vector.multi_reduction <maximumf>, %44, %cst_14 [2] : vector<8x16x16xf32> to vector<8x16xf32>
    %46 = vector.shape_cast %45 : vector<8x16xf32> to vector<8x16x1xf32>
    %47 = vector.broadcast %46 : vector<8x16x1xf32> to vector<8x16x16xf32>
    %48 = arith.subf %44, %47 : vector<8x16x16xf32>
    %49 = math.exp %48 : vector<8x16x16xf32>
    %cst_15 = arith.constant dense<0.000000e+00> : vector<8x16xf32>
    %50 = vector.multi_reduction <add>, %49, %cst_15 [2] : vector<8x16x16xf32> to vector<8x16xf32>
    %51 = vector.shape_cast %50 : vector<8x16xf32> to vector<8x16x1xf32>
    %52 = tpu.reciprocal %51 {approx = true} : vector<8x16x1xf32> -> vector<8x16x1xf32>
    %53 = vector.broadcast %52 : vector<8x16x1xf32> to vector<8x16x16xf32>
    %54 = arith.mulf %49, %53 : vector<8x16x16xf32>
    %55 = arith.truncf %54 : vector<8x16x16xf32> to vector<8x16x16xbf16>
    "tpu.trace_start"() <{level = 10 : i32, message = "gqk,gke->gqe"}> : () -> ()
    %cst_16 = arith.constant dense<0.000000e+00> : vector<8x16x32xf32>
    %56 = tpu.matmul %55, %43, %cst_16 {dimension_numbers = #tpu.dot_dimension_numbers<[2], [1], [1], [2], [0, 0, 0, 1, 1, 2], [0], [0]>} : vector<8x16x16xbf16>, vector<8x16x32xbf16>, vector<8x16x32xf32> -> vector<8x16x32xf32>
    "tpu.trace_stop"() : () -> ()
    %57 = vector.shape_cast %56 : vector<8x16x32xf32> to vector<2x4x16x32xf32>
    %58 = tpu.transpose %57, [0, 2, 1, 3] : vector<2x4x16x32xf32> -> vector<2x16x4x32xf32>
    %59 = vector.shape_cast %58 : vector<2x16x4x32xf32> to vector<32x128xf32>
    %60 = arith.truncf %59 : vector<32x128xf32> to vector<32x128xbf16>
    %c0_17 = arith.constant 0 : index
    %c0_18 = arith.constant 0 : index
    %61 = vector.load %arg5[%c0_17, %c0_18] : memref<128x128xbf16, #tpu.memory_space<vmem>>, vector<128x128xbf16>
    %cst_19 = arith.constant dense<0.000000e+00> : vector<32x128xf32>
    %62 = tpu.matmul %60, %61, %cst_19 {dimension_numbers = #tpu.dot_dimension_numbers<[1], [0], [0], [1], [0, 0, 1, 1], [], []>} : vector<32x128xbf16>, vector<128x128xbf16>, vector<32x128xf32> -> vector<32x128xf32>
    %63 = arith.addf %1, %62 : vector<32x128xf32>
    %c0_20 = arith.constant 0 : index
    %c0_21 = arith.constant 0 : index
    %64 = vector.load %arg6[%c0_20, %c0_21] : memref<1x128xf32, #tpu.memory_space<vmem>>, vector<1x128xf32>
    %c0_22 = arith.constant 0 : index
    %c0_23 = arith.constant 0 : index
    %65 = vector.load %arg7[%c0_22, %c0_23] : memref<1x128xf32, #tpu.memory_space<vmem>>, vector<1x128xf32>
    %cst_24 = arith.constant dense<0.000000e+00> : vector<32xf32>
    %66 = vector.multi_reduction <add>, %63, %cst_24 [1] : vector<32x128xf32> to vector<32xf32>
    %67 = vector.shape_cast %66 : vector<32xf32> to vector<32x1xf32>
    %cst_25 = arith.constant 1.280000e+02 : f32
    %68 = vector.broadcast %cst_25 : f32 to vector<32x1xf32>
    %69 = arith.divf %67, %68 : vector<32x1xf32>
    %70 = arith.mulf %63, %63 : vector<32x128xf32>
    %cst_26 = arith.constant dense<0.000000e+00> : vector<32xf32>
    %71 = vector.multi_reduction <add>, %70, %cst_26 [1] : vector<32x128xf32> to vector<32xf32>
    %72 = vector.shape_cast %71 : vector<32xf32> to vector<32x1xf32>
    %cst_27 = arith.constant 1.280000e+02 : f32
    %73 = vector.broadcast %cst_27 : f32 to vector<32x1xf32>
    %74 = arith.divf %72, %73 : vector<32x1xf32>
    %75 = arith.mulf %69, %69 : vector<32x1xf32>
    %76 = arith.subf %74, %75 : vector<32x1xf32>
    %77 = vector.broadcast %69 : vector<32x1xf32> to vector<32x128xf32>
    %78 = arith.subf %63, %77 : vector<32x128xf32>
    %cst_28 = arith.constant 9.99999974E-6 : f32
    %79 = vector.broadcast %cst_28 : f32 to vector<32x1xf32>
    %80 = arith.addf %76, %79 : vector<32x1xf32>
    %81 = math.rsqrt %80 : vector<32x1xf32>
    %82 = vector.broadcast %81 : vector<32x1xf32> to vector<32x128xf32>
    %83 = arith.mulf %78, %82 : vector<32x128xf32>
    %84 = vector.broadcast %64 : vector<1x128xf32> to vector<32x128xf32>
    %85 = arith.mulf %83, %84 : vector<32x128xf32>
    %86 = vector.broadcast %65 : vector<1x128xf32> to vector<32x128xf32>
    %87 = arith.addf %85, %86 : vector<32x128xf32>
    %88 = arith.truncf %87 : vector<32x128xf32> to vector<32x128xbf16>
    %c0_29 = arith.constant 0 : index
    %c0_30 = arith.constant 0 : index
    %89 = vector.load %arg8[%c0_29, %c0_30] : memref<128x256xbf16, #tpu.memory_space<vmem>>, vector<128x256xbf16>
    %cst_31 = arith.constant dense<0.000000e+00> : vector<32x256xf32>
    %90 = tpu.matmul %88, %89, %cst_31 {dimension_numbers = #tpu.dot_dimension_numbers<[1], [0], [0], [1], [0, 0, 1, 1], [], []>} : vector<32x128xbf16>, vector<128x256xbf16>, vector<32x256xf32> -> vector<32x256xf32>
    %c0_32 = arith.constant 0 : index
    %c0_33 = arith.constant 0 : index
    %91 = vector.load %arg9[%c0_32, %c0_33] : memref<1x256xf32, #tpu.memory_space<vmem>>, vector<1x256xf32>
    %92 = vector.broadcast %91 : vector<1x256xf32> to vector<32x256xf32>
    %93 = arith.addf %90, %92 : vector<32x256xf32>
    %cst_34 = arith.constant 5.000000e-01 : f32
    %94 = vector.broadcast %cst_34 : f32 to vector<32x256xf32>
    %95 = arith.mulf %94, %93 : vector<32x256xf32>
    %96 = arith.mulf %93, %93 : vector<32x256xf32>
    %97 = arith.mulf %96, %93 : vector<32x256xf32>
    %cst_35 = arith.constant 4.471500e-02 : f32
    %98 = vector.broadcast %cst_35 : f32 to vector<32x256xf32>
    %99 = arith.mulf %98, %97 : vector<32x256xf32>
    %100 = arith.addf %93, %99 : vector<32x256xf32>
    %cst_36 = arith.constant 0.797884583 : f32
    %101 = vector.broadcast %cst_36 : f32 to vector<32x256xf32>
    %102 = arith.mulf %101, %100 : vector<32x256xf32>
    %103 = math.tanh %102 : vector<32x256xf32>
    %cst_37 = arith.constant 1.000000e+00 : f32
    %104 = vector.broadcast %cst_37 : f32 to vector<32x256xf32>
    %105 = arith.addf %104, %103 : vector<32x256xf32>
    %106 = arith.mulf %95, %105 : vector<32x256xf32>
    %107 = arith.truncf %106 : vector<32x256xf32> to vector<32x256xbf16>
    %c0_38 = arith.constant 0 : index
    %c0_39 = arith.constant 0 : index
    %108 = vector.load %arg10[%c0_38, %c0_39] : memref<256x128xbf16, #tpu.memory_space<vmem>>, vector<256x128xbf16>
    %cst_40 = arith.constant dense<0.000000e+00> : vector<32x128xf32>
    %109 = tpu.matmul %107, %108, %cst_40 {dimension_numbers = #tpu.dot_dimension_numbers<[1], [0], [0], [1], [0, 0, 1, 1], [], []>} : vector<32x256xbf16>, vector<256x128xbf16>, vector<32x128xf32> -> vector<32x128xf32>
    %c0_41 = arith.constant 0 : index
    %c0_42 = arith.constant 0 : index
    %110 = vector.load %arg11[%c0_41, %c0_42] : memref<1x128xf32, #tpu.memory_space<vmem>>, vector<1x128xf32>
    %111 = vector.broadcast %110 : vector<1x128xf32> to vector<32x128xf32>
    %112 = arith.addf %109, %111 : vector<32x128xf32>
    %113 = arith.addf %87, %112 : vector<32x128xf32>
    %c0_43 = arith.constant 0 : index
    %c0_44 = arith.constant 0 : index
    %114 = vector.load %arg12[%c0_43, %c0_44] : memref<1x128xf32, #tpu.memory_space<vmem>>, vector<1x128xf32>
    %c0_45 = arith.constant 0 : index
    %c0_46 = arith.constant 0 : index
    %115 = vector.load %arg13[%c0_45, %c0_46] : memref<1x128xf32, #tpu.memory_space<vmem>>, vector<1x128xf32>
    %cst_47 = arith.constant dense<0.000000e+00> : vector<32xf32>
    %116 = vector.multi_reduction <add>, %113, %cst_47 [1] : vector<32x128xf32> to vector<32xf32>
    %117 = vector.shape_cast %116 : vector<32xf32> to vector<32x1xf32>
    %cst_48 = arith.constant 1.280000e+02 : f32
    %118 = vector.broadcast %cst_48 : f32 to vector<32x1xf32>
    %119 = arith.divf %117, %118 : vector<32x1xf32>
    %120 = arith.mulf %113, %113 : vector<32x128xf32>
    %cst_49 = arith.constant dense<0.000000e+00> : vector<32xf32>
    %121 = vector.multi_reduction <add>, %120, %cst_49 [1] : vector<32x128xf32> to vector<32xf32>
    %122 = vector.shape_cast %121 : vector<32xf32> to vector<32x1xf32>
    %cst_50 = arith.constant 1.280000e+02 : f32
    %123 = vector.broadcast %cst_50 : f32 to vector<32x1xf32>
    %124 = arith.divf %122, %123 : vector<32x1xf32>
    %125 = arith.mulf %119, %119 : vector<32x1xf32>
    %126 = arith.subf %124, %125 : vector<32x1xf32>
    %127 = vector.broadcast %119 : vector<32x1xf32> to vector<32x128xf32>
    %128 = arith.subf %113, %127 : vector<32x128xf32>
    %cst_51 = arith.constant 9.99999974E-6 : f32
    %129 = vector.broadcast %cst_51 : f32 to vector<32x1xf32>
    %130 = arith.addf %126, %129 : vector<32x1xf32>
    %131 = math.rsqrt %130 : vector<32x1xf32>
    %132 = vector.broadcast %131 : vector<32x1xf32> to vector<32x128xf32>
    %133 = arith.mulf %128, %132 : vector<32x128xf32>
    %134 = vector.broadcast %114 : vector<1x128xf32> to vector<32x128xf32>
    %135 = arith.mulf %133, %134 : vector<32x128xf32>
    %136 = vector.broadcast %115 : vector<1x128xf32> to vector<32x128xf32>
    %137 = arith.addf %135, %136 : vector<32x128xf32>
    %138 = arith.truncf %137 : vector<32x128xf32> to vector<32x128xbf16>
    %c0_52 = arith.constant 0 : index
    %c0_53 = arith.constant 0 : index
    %139 = vector.load %arg14[%c0_52, %c0_53] : memref<128x128xbf16, #tpu.memory_space<vmem>>, vector<128x128xbf16>
    %cst_54 = arith.constant dense<0.000000e+00> : vector<32x128xf32>
    %140 = tpu.matmul %138, %139, %cst_54 {dimension_numbers = #tpu.dot_dimension_numbers<[1], [0], [0], [1], [0, 0, 1, 1], [], []>} : vector<32x128xbf16>, vector<128x128xbf16>, vector<32x128xf32> -> vector<32x128xf32>
    %c0_55 = arith.constant 0 : index
    %c0_56 = arith.constant 0 : index
    %141 = vector.load %arg15[%c0_55, %c0_56] : memref<1x128xf32, #tpu.memory_space<vmem>>, vector<1x128xf32>
    %142 = vector.broadcast %141 : vector<1x128xf32> to vector<32x128xf32>
    %143 = arith.addf %140, %142 : vector<32x128xf32>
    %144 = arith.addf %137, %143 : vector<32x128xf32>
    %c0_57 = arith.constant 0 : index
    %c0_58 = arith.constant 0 : index
    %145 = vector.load %arg16[%c0_57, %c0_58] : memref<1x128xf32, #tpu.memory_space<vmem>>, vector<1x128xf32>
    %c0_59 = arith.constant 0 : index
    %c0_60 = arith.constant 0 : index
    %146 = vector.load %arg17[%c0_59, %c0_60] : memref<1x128xf32, #tpu.memory_space<vmem>>, vector<1x128xf32>
    %cst_61 = arith.constant dense<0.000000e+00> : vector<32xf32>
    %147 = vector.multi_reduction <add>, %144, %cst_61 [1] : vector<32x128xf32> to vector<32xf32>
    %148 = vector.shape_cast %147 : vector<32xf32> to vector<32x1xf32>
    %cst_62 = arith.constant 1.280000e+02 : f32
    %149 = vector.broadcast %cst_62 : f32 to vector<32x1xf32>
    %150 = arith.divf %148, %149 : vector<32x1xf32>
    %151 = arith.mulf %144, %144 : vector<32x128xf32>
    %cst_63 = arith.constant dense<0.000000e+00> : vector<32xf32>
    %152 = vector.multi_reduction <add>, %151, %cst_63 [1] : vector<32x128xf32> to vector<32xf32>
    %153 = vector.shape_cast %152 : vector<32xf32> to vector<32x1xf32>
    %cst_64 = arith.constant 1.280000e+02 : f32
    %154 = vector.broadcast %cst_64 : f32 to vector<32x1xf32>
    %155 = arith.divf %153, %154 : vector<32x1xf32>
    %156 = arith.mulf %150, %150 : vector<32x1xf32>
    %157 = arith.subf %155, %156 : vector<32x1xf32>
    %158 = vector.broadcast %150 : vector<32x1xf32> to vector<32x128xf32>
    %159 = arith.subf %144, %158 : vector<32x128xf32>
    %cst_65 = arith.constant 9.99999974E-6 : f32
    %160 = vector.broadcast %cst_65 : f32 to vector<32x1xf32>
    %161 = arith.addf %157, %160 : vector<32x1xf32>
    %162 = math.rsqrt %161 : vector<32x1xf32>
    %163 = vector.broadcast %162 : vector<32x1xf32> to vector<32x128xf32>
    %164 = arith.mulf %159, %163 : vector<32x128xf32>
    %165 = vector.broadcast %145 : vector<1x128xf32> to vector<32x128xf32>
    %166 = arith.mulf %164, %165 : vector<32x128xf32>
    %167 = vector.broadcast %146 : vector<1x128xf32> to vector<32x128xf32>
    %168 = arith.addf %166, %167 : vector<32x128xf32>
    %169 = arith.truncf %168 : vector<32x128xf32> to vector<32x128xbf16>
    %c0_66 = arith.constant 0 : index
    %c0_67 = arith.constant 0 : index
    %170 = vector.load %arg18[%c0_66, %c0_67] : memref<128x512xbf16, #tpu.memory_space<vmem>>, vector<128x512xbf16>
    %cst_68 = arith.constant dense<0.000000e+00> : vector<32x512xf32>
    %171 = tpu.matmul %169, %170, %cst_68 {dimension_numbers = #tpu.dot_dimension_numbers<[1], [0], [0], [1], [0, 0, 1, 1], [], []>} : vector<32x128xbf16>, vector<128x512xbf16>, vector<32x512xf32> -> vector<32x512xf32>
    %c0_69 = arith.constant 0 : index
    %c0_70 = arith.constant 0 : index
    %172 = vector.load %arg19[%c0_69, %c0_70] : memref<1x512xf32, #tpu.memory_space<vmem>>, vector<1x512xf32>
    %173 = vector.broadcast %172 : vector<1x512xf32> to vector<32x512xf32>
    %174 = arith.addf %171, %173 : vector<32x512xf32>
    %cst_71 = arith.constant 5.000000e-01 : f32
    %175 = vector.broadcast %cst_71 : f32 to vector<32x512xf32>
    %176 = arith.mulf %175, %174 : vector<32x512xf32>
    %177 = arith.mulf %174, %174 : vector<32x512xf32>
    %178 = arith.mulf %177, %174 : vector<32x512xf32>
    %cst_72 = arith.constant 4.471500e-02 : f32
    %179 = vector.broadcast %cst_72 : f32 to vector<32x512xf32>
    %180 = arith.mulf %179, %178 : vector<32x512xf32>
    %181 = arith.addf %174, %180 : vector<32x512xf32>
    %cst_73 = arith.constant 0.797884583 : f32
    %182 = vector.broadcast %cst_73 : f32 to vector<32x512xf32>
    %183 = arith.mulf %182, %181 : vector<32x512xf32>
    %184 = math.tanh %183 : vector<32x512xf32>
    %cst_74 = arith.constant 1.000000e+00 : f32
    %185 = vector.broadcast %cst_74 : f32 to vector<32x512xf32>
    %186 = arith.addf %185, %184 : vector<32x512xf32>
    %187 = arith.mulf %176, %186 : vector<32x512xf32>
    %188 = arith.truncf %187 : vector<32x512xf32> to vector<32x512xbf16>
    %c0_75 = arith.constant 0 : index
    %c0_76 = arith.constant 0 : index
    %189 = vector.load %arg20[%c0_75, %c0_76] : memref<512x128xbf16, #tpu.memory_space<vmem>>, vector<512x128xbf16>
    %cst_77 = arith.constant dense<0.000000e+00> : vector<32x128xf32>
    %190 = tpu.matmul %188, %189, %cst_77 {dimension_numbers = #tpu.dot_dimension_numbers<[1], [0], [0], [1], [0, 0, 1, 1], [], []>} : vector<32x512xbf16>, vector<512x128xbf16>, vector<32x128xf32> -> vector<32x128xf32>
    %c0_78 = arith.constant 0 : index
    %c0_79 = arith.constant 0 : index
    %191 = vector.load %arg21[%c0_78, %c0_79] : memref<1x128xf32, #tpu.memory_space<vmem>>, vector<1x128xf32>
    %192 = vector.broadcast %191 : vector<1x128xf32> to vector<32x128xf32>
    %193 = arith.addf %190, %192 : vector<32x128xf32>
    %194 = arith.addf %63, %193 : vector<32x128xf32>
    %195 = vector.shape_cast %194 : vector<32x128xf32> to vector<2x16x128xf32>
    %c0_80 = arith.constant 0 : index
    %c0_81 = arith.constant 0 : index
    %c0_82 = arith.constant 0 : index
    %196 = vector.load %arg22[%c0_80, %c0_81, %c0_82] : memref<2x16x128xf32, #tpu.memory_space<vmem>>, vector<2x16x128xf32>
    tpu.vector_store %arg22[%c0_80, %c0_81, %c0_82], %195 {strides = array<i32>} : memref<2x16x128xf32, #tpu.memory_space<vmem>>, vector<2x16x128xf32>,
    return
  }
  func.func @transform_0(%arg0: i32) -> (i32, i32, i32) {
    %c0_i32 = arith.constant 0 : i32
    %c0_i32_0 = arith.constant 0 : i32
    %c0_i32_1 = arith.constant 0 : i32
    %c0_i32_2 = arith.constant 0 : i32
    return %c0_i32, %c0_i32_0, %c0_i32_1 : i32, i32, i32
  }
  func.func @transform_1(%arg0: i32) -> (i32, i32) {
    %c0_i32 = arith.constant 0 : i32
    %c0_i32_0 = arith.constant 0 : i32
    %c0_i32_1 = arith.constant 0 : i32
    return %c0_i32, %c0_i32_0 : i32, i32
  }
  func.func @transform_2(%arg0: i32) -> (i32, i32) {
    %c0_i32 = arith.constant 0 : i32
    %c0_i32_0 = arith.constant 0 : i32
    %c0_i32_1 = arith.constant 0 : i32
    return %c0_i32, %c0_i32_0 : i32, i32
  }
  func.func @transform_3(%arg0: i32) -> (i32, i32) {
    %c0_i32 = arith.constant 0 : i32
    %c0_i32_0 = arith.constant 0 : i32
    %c0_i32_1 = arith.constant 0 : i32
    return %c0_i32, %c0_i32_0 : i32, i32
  }
  func.func @transform_4(%arg0: i32) -> (i32, i32) {
    %c0_i32 = arith.constant 0 : i32
    %c0_i32_0 = arith.constant 0 : i32
    %c0_i32_1 = arith.constant 0 : i32
    return %c0_i32, %c0_i32_0 : i32, i32
  }
  func.func @transform_5(%arg0: i32) -> (i32, i32) {
    %c0_i32 = arith.constant 0 : i32
    %c0_i32_0 = arith.constant 0 : i32
    %c0_i32_1 = arith.constant 0 : i32
    return %c0_i32, %c0_i32_0 : i32, i32
  }
  func.func @transform_6(%arg0: i32) -> (i32, i32) {
    %c0_i32 = arith.constant 0 : i32
    %c0_i32_0 = arith.constant 0 : i32
    %c0_i32_1 = arith.constant 0 : i32
    return %c0_i32, %c0_i32_0 : i32, i32
  }
  func.func @transform_7(%arg0: i32) -> (i32, i32) {
    %c0_i32 = arith.constant 0 : i32
    %c0_i32_0 = arith.constant 0 : i32
    %c0_i32_1 = arith.constant 0 : i32
    return %c0_i32, %c0_i32_0 : i32, i32
  }
  func.func @transform_8(%arg0: i32) -> (i32, i32) {
    %c0_i32 = arith.constant 0 : i32
    %c0_i32_0 = arith.constant 0 : i32
    %c0_i32_1 = arith.constant 0 : i32
    return %c0_i32, %c0_i32_0 : i32, i32
  }
  func.func @transform_9(%arg0: i32) -> (i32, i32) {
    %c0_i32 = arith.constant 0 : i32
    %c0_i32_0 = arith.constant 0 : i32
    %c0_i32_1 = arith.constant 0 : i32
    return %c0_i32, %c0_i32_0 : i32, i32
  }
  func.func @transform_10(%arg0: i32) -> (i32, i32) {
    %c0_i32 = arith.constant 0 : i32
    %c0_i32_0 = arith.constant 0 : i32
    %c0_i32_1 = arith.constant 0 : i32
    return %c0_i32, %c0_i32_0 : i32, i32
  }
  func.func @transform_11(%arg0: i32) -> (i32, i32) {
    %c0_i32 = arith.constant 0 : i32
    %c0_i32_0 = arith.constant 0 : i32
    %c0_i32_1 = arith.constant 0 : i32
    return %c0_i32, %c0_i32_0 : i32, i32
  }
  func.func @transform_12(%arg0: i32) -> (i32, i32) {
    %c0_i32 = arith.constant 0 : i32
    %c0_i32_0 = arith.constant 0 : i32
    %c0_i32_1 = arith.constant 0 : i32
    return %c0_i32, %c0_i32_0 : i32, i32
  }
  func.func @transform_13(%arg0: i32) -> (i32, i32) {
    %c0_i32 = arith.constant 0 : i32
    %c0_i32_0 = arith.constant 0 : i32
    %c0_i32_1 = arith.constant 0 : i32
    return %c0_i32, %c0_i32_0 : i32, i32
  }
  func.func @transform_14(%arg0: i32) -> (i32, i32) {
    %c0_i32 = arith.constant 0 : i32
    %c0_i32_0 = arith.constant 0 : i32
    %c0_i32_1 = arith.constant 0 : i32
    return %c0_i32, %c0_i32_0 : i32, i32
  }
  func.func @transform_15(%arg0: i32) -> (i32, i32) {
    %c0_i32 = arith.constant 0 : i32
    %c0_i32_0 = arith.constant 0 : i32
    %c0_i32_1 = arith.constant 0 : i32
    return %c0_i32, %c0_i32_0 : i32, i32
  }
  func.func @transform_16(%arg0: i32) -> (i32, i32) {
    %c0_i32 = arith.constant 0 : i32
    %c0_i32_0 = arith.constant 0 : i32
    %c0_i32_1 = arith.constant 0 : i32
    return %c0_i32, %c0_i32_0 : i32, i32
  }
  func.func @transform_17(%arg0: i32) -> (i32, i32) {
    %c0_i32 = arith.constant 0 : i32
    %c0_i32_0 = arith.constant 0 : i32
    %c0_i32_1 = arith.constant 0 : i32
    return %c0_i32, %c0_i32_0 : i32, i32
  }
  func.func @transform_18(%arg0: i32) -> (i32, i32) {
    %c0_i32 = arith.constant 0 : i32
    %c0_i32_0 = arith.constant 0 : i32
    %c0_i32_1 = arith.constant 0 : i32
    return %c0_i32, %c0_i32_0 : i32, i32
  }
  func.func @transform_19(%arg0: i32) -> (i32, i32) {
    %c0_i32 = arith.constant 0 : i32
    %c0_i32_0 = arith.constant 0 : i32
    %c0_i32_1 = arith.constant 0 : i32
    return %c0_i32, %c0_i32_0 : i32, i32
  }
  func.func @transform_20(%arg0: i32) -> (i32, i32) {
    %c0_i32 = arith.constant 0 : i32
    %c0_i32_0 = arith.constant 0 : i32
    %c0_i32_1 = arith.constant 0 : i32
    return %c0_i32, %c0_i32_0 : i32, i32
  }
  func.func @transform_21(%arg0: i32) -> (i32, i32, i32) {
    %c0_i32 = arith.constant 0 : i32
    %c0_i32_0 = arith.constant 0 : i32
    %c0_i32_1 = arith.constant 0 : i32
    %c0_i32_2 = arith.constant 0 : i32
    return %c0_i32, %c0_i32_0, %c0_i32_1 : i32, i32, i32
  }
}

</mosaic_0001>

<llo_original>
// kernel: tpu_custom_call.1
$region0: #{tpu_custom_call.1}
  #allocation0 [shape = 'u32[]', space=smem, size = 0x4, offset = 0x4, fixed_abs, tag = 'smem constant byte address 0x4 - core index']
  #allocation1 [shape = 'u32[72,128]{1,0:T(1,128)}', space=vmem, size = 0x9000, scoped, tag = 'internal scratch']
  %s0 = inlined_call_operand.hbm [shape: f32[2,16,128], index: 0, kind: input, shape index: {}]
  %s1 = inlined_call_operand.hbm [shape: f32[1,128], index: 1, kind: input, shape index: {}]
  %s2 = inlined_call_operand.vmem [shape: f32[1,128], index: 2, kind: input, shape index: {}]
  %s3 = inlined_call_operand.hbm [shape: bf16[128,384], index: 3, kind: input, shape index: {}]
  %s4 = inlined_call_operand.hbm [shape: bf16[128,128], index: 4, kind: input, shape index: {}]
  %s5 = inlined_call_operand.hbm [shape: f32[1,128], index: 5, kind: input, shape index: {}]
  %s6 = inlined_call_operand.hbm [shape: f32[1,128], index: 6, kind: input, shape index: {}]
  %s7 = inlined_call_operand.hbm [shape: bf16[128,256], index: 7, kind: input, shape index: {}]
  %s8 = inlined_call_operand.vmem [shape: f32[1,256], index: 8, kind: input, shape index: {}]
  %s9 = inlined_call_operand.hbm [shape: bf16[256,128], index: 9, kind: input, shape index: {}]
  %s10 = inlined_call_operand.vmem [shape: f32[1,128], index: 10, kind: input, shape index: {}]
  %s11 = inlined_call_operand.vmem [shape: f32[1,128], index: 11, kind: input, shape index: {}]
  %s12 = inlined_call_operand.vmem [shape: f32[1,128], index: 12, kind: input, shape index: {}]
  %s13 = inlined_call_operand.hbm [shape: bf16[128,128], index: 13, kind: input, shape index: {}]
  %s14 = inlined_call_operand.vmem [shape: f32[1,128], index: 14, kind: input, shape index: {}]
  %s15 = inlined_call_operand.vmem [shape: f32[1,128], index: 15, kind: input, shape index: {}]
  %s16 = inlined_call_operand.vmem [shape: f32[1,128], index: 16, kind: input, shape index: {}]
  %s17 = inlined_call_operand.hbm [shape: bf16[128,512], index: 17, kind: input, shape index: {}]
  %s18 = inlined_call_operand.vmem [shape: f32[1,512], index: 18, kind: input, shape index: {}]
  %s19 = inlined_call_operand.hbm [shape: bf16[512,128], index: 19, kind: input, shape index: {}]
  %s20 = inlined_call_operand.vmem [shape: f32[1,128], index: 20, kind: input, shape index: {}]
  %s21 = inlined_call_operand.hbm [shape: f32[2,16,128], index: 21, kind: output, shape index: {}]
  %s22 = sld [smem:[#allocation0]]
  $region138: #{tpu_custom_call.1} parent=0
    _
  %s24 = ssub.s32 1, %s22
  %s25 = scalar_select 0, %s24, %s22
  $region1: #{tpu_custom_call.1} parent=0
    #allocation2 [shape = 'u8[16384]{0}', space=vmem, size = 0x4000, scoped, tag = 'input window, operand 0, single buffered']
    #allocation3 [shape = 's32[1]{0}', space=sflag, size = 0x4, scoped, tag = 'scoped memory for tpu_custom_call.1']
    #allocation4 [shape = 's32[1]{0}', space=sflag, size = 0x4, scoped, tag = 'scoped memory for tpu_custom_call.1']
    #allocation5 [shape = 'u8[512]{0}', space=vmem, size = 0x400, scoped, tag = 'input window, operand 1, single buffered']
    #allocation6 [shape = 's32[1]{0}', space=sflag, size = 0x4, scoped, tag = 'scoped memory for tpu_custom_call.1']
    #allocation7 [shape = 'u8[98304]{0}', space=vmem, size = 0x18000, scoped, tag = 'input window, operand 3, single buffered']
    #allocation8 [shape = 'u8[32768]{0}', space=vmem, size = 0x8000, scoped, tag = 'input window, operand 4, single buffered']
    #allocation9 [shape = 's32[1]{0}', space=sflag, size = 0x4, scoped, tag = 'scoped memory for tpu_custom_call.1']
    #allocation10 [shape = 'u8[512]{0}', space=vmem, size = 0x400, scoped, tag = 'input window, operand 5, single buffered']
    #allocation11 [shape = 'u8[512]{0}', space=vmem, size = 0x400, scoped, tag = 'input window, operand 6, single buffered']
    #allocation12 [shape = 's32[1]{0}', space=sflag, size = 0x4, scoped, tag = 'scoped memory for tpu_custom_call.1']
    #allocation13 [shape = 'u8[65536]{0}', space=vmem, size = 0x10000, scoped, tag = 'input window, operand 7, single buffered']
    #allocation14 [shape = 'u8[65536]{0}', space=vmem, size = 0x10000, scoped, tag = 'input window, operand 9, single buffered']
    #allocation15 [shape = 's32[1]{0}', space=sflag, size = 0x4, scoped, tag = 'scoped memory for tpu_custom_call.1']
    #allocation16 [shape = 'u8[32768]{0}', space=vmem, size = 0x8000, scoped, tag = 'input window, operand 13, single buffered']
    #allocation17 [shape = 'u8[131072]{0}', space=vmem, size = 0x20000, scoped, tag = 'input window, operand 17, single buffered']
    #allocation18 [shape = 's32[1]{0}', space=sflag, size = 0x4, scoped, tag = 'scoped memory for tpu_custom_call.1']
    #allocation19 [shape = 'u8[131072]{0}', space=vmem, size = 0x20000, scoped, tag = 'input window, operand 19, single buffered']
    #allocation20 [shape = 'u8[16384]{0}', space=vmem, size = 0x4000, scoped, tag = 'output window, operand 0, single buffered']
    %26 = vsyncpa [#allocation3], 0
    %27 = vsyncpa [#allocation6], 0
    %28 = vsyncpa [#allocation9], 0
    %29 = vsyncpa [#allocation12], 0
    %30 = vsyncpa [#allocation15], 0
    %31 = vsyncpa [#allocation18], 0
    %32 = vsyncpa [#allocation4], 0
    // Predicated region
    $region2: #{tpu_custom_call.1} parent=1 // pred_check
      _
    $region3: #{tpu_custom_call.1} parent=1 // pred_check_branch
      %34 = sbr.rel (0) target = $region5
    $region4: #{tpu_custom_call.1} parent=1 // pred_region
      %36 = vsyncadd [#allocation3], 0
      %s37 = sshll.u32 %s0, 4
      %s38 = int_to_ptr.hbm [resolvable:$true] %s37
      %s39 = sshll.u32 [#allocation2], 4
      %s40 = int_to_ptr.vmem [resolvable:$true] %s39
      %45 = dma.hbm_to_vmem [thread:$0]  %s38, 512, %s40, [#allocation3], 128, 128, 8
    $region5: #{tpu_custom_call.1} parent=1 // pred_fallthru
      _
    // Predicated region
    $region6: #{tpu_custom_call.1} parent=1 // pred_check
      _
    $region7: #{tpu_custom_call.1} parent=1 // pred_check_branch
      %47 = sbr.rel (0) target = $region9
    $region8: #{tpu_custom_call.1} parent=1 // pred_region
      %49 = vsyncadd [#allocation6], 0
      %s51 = sshll.u32 %s1, 4
      %s52 = int_to_ptr.hbm [resolvable:$true] %s51
      %s53 = sshll.u32 [#allocation5], 4
      %s54 = int_to_ptr.vmem [resolvable:$true] %s53
      %56 = dma.hbm_to_vmem [thread:$0]  %s52, 16, %s54, [#allocation6]
    $region9: #{tpu_custom_call.1} parent=1 // pred_fallthru
      _
    // Predicated region
    $region10: #{tpu_custom_call.1} parent=1 // pred_check
      _
    $region11: #{tpu_custom_call.1} parent=1 // pred_check_branch
      %58 = sbr.rel (0) target = $region13
    $region12: #{tpu_custom_call.1} parent=1 // pred_region
      _
    $region13: #{tpu_custom_call.1} parent=1 // pred_fallthru
      _
    // Predicated region
    $region14: #{tpu_custom_call.1} parent=1 // pred_check
      _
    $region15: #{tpu_custom_call.1} parent=1 // pred_check_branch
      %60 = sbr.rel (0) target = $region17
    $region16: #{tpu_custom_call.1} parent=1 // pred_region
      %62 = vsyncadd [#allocation6], 0
      %s63 = sshll.u32 %s3, 4
      %s64 = int_to_ptr.hbm [resolvable:$true] %s63
      %s65 = sshll.u32 [#allocation7], 4
      %s66 = int_to_ptr.vmem [resolvable:$true] %s65
      %71 = dma.hbm_to_vmem [thread:$0]  %s64, 3072, %s66, [#allocation6], 192, 192, 12
    $region17: #{tpu_custom_call.1} parent=1 // pred_fallthru
      _
    // Predicated region
    $region18: #{tpu_custom_call.1} parent=1 // pred_check
      _
    $region19: #{tpu_custom_call.1} parent=1 // pred_check_branch
      %73 = sbr.rel (0) target = $region21
    $region20: #{tpu_custom_call.1} parent=1 // pred_region
      %75 = vsyncadd [#allocation9], 0
      %s76 = sshll.u32 %s4, 4
      %s77 = int_to_ptr.hbm [resolvable:$true] %s76
      %s78 = sshll.u32 [#allocation8], 4
      %s79 = int_to_ptr.vmem [resolvable:$true] %s78
      %84 = dma.hbm_to_vmem [thread:$0]  %s77, 1024, %s79, [#allocation9], 64, 64, 4
    $region21: #{tpu_custom_call.1} parent=1 // pred_fallthru
      _
    // Predicated region
    $region22: #{tpu_custom_call.1} parent=1 // pred_check
      _
    $region23: #{tpu_custom_call.1} parent=1 // pred_check_branch
      %86 = sbr.rel (0) target = $region25
    $region24: #{tpu_custom_call.1} parent=1 // pred_region
      %88 = vsyncadd [#allocation9], 0
      %s90 = sshll.u32 %s5, 4
      %s91 = int_to_ptr.hbm [resolvable:$true] %s90
      %s92 = sshll.u32 [#allocation10], 4
      %s93 = int_to_ptr.vmem [resolvable:$true] %s92
      %95 = dma.hbm_to_vmem [thread:$0]  %s91, 16, %s93, [#allocation9]
    $region25: #{tpu_custom_call.1} parent=1 // pred_fallthru
      _
    // Predicated region
    $region26: #{tpu_custom_call.1} parent=1 // pred_check
      _
    $region27: #{tpu_custom_call.1} parent=1 // pred_check_branch
      %97 = sbr.rel (0) target = $region29
    $region28: #{tpu_custom_call.1} parent=1 // pred_region
      %99 = vsyncadd [#allocation12], 0
      %s101 = sshll.u32 %s6, 4
      %s102 = int_to_ptr.hbm [resolvable:$true] %s101
      %s103 = sshll.u32 [#allocation11], 4
      %s104 = int_to_ptr.vmem [resolvable:$true] %s103
      %106 = dma.hbm_to_vmem [thread:$0]  %s102, 16, %s104, [#allocation12]
    $region29: #{tpu_custom_call.1} parent=1 // pred_fallthru
      _
    // Predicated region
    $region30: #{tpu_custom_call.1} parent=1 // pred_check
      _
    $region31: #{tpu_custom_call.1} parent=1 // pred_check_branch
      %108 = sbr.rel (0) target = $region33
    $region32: #{tpu_custom_call.1} parent=1 // pred_region
      %110 = vsyncadd [#allocation12], 0
      %s111 = sshll.u32 %s7, 4
      %s112 = int_to_ptr.hbm [resolvable:$true] %s111
      %s113 = sshll.u32 [#allocation13], 4
      %s114 = int_to_ptr.vmem [resolvable:$true] %s113
      %119 = dma.hbm_to_vmem [thread:$0]  %s112, 2048, %s114, [#allocation12], 128, 128, 8
    $region33: #{tpu_custom_call.1} parent=1 // pred_fallthru
      _
    // Predicated region
    $region34: #{tpu_custom_call.1} parent=1 // pred_check
      _
    $region35: #{tpu_custom_call.1} parent=1 // pred_check_branch
      %121 = sbr.rel (0) target = $region37
    $region36: #{tpu_custom_call.1} parent=1 // pred_region
      _
    $region37: #{tpu_custom_call.1} parent=1 // pred_fallthru
      _
    // Predicated region
    $region38: #{tpu_custom_call.1} parent=1 // pred_check
      _
    $region39: #{tpu_custom_call.1} parent=1 // pred_check_branch
      %123 = sbr.rel (0) target = $region41
    $region40: #{tpu_custom_call.1} parent=1 // pred_region
      %125 = vsyncadd [#allocation15], 0
      %s126 = sshll.u32 %s9, 4
      %s127 = int_to_ptr.hbm [resolvable:$true] %s126
      %s128 = sshll.u32 [#allocation14], 4
      %s129 = int_to_ptr.vmem [resolvable:$true] %s128
      %134 = dma.hbm_to_vmem [thread:$0]  %s127, 2048, %s129, [#allocation15], 64, 64, 4
    $region41: #{tpu_custom_call.1} parent=1 // pred_fallthru
      _
    // Predicated region
    $region42: #{tpu_custom_call.1} parent=1 // pred_check
      _
    $region43: #{tpu_custom_call.1} parent=1 // pred_check_branch
      %136 = sbr.rel (0) target = $region45
    $region44: #{tpu_custom_call.1} parent=1 // pred_region
      _
    $region45: #{tpu_custom_call.1} parent=1 // pred_fallthru
      _
    // Predicated region
    $region46: #{tpu_custom_call.1} parent=1 // pred_check
      _
    $region47: #{tpu_custom_call.1} parent=1 // pred_check_branch
      %138 = sbr.rel (0) target = $region49
    $region48: #{tpu_custom_call.1} parent=1 // pred_region
      _
    $region49: #{tpu_custom_call.1} parent=1 // pred_fallthru
      _
    // Predicated region
    $region50: #{tpu_custom_call.1} parent=1 // pred_check
      _
    $region51: #{tpu_custom_call.1} parent=1 // pred_check_branch
      %140 = sbr.rel (0) target = $region53
    $region52: #{tpu_custom_call.1} parent=1 // pred_region
      _
    $region53: #{tpu_custom_call.1} parent=1 // pred_fallthru
      _
    // Predicated region
    $region54: #{tpu_custom_call.1} parent=1 // pred_check
      _
    $region55: #{tpu_custom_call.1} parent=1 // pred_check_branch
      %142 = sbr.rel (0) target = $region57
    $region56: #{tpu_custom_call.1} parent=1 // pred_region
      %144 = vsyncadd [#allocation15], 0
      %s145 = sshll.u32 %s13, 4
      %s146 = int_to_ptr.hbm [resolvable:$true] %s145
      %s147 = sshll.u32 [#allocation16], 4
      %s148 = int_to_ptr.vmem [resolvable:$true] %s147
      %153 = dma.hbm_to_vmem [thread:$0]  %s146, 1024, %s148, [#allocation15], 64, 64, 4
    $region57: #{tpu_custom_call.1} parent=1 // pred_fallthru
      _
    // Predicated region
    $region58: #{tpu_custom_call.1} parent=1 // pred_check
      _
    $region59: #{tpu_custom_call.1} parent=1 // pred_check_branch
      %155 = sbr.rel (0) target = $region61
    $region60: #{tpu_custom_call.1} parent=1 // pred_region
      _
    $region61: #{tpu_custom_call.1} parent=1 // pred_fallthru
      _
    // Predicated region
    $region62: #{tpu_custom_call.1} parent=1 // pred_check
      _
    $region63: #{tpu_custom_call.1} parent=1 // pred_check_branch
      %157 = sbr.rel (0) target = $region65
    $region64: #{tpu_custom_call.1} parent=1 // pred_region
      _
    $region65: #{tpu_custom_call.1} parent=1 // pred_fallthru
      _
    // Predicated region
    $region66: #{tpu_custom_call.1} parent=1 // pred_check
      _
    $region67: #{tpu_custom_call.1} parent=1 // pred_check_branch
      %159 = sbr.rel (0) target = $region69
    $region68: #{tpu_custom_call.1} parent=1 // pred_region
      _
    $region69: #{tpu_custom_call.1} parent=1 // pred_fallthru
      _
    // Predicated region
    $region70: #{tpu_custom_call.1} parent=1 // pred_check
      _
    $region71: #{tpu_custom_call.1} parent=1 // pred_check_branch
      %161 = sbr.rel (0) target = $region73
    $region72: #{tpu_custom_call.1} parent=1 // pred_region
      %163 = vsyncadd [#allocation18], 0
      %s164 = sshll.u32 %s17, 4
      %s165 = int_to_ptr.hbm [resolvable:$true] %s164
      %s166 = sshll.u32 [#allocation17], 4
      %s167 = int_to_ptr.vmem [resolvable:$true] %s166
      %172 = dma.hbm_to_vmem [thread:$0]  %s165, 4096, %s167, [#allocation18], 256, 256, 16
    $region73: #{tpu_custom_call.1} parent=1 // pred_fallthru
      _
    // Predicated region
    $region74: #{tpu_custom_call.1} parent=1 // pred_check
      _
    $region75: #{tpu_custom_call.1} parent=1 // pred_check_branch
      %174 = sbr.rel (0) target = $region77
    $region76: #{tpu_custom_call.1} parent=1 // pred_region
      _
    $region77: #{tpu_custom_call.1} parent=1 // pred_fallthru
      _
    // Predicated region
    $region78: #{tpu_custom_call.1} parent=1 // pred_check
      _
    $region79: #{tpu_custom_call.1} parent=1 // pred_check_branch
      %176 = sbr.rel (0) target = $region81
    $region80: #{tpu_custom_call.1} parent=1 // pred_region
      %178 = vsyncadd [#allocation18], 0
      %s179 = sshll.u32 %s19, 4
      %s180 = int_to_ptr.hbm [resolvable:$true] %s179
      %s181 = sshll.u32 [#allocation19], 4
      %s182 = int_to_ptr.vmem [resolvable:$true] %s181
      %187 = dma.hbm_to_vmem [thread:$0]  %s180, 4096, %s182, [#allocation18], 64, 64, 4
    $region81: #{tpu_custom_call.1} parent=1 // pred_fallthru
      _
    // Predicated region
    $region82: #{tpu_custom_call.1} parent=1 // pred_check
      _
    $region83: #{tpu_custom_call.1} parent=1 // pred_check_branch
      %189 = sbr.rel (0) target = $region85
    $region84: #{tpu_custom_call.1} parent=1 // pred_region
      _
    $region85: #{tpu_custom_call.1} parent=1 // pred_fallthru
      _
    // Predicated region
    $region86: #{tpu_custom_call.1} parent=1 // pred_check
      _
    $region87: #{tpu_custom_call.1} parent=1 // pred_check_branch
      %191 = sbr.rel (0) target = $region89
    $region88: #{tpu_custom_call.1} parent=1 // pred_region
      %193 = dma.done [#allocation3], 512
    $region89: #{tpu_custom_call.1} parent=1 // pred_fallthru
      _
    // Predicated region
    $region90: #{tpu_custom_call.1} parent=1 // pred_check
      _
    $region91: #{tpu_custom_call.1} parent=1 // pred_check_branch
      %195 = sbr.rel (0) target = $region93
    $region92: #{tpu_custom_call.1} parent=1 // pred_region
      %197 = dma.done [#allocation6], 16
    $region93: #{tpu_custom_call.1} parent=1 // pred_fallthru
      _
    // Predicated region
    $region94: #{tpu_custom_call.1} parent=1 // pred_check
      _
    $region95: #{tpu_custom_call.1} parent=1 // pred_check_branch
      %199 = sbr.rel (0) target = $region97
    $region96: #{tpu_custom_call.1} parent=1 // pred_region
      %201 = dma.done [#allocation6], 3072
    $region97: #{tpu_custom_call.1} parent=1 // pred_fallthru
      _
    // Predicated region
    $region98: #{tpu_custom_call.1} parent=1 // pred_check
      _
    $region99: #{tpu_custom_call.1} parent=1 // pred_check_branch
      %203 = sbr.rel (0) target = $region101
    $region100: #{tpu_custom_call.1} parent=1 // pred_region
      %205 = dma.done [#allocation9], 1024
    $region101: #{tpu_custom_call.1} parent=1 // pred_fallthru
      _
    // Predicated region
    $region102: #{tpu_custom_call.1} parent=1 // pred_check
      _
    $region103: #{tpu_custom_call.1} parent=1 // pred_check_branch
      %207 = sbr.rel (0) target = $region105
    $region104: #{tpu_custom_call.1} parent=1 // pred_region
      %209 = dma.done [#allocation9], 16
    $region105: #{tpu_custom_call.1} parent=1 // pred_fallthru
      _
    // Predicated region
    $region106: #{tpu_custom_call.1} parent=1 // pred_check
      _
    $region107: #{tpu_custom_call.1} parent=1 // pred_check_branch
      %211 = sbr.rel (0) target = $region109
    $region108: #{tpu_custom_call.1} parent=1 // pred_region
      %213 = dma.done [#allocation12], 16
    $region109: #{tpu_custom_call.1} parent=1 // pred_fallthru
      _
    // Predicated region
    $region110: #{tpu_custom_call.1} parent=1 // pred_check
      _
    $region111: #{tpu_custom_call.1} parent=1 // pred_check_branch
      %215 = sbr.rel (0) target = $region113
    $region112: #{tpu_custom_call.1} parent=1 // pred_region
      %217 = dma.done [#allocation12], 2048
    $region113: #{tpu_custom_call.1} parent=1 // pred_fallthru
      _
    // Predicated region
    $region114: #{tpu_custom_call.1} parent=1 // pred_check
      _
    $region115: #{tpu_custom_call.1} parent=1 // pred_check_branch
      %219 = sbr.rel (0) target = $region117
    $region116: #{tpu_custom_call.1} parent=1 // pred_region
      %221 = dma.done [#allocation15], 2048
    $region117: #{tpu_custom_call.1} parent=1 // pred_fallthru
      _
    // Predicated region
    $region118: #{tpu_custom_call.1} parent=1 // pred_check
      _
    $region119: #{tpu_custom_call.1} parent=1 // pred_check_branch
      %223 = sbr.rel (0) target = $region121
    $region120: #{tpu_custom_call.1} parent=1 // pred_region
      %225 = dma.done [#allocation15], 1024
    $region121: #{tpu_custom_call.1} parent=1 // pred_fallthru
      _
    // Predicated region
    $region122: #{tpu_custom_call.1} parent=1 // pred_check
      _
    $region123: #{tpu_custom_call.1} parent=1 // pred_check_branch
      %227 = sbr.rel (0) target = $region125
    $region124: #{tpu_custom_call.1} parent=1 // pred_region
      %229 = dma.done [#allocation18], 4096
    $region125: #{tpu_custom_call.1} parent=1 // pred_fallthru
      _
    // Predicated region
    $region126: #{tpu_custom_call.1} parent=1 // pred_check
      _
    $region127: #{tpu_custom_call.1} parent=1 // pred_check_branch
      %231 = sbr.rel (0) target = $region129
    $region128: #{tpu_custom_call.1} parent=1 // pred_region
      %233 = dma.done [#allocation18], 4096
    $region129: #{tpu_custom_call.1} parent=1 // pred_fallthru
      _
    %v235 = vld [vmem:[#allocation2] sm:$0xff]
    %v236 = vld [vmem:[#allocation2 + $0x8] sm:$0xff]
    %v237 = vld [vmem:[#allocation2 + $0x10] sm:$0xff]
    %v238 = vld [vmem:[#allocation2 + $0x18] sm:$0xff]
    %v239 = vld [vmem:[#allocation5] sm:$0x1]
    %v240 = vld [vmem:[%s2] sm:$0x1]
    %241 = vadd.xlane.f32.xlu0 %v235
    %v242 = vpop.xlane.xlu0 %241
    %243 = vadd.xlane.f32.xlu0 %v236
    %v244 = vpop.xlane.xlu0 %243
    %245 = vadd.xlane.f32.xlu0 %v237
    %v246 = vpop.xlane.xlu0 %245
    %247 = vadd.xlane.f32.xlu0 %v238
    %v248 = vpop.xlane.xlu0 %247
    %v249 = vrcp.pop 128.0
    %v250 = vmul.f32 128.0, %v249
    %v251 = vsub.f32 1.0, %v250
    %v252 = vmul.f32 %v249, %v251
    %v253 = vadd.f32 %v249, %v252
    %vm254 = vweird.f32 %v249
    %v255 = vsel %vm254, %v249, %v253
    %v256 = vmul.f32 %v242, %v255
    %v257 = vmul.f32 %v244, %v255
    %v258 = vmul.f32 %v246, %v255
    %v259 = vmul.f32 %v248, %v255
    %v260 = vmul.f32 %v235, %v235
    %v261 = vmul.f32 %v236, %v236
    %v262 = vmul.f32 %v237, %v237
    %v263 = vmul.f32 %v238, %v238
    %264 = vadd.xlane.f32.xlu0 %v260
    %v265 = vpop.xlane.xlu0 %264
    %266 = vadd.xlane.f32.xlu0 %v261
    %v267 = vpop.xlane.xlu0 %266
    %268 = vadd.xlane.f32.xlu0 %v262
    %v269 = vpop.xlane.xlu0 %268
    %270 = vadd.xlane.f32.xlu0 %v263
    %v271 = vpop.xlane.xlu0 %270
    %v272 = vmul.f32 %v265, %v255
    %v273 = vmul.f32 %v267, %v255
    %v274 = vmul.f32 %v269, %v255
    %v275 = vmul.f32 %v271, %v255
    %v276 = vmul.f32 %v256, %v256
    %v277 = vmul.f32 %v257, %v257
    %v278 = vmul.f32 %v258, %v258
    %v279 = vmul.f32 %v259, %v259
    %v280 = vsub.f32 %v272, %v276
    %v281 = vsub.f32 %v273, %v277
    %v282 = vsub.f32 %v274, %v278
    %v283 = vsub.f32 %v275, %v279
    %v284 = vsub.f32 %v235, %v256
    %v285 = vsub.f32 %v236, %v257
    %v286 = vsub.f32 %v237, %v258
    %v287 = vsub.f32 %v238, %v259
    %v288 = vadd.f32 %v280, 1e-05
    %v289 = vadd.f32 %v281, 1e-05
    %v290 = vadd.f32 %v282, 1e-05
    %v291 = vadd.f32 %v283, 1e-05
    %v292 = vrsqrt.pop %v288
    %v293 = vmul.f32 %v292, %v288
    %v294 = vmul.f32 %v293, %v292
    %v295 = vmul.f32 0.5, %v294
    %v296 = vsub.f32 1.5, %v295
    %v297 = vmul.f32 %v292, %v296
    %vm298 = vweird.f32 %v288
    %vm299 = vweird.f32 %v292
    %vm300 = vmor %vm298, %vm299
    %v301 = vsel %vm300, %v292, %v297
    %v302 = vrsqrt.pop %v289
    %v303 = vmul.f32 %v302, %v289
    %v304 = vmul.f32 %v303, %v302
    %v305 = vmul.f32 0.5, %v304
    %v306 = vsub.f32 1.5, %v305
    %v307 = vmul.f32 %v302, %v306
    %vm308 = vweird.f32 %v289
    %vm309 = vweird.f32 %v302
    %vm310 = vmor %vm308, %vm309
    %v311 = vsel %vm310, %v302, %v307
    %v312 = vrsqrt.pop %v290
    %v313 = vmul.f32 %v312, %v290
    %v314 = vmul.f32 %v313, %v312
    %v315 = vmul.f32 0.5, %v314
    %v316 = vsub.f32 1.5, %v315
    %v317 = vmul.f32 %v312, %v316
    %vm318 = vweird.f32 %v290
    %vm319 = vweird.f32 %v312
    %vm320 = vmor %vm318, %vm319
    %v321 = vsel %vm320, %v312, %v317
    %v322 = vrsqrt.pop %v291
    %v323 = vmul.f32 %v322, %v291
    %v324 = vmul.f32 %v323, %v322
    %v325 = vmul.f32 0.5, %v324
    %v326 = vsub.f32 1.5, %v325
    %v327 = vmul.f32 %v322, %v326
    %vm328 = vweird.f32 %v291
    %vm329 = vweird.f32 %v322
    %vm330 = vmor %vm328, %vm329
    %v331 = vsel %vm330, %v322, %v327
    %v332 = vmul.f32 %v284, %v301
    %v333 = vmul.f32 %v285, %v311
    %v334 = vmul.f32 %v286, %v321
    %v335 = vmul.f32 %v287, %v331
    %v337 = vperm.slane %v239, 0
    %v339 = vmul.f32 %v332, %v337
    %v340 = vmul.f32 %v333, %v337
    %v341 = vmul.f32 %v334, %v337
    %v342 = vmul.f32 %v335, %v337
    %v344 = vperm.slane %v240, 0
    %v346 = vadd.f32 %v339, %v344
    %v347 = vadd.f32 %v340, %v344
    %v348 = vadd.f32 %v341, %v344
    %v349 = vadd.f32 %v342, %v344
    %v350 = vpack.c.bf16 %v347, %v346
    %v351 = vpack.c.bf16 %v349, %v348
    %v352 = vld [vmem:[#allocation7] sm:$0xff]
    %v353 = vld [vmem:[#allocation7 + $0x8] sm:$0xf]
    %v354 = vld [vmem:[#allocation7 + $0xc] sm:$0xff]
    %v355 = vld [vmem:[#allocation7 + $0x14] sm:$0xf]
    %v356 = vld [vmem:[#allocation7 + $0x18] sm:$0xff]
    %v357 = vld [vmem:[#allocation7 + $0x20] sm:$0xf]
    %v358 = vld [vmem:[#allocation7 + $0x24] sm:$0xff]
    %v359 = vld [vmem:[#allocation7 + $0x2c] sm:$0xf]
    %v360 = vld [vmem:[#allocation7 + $0x30] sm:$0xff]
    %v361 = vld [vmem:[#allocation7 + $0x38] sm:$0xf]
    %v362 = vld [vmem:[#allocation7 + $0x3c] sm:$0xff]
    %v363 = vld [vmem:[#allocation7 + $0x44] sm:$0xf]
    %v364 = vld [vmem:[#allocation7 + $0x48] sm:$0xff]
    %v365 = vld [vmem:[#allocation7 + $0x50] sm:$0xf]
    %v366 = vld [vmem:[#allocation7 + $0x54] sm:$0xff]
    %v367 = vld [vmem:[#allocation7 + $0x5c] sm:$0xf]
    %v368 = vld [vmem:[#allocation7 + $0x60] sm:$0xff]
    %v369 = vld [vmem:[#allocation7 + $0x68] sm:$0xf]
    %v370 = vld [vmem:[#allocation7 + $0x6c] sm:$0xff]
    %v371 = vld [vmem:[#allocation7 + $0x74] sm:$0xf]
    %v372 = vld [vmem:[#allocation7 + $0x78] sm:$0xff]
    %v373 = vld [vmem:[#allocation7 + $0x80] sm:$0xf]
    %v374 = vld [vmem:[#allocation7 + $0x84] sm:$0xff]
    %v375 = vld [vmem:[#allocation7 + $0x8c] sm:$0xf]
    %v376 = vld [vmem:[#allocation7 + $0x90] sm:$0xff]
    %v377 = vld [vmem:[#allocation7 + $0x98] sm:$0xf]
    %v378 = vld [vmem:[#allocation7 + $0x9c] sm:$0xff]
    %v379 = vld [vmem:[#allocation7 + $0xa4] sm:$0xf]
    %v380 = vld [vmem:[#allocation7 + $0xa8] sm:$0xff]
    %v381 = vld [vmem:[#allocation7 + $0xb0] sm:$0xf]
    %v382 = vld [vmem:[#allocation7 + $0xb4] sm:$0xff]
    %v383 = vld [vmem:[#allocation7 + $0xbc] sm:$0xf]
    %v416 = vunpack.c.l.b16 %v352
    %v417 = vunpack.c.h.b16 %v352
    %v418 = vunpack.c.l.b16 %v353
    %v419 = vunpack.c.l.b16 %v354
    %v420 = vunpack.c.h.b16 %v354
    %v421 = vunpack.c.l.b16 %v355
    %v422 = vunpack.c.l.b16 %v356
    %v423 = vunpack.c.h.b16 %v356
    %v424 = vunpack.c.l.b16 %v357
    %v425 = vunpack.c.l.b16 %v358
    %v426 = vunpack.c.h.b16 %v358
    %v427 = vunpack.c.l.b16 %v359
    %v428 = vunpack.c.l.b16 %v360
    %v429 = vunpack.c.h.b16 %v360
    %v430 = vunpack.c.l.b16 %v361
    %v431 = vunpack.c.l.b16 %v362
    %v432 = vunpack.c.h.b16 %v362
    %v433 = vunpack.c.l.b16 %v363
    %v434 = vunpack.c.l.b16 %v364
    %v435 = vunpack.c.h.b16 %v364
    %v436 = vunpack.c.l.b16 %v365
    %v437 = vunpack.c.l.b16 %v366
    %v438 = vunpack.c.h.b16 %v366
    %v439 = vunpack.c.l.b16 %v367
    %v440 = vunpack.c.l.b16 %v368
    %v441 = vunpack.c.h.b16 %v368
    %v442 = vunpack.c.l.b16 %v369
    %v443 = vunpack.c.l.b16 %v370
    %v444 = vunpack.c.h.b16 %v370
    %v445 = vunpack.c.l.b16 %v371
    %v446 = vunpack.c.l.b16 %v372
    %v447 = vunpack.c.h.b16 %v372
    %v448 = vunpack.c.l.b16 %v373
    %v449 = vunpack.c.l.b16 %v374
    %v450 = vunpack.c.h.b16 %v374
    %v451 = vunpack.c.l.b16 %v375
    %v452 = vunpack.c.l.b16 %v376
    %v453 = vunpack.c.h.b16 %v376
    %v454 = vunpack.c.l.b16 %v377
    %v455 = vunpack.c.l.b16 %v378
    %v456 = vunpack.c.h.b16 %v378
    %v457 = vunpack.c.l.b16 %v379
    %v458 = vunpack.c.l.b16 %v380
    %v459 = vunpack.c.h.b16 %v380
    %v460 = vunpack.c.l.b16 %v381
    %v461 = vunpack.c.l.b16 %v382
    %v462 = vunpack.c.h.b16 %v382
    %v463 = vunpack.c.l.b16 %v383
    %v464 = vpack.c.b16 %v419, %v416
    %v465 = vpack.c.b16 %v420, %v417
    %v466 = vpack.c.b16 %v421, %v418
    %v467 = vpack.c.b16 %v425, %v422
    %v468 = vpack.c.b16 %v426, %v423
    %v469 = vpack.c.b16 %v427, %v424
    %v470 = vpack.c.b16 %v431, %v428
    %v471 = vpack.c.b16 %v432, %v429
    %v472 = vpack.c.b16 %v433, %v430
    %v473 = vpack.c.b16 %v437, %v434
    %v474 = vpack.c.b16 %v438, %v435
    %v475 = vpack.c.b16 %v439, %v436
    %v476 = vpack.c.b16 %v443, %v440
    %v477 = vpack.c.b16 %v444, %v441
    %v478 = vpack.c.b16 %v445, %v442
    %v479 = vpack.c.b16 %v449, %v446
    %v480 = vpack.c.b16 %v450, %v447
    %v481 = vpack.c.b16 %v451, %v448
    %v482 = vpack.c.b16 %v455, %v452
    %v483 = vpack.c.b16 %v456, %v453
    %v484 = vpack.c.b16 %v457, %v454
    %v485 = vpack.c.b16 %v461, %v458
    %v486 = vpack.c.b16 %v462, %v459
    %v487 = vpack.c.b16 %v463, %v460
    %512 = vmatpush.bf16.msra.mxu0 %v485
    %513 = vmatpush.bf16.msra.mxu0 %v482
    %514 = vmatpush.bf16.msra.mxu0 %v479
    %515 = vmatpush.bf16.msra.mxu0 %v476
    %516 = vmatpush.bf16.msra.mxu0 %v473
    %517 = vmatpush.bf16.msra.mxu0 %v470
    %518 = vmatpush.bf16.msra.mxu0 %v467
    %519 = vmatpush.bf16.msra.mxu0 %v464
    %520 = vmatmul.bf16.gmra.mxu0 %v350
    %v521 = vpop.f32.mrf.mxu0
    %v522 = vadd.f32 0.0, %v521
    %v523 = vpop.f32.mrf.mxu0
    %v524 = vadd.f32 0.0, %v523
    %525 = vmatmul.bf16.gmra.mxu0 %v351
    %v526 = vpop.f32.mrf.mxu0
    %v527 = vadd.f32 0.0, %v526
    %v528 = vpop.f32.mrf.mxu0
    %v529 = vadd.f32 0.0, %v528
    %530 = vdwg.mxu0
    %531 = vmatpush.bf16.msra.mxu0 %v486
    %532 = vmatpush.bf16.msra.mxu0 %v483
    %533 = vmatpush.bf16.msra.mxu0 %v480
    %534 = vmatpush.bf16.msra.mxu0 %v477
    %535 = vmatpush.bf16.msra.mxu0 %v474
    %536 = vmatpush.bf16.msra.mxu0 %v471
    %537 = vmatpush.bf16.msra.mxu0 %v468
    %538 = vmatpush.bf16.msra.mxu0 %v465
    %539 = vmatmul.bf16.gmra.mxu0 %v350
    %v540 = vpop.f32.mrf.mxu0
    %v541 = vadd.f32 0.0, %v540
    %v542 = vpop.f32.mrf.mxu0
    %v543 = vadd.f32 0.0, %v542
    %544 = vmatmul.bf16.gmra.mxu0 %v351
    %v545 = vpop.f32.mrf.mxu0
    %v546 = vadd.f32 0.0, %v545
    %v547 = vpop.f32.mrf.mxu0
    %v548 = vadd.f32 0.0, %v547
    %549 = vdwg.mxu0
    %550 = vmatpush.bf16.msra.mxu0 %v487
    %551 = vmatpush.bf16.msra.mxu0 %v484
    %552 = vmatpush.bf16.msra.mxu0 %v481
    %553 = vmatpush.bf16.msra.mxu0 %v478
    %554 = vmatpush.bf16.msra.mxu0 %v475
    %555 = vmatpush.bf16.msra.mxu0 %v472
    %556 = vmatpush.bf16.msra.mxu0 %v469
    %557 = vmatpush.bf16.msra.mxu0 %v466
    %558 = vmatmul.bf16.gmra.mxu0 %v350
    %v559 = vpop.f32.mrf.mxu0
    %v560 = vadd.f32 0.0, %v559
    %v561 = vpop.f32.mrf.mxu0
    %v562 = vadd.f32 0.0, %v561
    %563 = vmatmul.bf16.gmra.mxu0 %v351
    %v564 = vpop.f32.mrf.mxu0
    %v565 = vadd.f32 0.0, %v564
    %v566 = vpop.f32.mrf.mxu0
    %v567 = vadd.f32 0.0, %v566
    %568 = vdwg.mxu0
    %573 = vrot.lane.b32.xlu0 %v522, 96
    %v574 = vpop.permute.xlu0 %573
    %575 = vrot.lane.b32.xlu0 %v524, 96
    %v576 = vpop.permute.xlu0 %575
    %577 = vrot.lane.b32.xlu0 %v527, 96
    %v578 = vpop.permute.xlu0 %577
    %579 = vrot.lane.b32.xlu0 %v529, 96
    %v580 = vpop.permute.xlu0 %579
    %585 = vrot.lane.b32.xlu0 %v522, 64
    %v586 = vpop.permute.xlu0 %585
    %587 = vrot.lane.b32.xlu0 %v524, 64
    %v588 = vpop.permute.xlu0 %587
    %589 = vrot.lane.b32.xlu0 %v527, 64
    %v590 = vpop.permute.xlu0 %589
    %591 = vrot.lane.b32.xlu0 %v529, 64
    %v592 = vpop.permute.xlu0 %591
    %597 = vrot.lane.b32.xlu0 %v522, 32
    %v598 = vpop.permute.xlu0 %597
    %599 = vrot.lane.b32.xlu0 %v524, 32
    %v600 = vpop.permute.xlu0 %599
    %601 = vrot.lane.b32.xlu0 %v527, 32
    %v602 = vpop.permute.xlu0 %601
    %603 = vrot.lane.b32.xlu0 %v529, 32
    %v604 = vpop.permute.xlu0 %603
    %v609 = vrot.slane %v586, 4
    %vm610 = vcmask 1047556
    %v611 = vsel %vm610, %v609, %v522
    %v612 = vrot.slane %v522, 4
    %v613 = vsel %vm610, %v586, %v612
    %v615 = vunpack.c.l.s4 1983009808
    %v616 = vunpack.c.0.s8 %v615
    %v617 = vperm.slane %v611, %v616
    %v619 = vunpack.c.l.s4 1983009808
    %v620 = vunpack.c.0.s8 %v619
    %v621 = vperm.slane %v613, %v620
    %v622 = vrot.slane %v598, 4
    %v623 = vsel %vm610, %v622, %v574
    %v624 = vrot.slane %v574, 4
    %v625 = vsel %vm610, %v598, %v624
    %v627 = vunpack.c.l.s4 1983009808
    %v628 = vunpack.c.0.s8 %v627
    %v629 = vperm.slane %v623, %v628
    %v631 = vunpack.c.l.s4 1983009808
    %v632 = vunpack.c.0.s8 %v631
    %v633 = vperm.slane %v625, %v632
    %v634 = vrot.slane %v629, 4
    %v635 = vsel %vm610, %v634, %v617
    %v636 = vrot.slane %v617, 4
    %v637 = vsel %vm610, %v629, %v636
    %v639 = vunpack.c.l.s4 1934713408
    %v640 = vunpack.c.0.s8 %v639
    %v641 = vperm.slane %v635, %v640
    %v643 = vunpack.c.l.s4 1934713408
    %v644 = vunpack.c.0.s8 %v643
    %v645 = vperm.slane %v637, %v644
    %v646 = vrot.slane %v633, 4
    %v647 = vsel %vm610, %v646, %v621
    %v648 = vrot.slane %v621, 4
    %v649 = vsel %vm610, %v633, %v648
    %v651 = vunpack.c.l.s4 1934713408
    %v652 = vunpack.c.0.s8 %v651
    %v653 = vperm.slane %v647, %v652
    %v655 = vunpack.c.l.s4 1934713408
    %v656 = vunpack.c.0.s8 %v655
    %v657 = vperm.slane %v649, %v656
    %v658 = vrot.slane %v641, 4
    %v659 = vsel %vm610, 0.0, %v658
    %v660 = vrot.slane %v645, 4
    %v661 = vsel %vm610, 0.0, %v660
    %v662 = vrot.slane %v653, 4
    %v663 = vsel %vm610, 0.0, %v662
    %v664 = vrot.slane %v657, 4
    %v665 = vsel %vm610, 0.0, %v664
    %v666 = vrot.slane %v588, 4
    %v667 = vsel %vm610, %v666, %v524
    %v668 = vrot.slane %v524, 4
    %v669 = vsel %vm610, %v588, %v668
    %v671 = vunpack.c.l.s4 1983009808
    %v672 = vunpack.c.0.s8 %v671
    %v673 = vperm.slane %v667, %v672
    %v675 = vunpack.c.l.s4 1983009808
    %v676 = vunpack.c.0.s8 %v675
    %v677 = vperm.slane %v669, %v676
    %v678 = vrot.slane %v600, 4
    %v679 = vsel %vm610, %v678, %v576
    %v680 = vrot.slane %v576, 4
    %v681 = vsel %vm610, %v600, %v680
    %v683 = vunpack.c.l.s4 1983009808
    %v684 = vunpack.c.0.s8 %v683
    %v685 = vperm.slane %v679, %v684
    %v687 = vunpack.c.l.s4 1983009808
    %v688 = vunpack.c.0.s8 %v687
    %v689 = vperm.slane %v681, %v688
    %v690 = vrot.slane %v685, 4
    %v691 = vsel %vm610, %v690, %v673
    %v692 = vrot.slane %v673, 4
    %v693 = vsel %vm610, %v685, %v692
    %v695 = vunpack.c.l.s4 1934713408
    %v696 = vunpack.c.0.s8 %v695
    %v697 = vperm.slane %v691, %v696
    %v699 = vunpack.c.l.s4 1934713408
    %v700 = vunpack.c.0.s8 %v699
    %v701 = vperm.slane %v693, %v700
    %v702 = vrot.slane %v689, 4
    %v703 = vsel %vm610, %v702, %v677
    %v704 = vrot.slane %v677, 4
    %v705 = vsel %vm610, %v689, %v704
    %v707 = vunpack.c.l.s4 1934713408
    %v708 = vunpack.c.0.s8 %v707
    %v709 = vperm.slane %v703, %v708
    %v711 = vunpack.c.l.s4 1934713408
    %v712 = vunpack.c.0.s8 %v711
    %v713 = vperm.slane %v705, %v712
    %v714 = vrot.slane %v697, 4
    %v715 = vsel %vm610, 0.0, %v714
    %v716 = vrot.slane %v701, 4
    %v717 = vsel %vm610, 0.0, %v716
    %v718 = vrot.slane %v709, 4
    %v719 = vsel %vm610, 0.0, %v718
    %v720 = vrot.slane %v713, 4
    %v721 = vsel %vm610, 0.0, %v720
    %v722 = vrot.slane %v590, 4
    %v723 = vsel %vm610, %v722, %v527
    %v724 = vrot.slane %v527, 4
    %v725 = vsel %vm610, %v590, %v724
    %v727 = vunpack.c.l.s4 1983009808
    %v728 = vunpack.c.0.s8 %v727
    %v729 = vperm.slane %v723, %v728
    %v731 = vunpack.c.l.s4 1983009808
    %v732 = vunpack.c.0.s8 %v731
    %v733 = vperm.slane %v725, %v732
    %v734 = vrot.slane %v602, 4
    %v735 = vsel %vm610, %v734, %v578
    %v736 = vrot.slane %v578, 4
    %v737 = vsel %vm610, %v602, %v736
    %v739 = vunpack.c.l.s4 1983009808
    %v740 = vunpack.c.0.s8 %v739
    %v741 = vperm.slane %v735, %v740
    %v743 = vunpack.c.l.s4 1983009808
    %v744 = vunpack.c.0.s8 %v743
    %v745 = vperm.slane %v737, %v744
    %v746 = vrot.slane %v741, 4
    %v747 = vsel %vm610, %v746, %v729
    %v748 = vrot.slane %v729, 4
    %v749 = vsel %vm610, %v741, %v748
    %v751 = vunpack.c.l.s4 1934713408
    %v752 = vunpack.c.0.s8 %v751
    %v753 = vperm.slane %v747, %v752
    %v755 = vunpack.c.l.s4 1934713408
    %v756 = vunpack.c.0.s8 %v755
    %v757 = vperm.slane %v749, %v756
    %v758 = vrot.slane %v745, 4
    %v759 = vsel %vm610, %v758, %v733
    %v760 = vrot.slane %v733, 4
    %v761 = vsel %vm610, %v745, %v760
    %v763 = vunpack.c.l.s4 1934713408
    %v764 = vunpack.c.0.s8 %v763
    %v765 = vperm.slane %v759, %v764
    %v767 = vunpack.c.l.s4 1934713408
    %v768 = vunpack.c.0.s8 %v767
    %v769 = vperm.slane %v761, %v768
    %v770 = vrot.slane %v753, 4
    %v771 = vsel %vm610, 0.0, %v770
    %v772 = vrot.slane %v757, 4
    %v773 = vsel %vm610, 0.0, %v772
    %v774 = vrot.slane %v765, 4
    %v775 = vsel %vm610, 0.0, %v774
    %v776 = vrot.slane %v769, 4
    %v777 = vsel %vm610, 0.0, %v776
    %v778 = vrot.slane %v592, 4
    %v779 = vsel %vm610, %v778, %v529
    %v780 = vrot.slane %v529, 4
    %v781 = vsel %vm610, %v592, %v780
    %v783 = vunpack.c.l.s4 1983009808
    %v784 = vunpack.c.0.s8 %v783
    %v785 = vperm.slane %v779, %v784
    %v787 = vunpack.c.l.s4 1983009808
    %v788 = vunpack.c.0.s8 %v787
    %v789 = vperm.slane %v781, %v788
    %v790 = vrot.slane %v604, 4
    %v791 = vsel %vm610, %v790, %v580
    %v792 = vrot.slane %v580, 4
    %v793 = vsel %vm610, %v604, %v792
    %v795 = vunpack.c.l.s4 1983009808
    %v796 = vunpack.c.0.s8 %v795
    %v797 = vperm.slane %v791, %v796
    %v799 = vunpack.c.l.s4 1983009808
    %v800 = vunpack.c.0.s8 %v799
    %v801 = vperm.slane %v793, %v800
    %v802 = vrot.slane %v797, 4
    %v803 = vsel %vm610, %v802, %v785
    %v804 = vrot.slane %v785, 4
    %v805 = vsel %vm610, %v797, %v804
    %v807 = vunpack.c.l.s4 1934713408
    %v808 = vunpack.c.0.s8 %v807
    %v809 = vperm.slane %v803, %v808
    %v811 = vunpack.c.l.s4 1934713408
    %v812 = vunpack.c.0.s8 %v811
    %v813 = vperm.slane %v805, %v812
    %v814 = vrot.slane %v801, 4
    %v815 = vsel %vm610, %v814, %v789
    %v816 = vrot.slane %v789, 4
    %v817 = vsel %vm610, %v801, %v816
    %v819 = vunpack.c.l.s4 1934713408
    %v820 = vunpack.c.0.s8 %v819
    %v821 = vperm.slane %v815, %v820
    %v823 = vunpack.c.l.s4 1934713408
    %v824 = vunpack.c.0.s8 %v823
    %v825 = vperm.slane %v817, %v824
    %v826 = vrot.slane %v809, 4
    %v827 = vsel %vm610, 0.0, %v826
    %v828 = vrot.slane %v813, 4
    %v829 = vsel %vm610, 0.0, %v828
    %v830 = vrot.slane %v821, 4
    %v831 = vsel %vm610, 0.0, %v830
    %v832 = vrot.slane %v825, 4
    %v833 = vsel %vm610, 0.0, %v832
    %v834 = vsel %vm610, %v660, %v641
    %v836 = vunpack.c.l.s4 1983009808
    %v837 = vunpack.c.0.s8 %v836
    %v838 = vperm.slane %v834, %v837
    %v839 = vrot.slane %v661, 4
    %v840 = vsel %vm610, %v839, %v659
    %v842 = vunpack.c.l.s4 1983009808
    %v843 = vunpack.c.0.s8 %v842
    %v844 = vperm.slane %v840, %v843
    %v845 = vsel %vm610, %v664, %v653
    %v847 = vunpack.c.l.s4 1983009808
    %v848 = vunpack.c.0.s8 %v847
    %v849 = vperm.slane %v845, %v848
    %v850 = vrot.slane %v665, 4
    %v851 = vsel %vm610, %v850, %v663
    %v853 = vunpack.c.l.s4 1983009808
    %v854 = vunpack.c.0.s8 %v853
    %v855 = vperm.slane %v851, %v854
    %v856 = vrot.slane %v844, 4
    %v857 = vsel %vm610, %v856, %v838
    %v858 = vrot.slane %v838, 4
    %v859 = vsel %vm610, %v844, %v858
    %v861 = vunpack.c.l.s4 1934713408
    %v862 = vunpack.c.0.s8 %v861
    %v863 = vperm.slane %v857, %v862
    %v865 = vunpack.c.l.s4 1934713408
    %v866 = vunpack.c.0.s8 %v865
    %v867 = vperm.slane %v859, %v866
    %v868 = vrot.slane %v855, 4
    %v869 = vsel %vm610, %v868, %v849
    %v870 = vrot.slane %v849, 4
    %v871 = vsel %vm610, %v855, %v870
    %v873 = vunpack.c.l.s4 1934713408
    %v874 = vunpack.c.0.s8 %v873
    %v875 = vperm.slane %v869, %v874
    %v877 = vunpack.c.l.s4 1934713408
    %v878 = vunpack.c.0.s8 %v877
    %v879 = vperm.slane %v871, %v878
    %v880 = vrot.slane %v875, 4
    %v881 = vsel %vm610, %v880, %v863
    %v882 = vrot.slane %v863, 4
    %v883 = vsel %vm610, %v875, %v882
    %v884 = vrot.slane %v879, 4
    %v885 = vsel %vm610, %v884, %v867
    %v886 = vrot.slane %v867, 4
    %v887 = vsel %vm610, %v879, %v886
    %v888 = vsel %vm610, %v716, %v697
    %v890 = vunpack.c.l.s4 1983009808
    %v891 = vunpack.c.0.s8 %v890
    %v892 = vperm.slane %v888, %v891
    %v893 = vrot.slane %v717, 4
    %v894 = vsel %vm610, %v893, %v715
    %v896 = vunpack.c.l.s4 1983009808
    %v897 = vunpack.c.0.s8 %v896
    %v898 = vperm.slane %v894, %v897
    %v899 = vsel %vm610, %v720, %v709
    %v901 = vunpack.c.l.s4 1983009808
    %v902 = vunpack.c.0.s8 %v901
    %v903 = vperm.slane %v899, %v902
    %v904 = vrot.slane %v721, 4
    %v905 = vsel %vm610, %v904, %v719
    %v907 = vunpack.c.l.s4 1983009808
    %v908 = vunpack.c.0.s8 %v907
    %v909 = vperm.slane %v905, %v908
    %v910 = vrot.slane %v898, 4
    %v911 = vsel %vm610, %v910, %v892
    %v912 = vrot.slane %v892, 4
    %v913 = vsel %vm610, %v898, %v912
    %v915 = vunpack.c.l.s4 1934713408
    %v916 = vunpack.c.0.s8 %v915
    %v917 = vperm.slane %v911, %v916
    %v919 = vunpack.c.l.s4 1934713408
    %v920 = vunpack.c.0.s8 %v919
    %v921 = vperm.slane %v913, %v920
    %v922 = vrot.slane %v909, 4
    %v923 = vsel %vm610, %v922, %v903
    %v924 = vrot.slane %v903, 4
    %v925 = vsel %vm610, %v909, %v924
    %v927 = vunpack.c.l.s4 1934713408
    %v928 = vunpack.c.0.s8 %v927
    %v929 = vperm.slane %v923, %v928
    %v931 = vunpack.c.l.s4 1934713408
    %v932 = vunpack.c.0.s8 %v931
    %v933 = vperm.slane %v925, %v932
    %v934 = vrot.slane %v929, 4
    %v935 = vsel %vm610, %v934, %v917
    %v936 = vrot.slane %v917, 4
    %v937 = vsel %vm610, %v929, %v936
    %v938 = vrot.slane %v933, 4
    %v939 = vsel %vm610, %v938, %v921
    %v940 = vrot.slane %v921, 4
    %v941 = vsel %vm610, %v933, %v940
    %v942 = vsel %vm610, %v772, %v753
    %v944 = vunpack.c.l.s4 1983009808
    %v945 = vunpack.c.0.s8 %v944
    %v946 = vperm.slane %v942, %v945
    %v947 = vrot.slane %v773, 4
    %v948 = vsel %vm610, %v947, %v771
    %v950 = vunpack.c.l.s4 1983009808
    %v951 = vunpack.c.0.s8 %v950
    %v952 = vperm.slane %v948, %v951
    %v953 = vsel %vm610, %v776, %v765
    %v955 = vunpack.c.l.s4 1983009808
    %v956 = vunpack.c.0.s8 %v955
    %v957 = vperm.slane %v953, %v956
    %v958 = vrot.slane %v777, 4
    %v959 = vsel %vm610, %v958, %v775
    %v961 = vunpack.c.l.s4 1983009808
    %v962 = vunpack.c.0.s8 %v961
    %v963 = vperm.slane %v959, %v962
    %v964 = vrot.slane %v952, 4
    %v965 = vsel %vm610, %v964, %v946
    %v966 = vrot.slane %v946, 4
    %v967 = vsel %vm610, %v952, %v966
    %v969 = vunpack.c.l.s4 1934713408
    %v970 = vunpack.c.0.s8 %v969
    %v971 = vperm.slane %v965, %v970
    %v973 = vunpack.c.l.s4 1934713408
    %v974 = vunpack.c.0.s8 %v973
    %v975 = vperm.slane %v967, %v974
    %v976 = vrot.slane %v963, 4
    %v977 = vsel %vm610, %v976, %v957
    %v978 = vrot.slane %v957, 4
    %v979 = vsel %vm610, %v963, %v978
    %v981 = vunpack.c.l.s4 1934713408
    %v982 = vunpack.c.0.s8 %v981
    %v983 = vperm.slane %v977, %v982
    %v985 = vunpack.c.l.s4 1934713408
    %v986 = vunpack.c.0.s8 %v985
    %v987 = vperm.slane %v979, %v986
    %v988 = vrot.slane %v983, 4
    %v989 = vsel %vm610, %v988, %v971
    %v990 = vrot.slane %v971, 4
    %v991 = vsel %vm610, %v983, %v990
    %v992 = vrot.slane %v987, 4
    %v993 = vsel %vm610, %v992, %v975
    %v994 = vrot.slane %v975, 4
    %v995 = vsel %vm610, %v987, %v994
    %v996 = vsel %vm610, %v828, %v809
    %v998 = vunpack.c.l.s4 1983009808
    %v999 = vunpack.c.0.s8 %v998
    %v1000 = vperm.slane %v996, %v999
    %v1001 = vrot.slane %v829, 4
    %v1002 = vsel %vm610, %v1001, %v827
    %v1004 = vunpack.c.l.s4 1983009808
    %v1005 = vunpack.c.0.s8 %v1004
    %v1006 = vperm.slane %v1002, %v1005
    %v1007 = vsel %vm610, %v832, %v821
    %v1009 = vunpack.c.l.s4 1983009808
    %v1010 = vunpack.c.0.s8 %v1009
    %v1011 = vperm.slane %v1007, %v1010
    %v1012 = vrot.slane %v833, 4
    %v1013 = vsel %vm610, %v1012, %v831
    %v1015 = vunpack.c.l.s4 1983009808
    %v1016 = vunpack.c.0.s8 %v1015
    %v1017 = vperm.slane %v1013, %v1016
    %v1018 = vrot.slane %v1006, 4
    %v1019 = vsel %vm610, %v1018, %v1000
    %v1020 = vrot.slane %v1000, 4
    %v1021 = vsel %vm610, %v1006, %v1020
    %v1023 = vunpack.c.l.s4 1934713408
    %v1024 = vunpack.c.0.s8 %v1023
    %v1025 = vperm.slane %v1019, %v1024
    %v1027 = vunpack.c.l.s4 1934713408
    %v1028 = vunpack.c.0.s8 %v1027
    %v1029 = vperm.slane %v1021, %v1028
    %v1030 = vrot.slane %v1017, 4
    %v1031 = vsel %vm610, %v1030, %v1011
    %v1032 = vrot.slane %v1011, 4
    %v1033 = vsel %vm610, %v1017, %v1032
    %v1035 = vunpack.c.l.s4 1934713408
    %v1036 = vunpack.c.0.s8 %v1035
    %v1037 = vperm.slane %v1031, %v1036
    %v1039 = vunpack.c.l.s4 1934713408
    %v1040 = vunpack.c.0.s8 %v1039
    %v1041 = vperm.slane %v1033, %v1040
    %v1042 = vrot.slane %v1037, 4
    %v1043 = vsel %vm610, %v1042, %v1025
    %v1044 = vrot.slane %v1025, 4
    %v1045 = vsel %vm610, %v1037, %v1044
    %v1046 = vrot.slane %v1041, 4
    %v1047 = vsel %vm610, %v1046, %v1029
    %v1048 = vrot.slane %v1029, 4
    %v1049 = vsel %vm610, %v1041, %v1048
    %v1050 = vpack.c.bf16 %v881, %v881
    %v1051 = vpack.c.bf16 %v935, %v935
    %v1052 = vpack.c.bf16 %v883, %v883
    %v1053 = vpack.c.bf16 %v937, %v937
    %v1054 = vpack.c.bf16 %v885, %v885
    %v1055 = vpack.c.bf16 %v939, %v939
    %v1056 = vpack.c.bf16 %v887, %v887
    %v1057 = vpack.c.bf16 %v941, %v941
    %v1058 = vpack.c.bf16 %v989, %v989
    %v1059 = vpack.c.bf16 %v1043, %v1043
    %v1060 = vpack.c.bf16 %v991, %v991
    %v1061 = vpack.c.bf16 %v1045, %v1045
    %v1062 = vpack.c.bf16 %v993, %v993
    %v1063 = vpack.c.bf16 %v1047, %v1047
    %v1064 = vpack.c.bf16 %v995, %v995
    %v1065 = vpack.c.bf16 %v1049, %v1049
    %1070 = vrot.lane.b32.xlu0 %v541, 96
    %v1071 = vpop.permute.xlu0 %1070
    %1072 = vrot.lane.b32.xlu0 %v543, 96
    %v1073 = vpop.permute.xlu0 %1072
    %1074 = vrot.lane.b32.xlu0 %v546, 96
    %v1075 = vpop.permute.xlu0 %1074
    %1076 = vrot.lane.b32.xlu0 %v548, 96
    %v1077 = vpop.permute.xlu0 %1076
    %1082 = vrot.lane.b32.xlu0 %v541, 64
    %v1083 = vpop.permute.xlu0 %1082
    %1084 = vrot.lane.b32.xlu0 %v543, 64
    %v1085 = vpop.permute.xlu0 %1084
    %1086 = vrot.lane.b32.xlu0 %v546, 64
    %v1087 = vpop.permute.xlu0 %1086
    %1088 = vrot.lane.b32.xlu0 %v548, 64
    %v1089 = vpop.permute.xlu0 %1088
    %1094 = vrot.lane.b32.xlu0 %v541, 32
    %v1095 = vpop.permute.xlu0 %1094
    %1096 = vrot.lane.b32.xlu0 %v543, 32
    %v1097 = vpop.permute.xlu0 %1096
    %1098 = vrot.lane.b32.xlu0 %v546, 32
    %v1099 = vpop.permute.xlu0 %1098
    %1100 = vrot.lane.b32.xlu0 %v548, 32
    %v1101 = vpop.permute.xlu0 %1100
    %v1106 = vrot.slane %v1083, 4
    %v1107 = vsel %vm610, %v1106, %v541
    %v1108 = vrot.slane %v541, 4
    %v1109 = vsel %vm610, %v1083, %v1108
    %v1111 = vunpack.c.l.s4 1983009808
    %v1112 = vunpack.c.0.s8 %v1111
    %v1113 = vperm.slane %v1107, %v1112
    %v1115 = vunpack.c.l.s4 1983009808
    %v1116 = vunpack.c.0.s8 %v1115
    %v1117 = vperm.slane %v1109, %v1116
    %v1118 = vrot.slane %v1095, 4
    %v1119 = vsel %vm610, %v1118, %v1071
    %v1120 = vrot.slane %v1071, 4
    %v1121 = vsel %vm610, %v1095, %v1120
    %v1123 = vunpack.c.l.s4 1983009808
    %v1124 = vunpack.c.0.s8 %v1123
    %v1125 = vperm.slane %v1119, %v1124
    %v1127 = vunpack.c.l.s4 1983009808
    %v1128 = vunpack.c.0.s8 %v1127
    %v1129 = vperm.slane %v1121, %v1128
    %v1130 = vrot.slane %v1125, 4
    %v1131 = vsel %vm610, %v1130, %v1113
    %v1132 = vrot.slane %v1113, 4
    %v1133 = vsel %vm610, %v1125, %v1132
    %v1135 = vunpack.c.l.s4 1934713408
    %v1136 = vunpack.c.0.s8 %v1135
    %v1137 = vperm.slane %v1131, %v1136
    %v1139 = vunpack.c.l.s4 1934713408
    %v1140 = vunpack.c.0.s8 %v1139
    %v1141 = vperm.slane %v1133, %v1140
    %v1142 = vrot.slane %v1129, 4
    %v1143 = vsel %vm610, %v1142, %v1117
    %v1144 = vrot.slane %v1117, 4
    %v1145 = vsel %vm610, %v1129, %v1144
    %v1147 = vunpack.c.l.s4 1934713408
    %v1148 = vunpack.c.0.s8 %v1147
    %v1149 = vperm.slane %v1143, %v1148
    %v1151 = vunpack.c.l.s4 1934713408
    %v1152 = vunpack.c.0.s8 %v1151
    %v1153 = vperm.slane %v1145, %v1152
    %v1154 = vrot.slane %v1137, 4
    %v1155 = vsel %vm610, 0.0, %v1154
    %v1156 = vrot.slane %v1141, 4
    %v1157 = vsel %vm610, 0.0, %v1156
    %v1158 = vrot.slane %v1149, 4
    %v1159 = vsel %vm610, 0.0, %v1158
    %v1160 = vrot.slane %v1153, 4
    %v1161 = vsel %vm610, 0.0, %v1160
    %v1162 = vrot.slane %v1085, 4
    %v1163 = vsel %vm610, %v1162, %v543
    %v1164 = vrot.slane %v543, 4
    %v1165 = vsel %vm610, %v1085, %v1164
    %v1167 = vunpack.c.l.s4 1983009808
    %v1168 = vunpack.c.0.s8 %v1167
    %v1169 = vperm.slane %v1163, %v1168
    %v1171 = vunpack.c.l.s4 1983009808
    %v1172 = vunpack.c.0.s8 %v1171
    %v1173 = vperm.slane %v1165, %v1172
    %v1174 = vrot.slane %v1097, 4
    %v1175 = vsel %vm610, %v1174, %v1073
    %v1176 = vrot.slane %v1073, 4
    %v1177 = vsel %vm610, %v1097, %v1176
    %v1179 = vunpack.c.l.s4 1983009808
    %v1180 = vunpack.c.0.s8 %v1179
    %v1181 = vperm.slane %v1175, %v1180
    %v1183 = vunpack.c.l.s4 1983009808
    %v1184 = vunpack.c.0.s8 %v1183
    %v1185 = vperm.slane %v1177, %v1184
    %v1186 = vrot.slane %v1181, 4
    %v1187 = vsel %vm610, %v1186, %v1169
    %v1188 = vrot.slane %v1169, 4
    %v1189 = vsel %vm610, %v1181, %v1188
    %v1191 = vunpack.c.l.s4 1934713408
    %v1192 = vunpack.c.0.s8 %v1191
    %v1193 = vperm.slane %v1187, %v1192
    %v1195 = vunpack.c.l.s4 1934713408
    %v1196 = vunpack.c.0.s8 %v1195
    %v1197 = vperm.slane %v1189, %v1196
    %v1198 = vrot.slane %v1185, 4
    %v1199 = vsel %vm610, %v1198, %v1173
    %v1200 = vrot.slane %v1173, 4
    %v1201 = vsel %vm610, %v1185, %v1200
    %v1203 = vunpack.c.l.s4 1934713408
    %v1204 = vunpack.c.0.s8 %v1203
    %v1205 = vperm.slane %v1199, %v1204
    %v1207 = vunpack.c.l.s4 1934713408
    %v1208 = vunpack.c.0.s8 %v1207
    %v1209 = vperm.slane %v1201, %v1208
    %v1210 = vrot.slane %v1193, 4
    %v1211 = vsel %vm610, 0.0, %v1210
    %v1212 = vrot.slane %v1197, 4
    %v1213 = vsel %vm610, 0.0, %v1212
    %v1214 = vrot.slane %v1205, 4
    %v1215 = vsel %vm610, 0.0, %v1214
    %v1216 = vrot.slane %v1209, 4
    %v1217 = vsel %vm610, 0.0, %v1216
    %v1218 = vrot.slane %v1087, 4
    %v1219 = vsel %vm610, %v1218, %v546
    %v1220 = vrot.slane %v546, 4
    %v1221 = vsel %vm610, %v1087, %v1220
    %v1223 = vunpack.c.l.s4 1983009808
    %v1224 = vunpack.c.0.s8 %v1223
    %v1225 = vperm.slane %v1219, %v1224
    %v1227 = vunpack.c.l.s4 1983009808
    %v1228 = vunpack.c.0.s8 %v1227
    %v1229 = vperm.slane %v1221, %v1228
    %v1230 = vrot.slane %v1099, 4
    %v1231 = vsel %vm610, %v1230, %v1075
    %v1232 = vrot.slane %v1075, 4
    %v1233 = vsel %vm610, %v1099, %v1232
    %v1235 = vunpack.c.l.s4 1983009808
    %v1236 = vunpack.c.0.s8 %v1235
    %v1237 = vperm.slane %v1231, %v1236
    %v1239 = vunpack.c.l.s4 1983009808
    %v1240 = vunpack.c.0.s8 %v1239
    %v1241 = vperm.slane %v1233, %v1240
    %v1242 = vrot.slane %v1237, 4
    %v1243 = vsel %vm610, %v1242, %v1225
    %v1244 = vrot.slane %v1225, 4
    %v1245 = vsel %vm610, %v1237, %v1244
    %v1247 = vunpack.c.l.s4 1934713408
    %v1248 = vunpack.c.0.s8 %v1247
    %v1249 = vperm.slane %v1243, %v1248
    %v1251 = vunpack.c.l.s4 1934713408
    %v1252 = vunpack.c.0.s8 %v1251
    %v1253 = vperm.slane %v1245, %v1252
    %v1254 = vrot.slane %v1241, 4
    %v1255 = vsel %vm610, %v1254, %v1229
    %v1256 = vrot.slane %v1229, 4
    %v1257 = vsel %vm610, %v1241, %v1256
    %v1259 = vunpack.c.l.s4 1934713408
    %v1260 = vunpack.c.0.s8 %v1259
    %v1261 = vperm.slane %v1255, %v1260
    %v1263 = vunpack.c.l.s4 1934713408
    %v1264 = vunpack.c.0.s8 %v1263
    %v1265 = vperm.slane %v1257, %v1264
    %v1266 = vrot.slane %v1249, 4
    %v1267 = vsel %vm610, 0.0, %v1266
    %v1268 = vrot.slane %v1253, 4
    %v1269 = vsel %vm610, 0.0, %v1268
    %v1270 = vrot.slane %v1261, 4
    %v1271 = vsel %vm610, 0.0, %v1270
    %v1272 = vrot.slane %v1265, 4
    %v1273 = vsel %vm610, 0.0, %v1272
    %v1274 = vrot.slane %v1089, 4
    %v1275 = vsel %vm610, %v1274, %v548
    %v1276 = vrot.slane %v548, 4
    %v1277 = vsel %vm610, %v1089, %v1276
    %v1279 = vunpack.c.l.s4 1983009808
    %v1280 = vunpack.c.0.s8 %v1279
    %v1281 = vperm.slane %v1275, %v1280
    %v1283 = vunpack.c.l.s4 1983009808
    %v1284 = vunpack.c.0.s8 %v1283
    %v1285 = vperm.slane %v1277, %v1284
    %v1286 = vrot.slane %v1101, 4
    %v1287 = vsel %vm610, %v1286, %v1077
    %v1288 = vrot.slane %v1077, 4
    %v1289 = vsel %vm610, %v1101, %v1288
    %v1291 = vunpack.c.l.s4 1983009808
    %v1292 = vunpack.c.0.s8 %v1291
    %v1293 = vperm.slane %v1287, %v1292
    %v1295 = vunpack.c.l.s4 1983009808
    %v1296 = vunpack.c.0.s8 %v1295
    %v1297 = vperm.slane %v1289, %v1296
    %v1298 = vrot.slane %v1293, 4
    %v1299 = vsel %vm610, %v1298, %v1281
    %v1300 = vrot.slane %v1281, 4
    %v1301 = vsel %vm610, %v1293, %v1300
    %v1303 = vunpack.c.l.s4 1934713408
    %v1304 = vunpack.c.0.s8 %v1303
    %v1305 = vperm.slane %v1299, %v1304
    %v1307 = vunpack.c.l.s4 1934713408
    %v1308 = vunpack.c.0.s8 %v1307
    %v1309 = vperm.slane %v1301, %v1308
    %v1310 = vrot.slane %v1297, 4
    %v1311 = vsel %vm610, %v1310, %v1285
    %v1312 = vrot.slane %v1285, 4
    %v1313 = vsel %vm610, %v1297, %v1312
    %v1315 = vunpack.c.l.s4 1934713408
    %v1316 = vunpack.c.0.s8 %v1315
    %v1317 = vperm.slane %v1311, %v1316
    %v1319 = vunpack.c.l.s4 1934713408
    %v1320 = vunpack.c.0.s8 %v1319
    %v1321 = vperm.slane %v1313, %v1320
    %v1322 = vrot.slane %v1305, 4
    %v1323 = vsel %vm610, 0.0, %v1322
    %v1324 = vrot.slane %v1309, 4
    %v1325 = vsel %vm610, 0.0, %v1324
    %v1326 = vrot.slane %v1317, 4
    %v1327 = vsel %vm610, 0.0, %v1326
    %v1328 = vrot.slane %v1321, 4
    %v1329 = vsel %vm610, 0.0, %v1328
    %v1330 = vsel %vm610, %v1156, %v1137
    %v1332 = vunpack.c.l.s4 1983009808
    %v1333 = vunpack.c.0.s8 %v1332
    %v1334 = vperm.slane %v1330, %v1333
    %v1335 = vrot.slane %v1157, 4
    %v1336 = vsel %vm610, %v1335, %v1155
    %v1338 = vunpack.c.l.s4 1983009808
    %v1339 = vunpack.c.0.s8 %v1338
    %v1340 = vperm.slane %v1336, %v1339
    %v1341 = vsel %vm610, %v1160, %v1149
    %v1343 = vunpack.c.l.s4 1983009808
    %v1344 = vunpack.c.0.s8 %v1343
    %v1345 = vperm.slane %v1341, %v1344
    %v1346 = vrot.slane %v1161, 4
    %v1347 = vsel %vm610, %v1346, %v1159
    %v1349 = vunpack.c.l.s4 1983009808
    %v1350 = vunpack.c.0.s8 %v1349
    %v1351 = vperm.slane %v1347, %v1350
    %v1352 = vrot.slane %v1340, 4
    %v1353 = vsel %vm610, %v1352, %v1334
    %v1354 = vrot.slane %v1334, 4
    %v1355 = vsel %vm610, %v1340, %v1354
    %v1357 = vunpack.c.l.s4 1934713408
    %v1358 = vunpack.c.0.s8 %v1357
    %v1359 = vperm.slane %v1353, %v1358
    %v1361 = vunpack.c.l.s4 1934713408
    %v1362 = vunpack.c.0.s8 %v1361
    %v1363 = vperm.slane %v1355, %v1362
    %v1364 = vrot.slane %v1351, 4
    %v1365 = vsel %vm610, %v1364, %v1345
    %v1366 = vrot.slane %v1345, 4
    %v1367 = vsel %vm610, %v1351, %v1366
    %v1369 = vunpack.c.l.s4 1934713408
    %v1370 = vunpack.c.0.s8 %v1369
    %v1371 = vperm.slane %v1365, %v1370
    %v1373 = vunpack.c.l.s4 1934713408
    %v1374 = vunpack.c.0.s8 %v1373
    %v1375 = vperm.slane %v1367, %v1374
    %v1376 = vrot.slane %v1371, 4
    %v1377 = vsel %vm610, %v1376, %v1359
    %v1378 = vrot.slane %v1359, 4
    %v1379 = vsel %vm610, %v1371, %v1378
    %v1380 = vrot.slane %v1375, 4
    %v1381 = vsel %vm610, %v1380, %v1363
    %v1382 = vrot.slane %v1363, 4
    %v1383 = vsel %vm610, %v1375, %v1382
    %v1384 = vsel %vm610, %v1212, %v1193
    %v1386 = vunpack.c.l.s4 1983009808
    %v1387 = vunpack.c.0.s8 %v1386
    %v1388 = vperm.slane %v1384, %v1387
    %v1389 = vrot.slane %v1213, 4
    %v1390 = vsel %vm610, %v1389, %v1211
    %v1392 = vunpack.c.l.s4 1983009808
    %v1393 = vunpack.c.0.s8 %v1392
    %v1394 = vperm.slane %v1390, %v1393
    %v1395 = vsel %vm610, %v1216, %v1205
    %v1397 = vunpack.c.l.s4 1983009808
    %v1398 = vunpack.c.0.s8 %v1397
    %v1399 = vperm.slane %v1395, %v1398
    %v1400 = vrot.slane %v1217, 4
    %v1401 = vsel %vm610, %v1400, %v1215
    %v1403 = vunpack.c.l.s4 1983009808
    %v1404 = vunpack.c.0.s8 %v1403
    %v1405 = vperm.slane %v1401, %v1404
    %v1406 = vrot.slane %v1394, 4
    %v1407 = vsel %vm610, %v1406, %v1388
    %v1408 = vrot.slane %v1388, 4
    %v1409 = vsel %vm610, %v1394, %v1408
    %v1411 = vunpack.c.l.s4 1934713408
    %v1412 = vunpack.c.0.s8 %v1411
    %v1413 = vperm.slane %v1407, %v1412
    %v1415 = vunpack.c.l.s4 1934713408
    %v1416 = vunpack.c.0.s8 %v1415
    %v1417 = vperm.slane %v1409, %v1416
    %v1418 = vrot.slane %v1405, 4
    %v1419 = vsel %vm610, %v1418, %v1399
    %v1420 = vrot.slane %v1399, 4
    %v1421 = vsel %vm610, %v1405, %v1420
    %v1423 = vunpack.c.l.s4 1934713408
    %v1424 = vunpack.c.0.s8 %v1423
    %v1425 = vperm.slane %v1419, %v1424
    %v1427 = vunpack.c.l.s4 1934713408
    %v1428 = vunpack.c.0.s8 %v1427
    %v1429 = vperm.slane %v1421, %v1428
    %v1430 = vrot.slane %v1425, 4
    %v1431 = vsel %vm610, %v1430, %v1413
    %v1432 = vrot.slane %v1413, 4
    %v1433 = vsel %vm610, %v1425, %v1432
    %v1434 = vrot.slane %v1429, 4
    %v1435 = vsel %vm610, %v1434, %v1417
    %v1436 = vrot.slane %v1417, 4
    %v1437 = vsel %vm610, %v1429, %v1436
    %v1438 = vsel %vm610, %v1268, %v1249
    %v1440 = vunpack.c.l.s4 1983009808
    %v1441 = vunpack.c.0.s8 %v1440
    %v1442 = vperm.slane %v1438, %v1441
    %v1443 = vrot.slane %v1269, 4
    %v1444 = vsel %vm610, %v1443, %v1267
    %v1446 = vunpack.c.l.s4 1983009808
    %v1447 = vunpack.c.0.s8 %v1446
    %v1448 = vperm.slane %v1444, %v1447
    %v1449 = vsel %vm610, %v1272, %v1261
    %v1451 = vunpack.c.l.s4 1983009808
    %v1452 = vunpack.c.0.s8 %v1451
    %v1453 = vperm.slane %v1449, %v1452
    %v1454 = vrot.slane %v1273, 4
    %v1455 = vsel %vm610, %v1454, %v1271
    %v1457 = vunpack.c.l.s4 1983009808
    %v1458 = vunpack.c.0.s8 %v1457
    %v1459 = vperm.slane %v1455, %v1458
    %v1460 = vrot.slane %v1448, 4
    %v1461 = vsel %vm610, %v1460, %v1442
    %v1462 = vrot.slane %v1442, 4
    %v1463 = vsel %vm610, %v1448, %v1462
    %v1465 = vunpack.c.l.s4 1934713408
    %v1466 = vunpack.c.0.s8 %v1465
    %v1467 = vperm.slane %v1461, %v1466
    %v1469 = vunpack.c.l.s4 1934713408
    %v1470 = vunpack.c.0.s8 %v1469
    %v1471 = vperm.slane %v1463, %v1470
    %v1472 = vrot.slane %v1459, 4
    %v1473 = vsel %vm610, %v1472, %v1453
    %v1474 = vrot.slane %v1453, 4
    %v1475 = vsel %vm610, %v1459, %v1474
    %v1477 = vunpack.c.l.s4 1934713408
    %v1478 = vunpack.c.0.s8 %v1477
    %v1479 = vperm.slane %v1473, %v1478
    %v1481 = vunpack.c.l.s4 1934713408
    %v1482 = vunpack.c.0.s8 %v1481
    %v1483 = vperm.slane %v1475, %v1482
    %v1484 = vrot.slane %v1479, 4
    %v1485 = vsel %vm610, %v1484, %v1467
    %v1486 = vrot.slane %v1467, 4
    %v1487 = vsel %vm610, %v1479, %v1486
    %v1488 = vrot.slane %v1483, 4
    %v1489 = vsel %vm610, %v1488, %v1471
    %v1490 = vrot.slane %v1471, 4
    %v1491 = vsel %vm610, %v1483, %v1490
    %v1492 = vsel %vm610, %v1324, %v1305
    %v1494 = vunpack.c.l.s4 1983009808
    %v1495 = vunpack.c.0.s8 %v1494
    %v1496 = vperm.slane %v1492, %v1495
    %v1497 = vrot.slane %v1325, 4
    %v1498 = vsel %vm610, %v1497, %v1323
    %v1500 = vunpack.c.l.s4 1983009808
    %v1501 = vunpack.c.0.s8 %v1500
    %v1502 = vperm.slane %v1498, %v1501
    %v1503 = vsel %vm610, %v1328, %v1317
    %v1505 = vunpack.c.l.s4 1983009808
    %v1506 = vunpack.c.0.s8 %v1505
    %v1507 = vperm.slane %v1503, %v1506
    %v1508 = vrot.slane %v1329, 4
    %v1509 = vsel %vm610, %v1508, %v1327
    %v1511 = vunpack.c.l.s4 1983009808
    %v1512 = vunpack.c.0.s8 %v1511
    %v1513 = vperm.slane %v1509, %v1512
    %v1514 = vrot.slane %v1502, 4
    %v1515 = vsel %vm610, %v1514, %v1496
    %v1516 = vrot.slane %v1496, 4
    %v1517 = vsel %vm610, %v1502, %v1516
    %v1519 = vunpack.c.l.s4 1934713408
    %v1520 = vunpack.c.0.s8 %v1519
    %v1521 = vperm.slane %v1515, %v1520
    %v1523 = vunpack.c.l.s4 1934713408
    %v1524 = vunpack.c.0.s8 %v1523
    %v1525 = vperm.slane %v1517, %v1524
    %v1526 = vrot.slane %v1513, 4
    %v1527 = vsel %vm610, %v1526, %v1507
    %v1528 = vrot.slane %v1507, 4
    %v1529 = vsel %vm610, %v1513, %v1528
    %v1531 = vunpack.c.l.s4 1934713408
    %v1532 = vunpack.c.0.s8 %v1531
    %v1533 = vperm.slane %v1527, %v1532
    %v1535 = vunpack.c.l.s4 1934713408
    %v1536 = vunpack.c.0.s8 %v1535
    %v1537 = vperm.slane %v1529, %v1536
    %v1538 = vrot.slane %v1533, 4
    %v1539 = vsel %vm610, %v1538, %v1521
    %v1540 = vrot.slane %v1521, 4
    %v1541 = vsel %vm610, %v1533, %v1540
    %v1542 = vrot.slane %v1537, 4
    %v1543 = vsel %vm610, %v1542, %v1525
    %v1544 = vrot.slane %v1525, 4
    %v1545 = vsel %vm610, %v1537, %v1544
    %v1546 = vpack.c.bf16 %v1377, %v1377
    %v1547 = vpack.c.bf16 %v1431, %v1431
    %v1548 = vpack.c.bf16 %v1379, %v1379
    %v1549 = vpack.c.bf16 %v1433, %v1433
    %v1550 = vpack.c.bf16 %v1381, %v1381
    %v1551 = vpack.c.bf16 %v1435, %v1435
    %v1552 = vpack.c.bf16 %v1383, %v1383
    %v1553 = vpack.c.bf16 %v1437, %v1437
    %v1554 = vpack.c.bf16 %v1485, %v1485
    %v1555 = vpack.c.bf16 %v1539, %v1539
    %v1556 = vpack.c.bf16 %v1487, %v1487
    %v1557 = vpack.c.bf16 %v1541, %v1541
    %v1558 = vpack.c.bf16 %v1489, %v1489
    %v1559 = vpack.c.bf16 %v1543, %v1543
    %v1560 = vpack.c.bf16 %v1491, %v1491
    %v1561 = vpack.c.bf16 %v1545, %v1545
    %1566 = vrot.lane.b32.xlu0 %v560, 96
    %v1567 = vpop.permute.xlu0 %1566
    %1568 = vrot.lane.b32.xlu0 %v562, 96
    %v1569 = vpop.permute.xlu0 %1568
    %1570 = vrot.lane.b32.xlu0 %v565, 96
    %v1571 = vpop.permute.xlu0 %1570
    %1572 = vrot.lane.b32.xlu0 %v567, 96
    %v1573 = vpop.permute.xlu0 %1572
    %1578 = vrot.lane.b32.xlu0 %v560, 64
    %v1579 = vpop.permute.xlu0 %1578
    %1580 = vrot.lane.b32.xlu0 %v562, 64
    %v1581 = vpop.permute.xlu0 %1580
    %1582 = vrot.lane.b32.xlu0 %v565, 64
    %v1583 = vpop.permute.xlu0 %1582
    %1584 = vrot.lane.b32.xlu0 %v567, 64
    %v1585 = vpop.permute.xlu0 %1584
    %1590 = vrot.lane.b32.xlu0 %v560, 32
    %v1591 = vpop.permute.xlu0 %1590
    %1592 = vrot.lane.b32.xlu0 %v562, 32
    %v1593 = vpop.permute.xlu0 %1592
    %1594 = vrot.lane.b32.xlu0 %v565, 32
    %v1595 = vpop.permute.xlu0 %1594
    %1596 = vrot.lane.b32.xlu0 %v567, 32
    %v1597 = vpop.permute.xlu0 %1596
    %v1602 = vrot.slane %v1579, 4
    %v1603 = vsel %vm610, %v1602, %v560
    %v1604 = vrot.slane %v560, 4
    %v1605 = vsel %vm610, %v1579, %v1604
    %v1607 = vunpack.c.l.s4 1983009808
    %v1608 = vunpack.c.0.s8 %v1607
    %v1609 = vperm.slane %v1603, %v1608
    %v1611 = vunpack.c.l.s4 1983009808
    %v1612 = vunpack.c.0.s8 %v1611
    %v1613 = vperm.slane %v1605, %v1612
    %v1614 = vrot.slane %v1591, 4
    %v1615 = vsel %vm610, %v1614, %v1567
    %v1616 = vrot.slane %v1567, 4
    %v1617 = vsel %vm610, %v1591, %v1616
    %v1619 = vunpack.c.l.s4 1983009808
    %v1620 = vunpack.c.0.s8 %v1619
    %v1621 = vperm.slane %v1615, %v1620
    %v1623 = vunpack.c.l.s4 1983009808
    %v1624 = vunpack.c.0.s8 %v1623
    %v1625 = vperm.slane %v1617, %v1624
    %v1626 = vrot.slane %v1621, 4
    %v1627 = vsel %vm610, %v1626, %v1609
    %v1628 = vrot.slane %v1609, 4
    %v1629 = vsel %vm610, %v1621, %v1628
    %v1631 = vunpack.c.l.s4 1934713408
    %v1632 = vunpack.c.0.s8 %v1631
    %v1633 = vperm.slane %v1627, %v1632
    %v1635 = vunpack.c.l.s4 1934713408
    %v1636 = vunpack.c.0.s8 %v1635
    %v1637 = vperm.slane %v1629, %v1636
    %v1638 = vrot.slane %v1625, 4
    %v1639 = vsel %vm610, %v1638, %v1613
    %v1640 = vrot.slane %v1613, 4
    %v1641 = vsel %vm610, %v1625, %v1640
    %v1643 = vunpack.c.l.s4 1934713408
    %v1644 = vunpack.c.0.s8 %v1643
    %v1645 = vperm.slane %v1639, %v1644
    %v1647 = vunpack.c.l.s4 1934713408
    %v1648 = vunpack.c.0.s8 %v1647
    %v1649 = vperm.slane %v1641, %v1648
    %v1650 = vrot.slane %v1633, 4
    %v1651 = vsel %vm610, 0.0, %v1650
    %v1652 = vrot.slane %v1637, 4
    %v1653 = vsel %vm610, 0.0, %v1652
    %v1654 = vrot.slane %v1645, 4
    %v1655 = vsel %vm610, 0.0, %v1654
    %v1656 = vrot.slane %v1649, 4
    %v1657 = vsel %vm610, 0.0, %v1656
    %v1658 = vrot.slane %v1581, 4
    %v1659 = vsel %vm610, %v1658, %v562
    %v1660 = vrot.slane %v562, 4
    %v1661 = vsel %vm610, %v1581, %v1660
    %v1663 = vunpack.c.l.s4 1983009808
    %v1664 = vunpack.c.0.s8 %v1663
    %v1665 = vperm.slane %v1659, %v1664
    %v1667 = vunpack.c.l.s4 1983009808
    %v1668 = vunpack.c.0.s8 %v1667
    %v1669 = vperm.slane %v1661, %v1668
    %v1670 = vrot.slane %v1593, 4
    %v1671 = vsel %vm610, %v1670, %v1569
    %v1672 = vrot.slane %v1569, 4
    %v1673 = vsel %vm610, %v1593, %v1672
    %v1675 = vunpack.c.l.s4 1983009808
    %v1676 = vunpack.c.0.s8 %v1675
    %v1677 = vperm.slane %v1671, %v1676
    %v1679 = vunpack.c.l.s4 1983009808
    %v1680 = vunpack.c.0.s8 %v1679
    %v1681 = vperm.slane %v1673, %v1680
    %v1682 = vrot.slane %v1677, 4
    %v1683 = vsel %vm610, %v1682, %v1665
    %v1684 = vrot.slane %v1665, 4
    %v1685 = vsel %vm610, %v1677, %v1684
    %v1687 = vunpack.c.l.s4 1934713408
    %v1688 = vunpack.c.0.s8 %v1687
    %v1689 = vperm.slane %v1683, %v1688
    %v1691 = vunpack.c.l.s4 1934713408
    %v1692 = vunpack.c.0.s8 %v1691
    %v1693 = vperm.slane %v1685, %v1692
    %v1694 = vrot.slane %v1681, 4
    %v1695 = vsel %vm610, %v1694, %v1669
    %v1696 = vrot.slane %v1669, 4
    %v1697 = vsel %vm610, %v1681, %v1696
    %v1699 = vunpack.c.l.s4 1934713408
    %v1700 = vunpack.c.0.s8 %v1699
    %v1701 = vperm.slane %v1695, %v1700
    %v1703 = vunpack.c.l.s4 1934713408
    %v1704 = vunpack.c.0.s8 %v1703
    %v1705 = vperm.slane %v1697, %v1704
    %v1706 = vrot.slane %v1689, 4
    %v1707 = vsel %vm610, 0.0, %v1706
    %v1708 = vrot.slane %v1693, 4
    %v1709 = vsel %vm610, 0.0, %v1708
    %v1710 = vrot.slane %v1701, 4
    %v1711 = vsel %vm610, 0.0, %v1710
    %v1712 = vrot.slane %v1705, 4
    %v1713 = vsel %vm610, 0.0, %v1712
    %v1714 = vrot.slane %v1583, 4
    %v1715 = vsel %vm610, %v1714, %v565
    %v1716 = vrot.slane %v565, 4
    %v1717 = vsel %vm610, %v1583, %v1716
    %v1719 = vunpack.c.l.s4 1983009808
    %v1720 = vunpack.c.0.s8 %v1719
    %v1721 = vperm.slane %v1715, %v1720
    %v1723 = vunpack.c.l.s4 1983009808
    %v1724 = vunpack.c.0.s8 %v1723
    %v1725 = vperm.slane %v1717, %v1724
    %v1726 = vrot.slane %v1595, 4
    %v1727 = vsel %vm610, %v1726, %v1571
    %v1728 = vrot.slane %v1571, 4
    %v1729 = vsel %vm610, %v1595, %v1728
    %v1731 = vunpack.c.l.s4 1983009808
    %v1732 = vunpack.c.0.s8 %v1731
    %v1733 = vperm.slane %v1727, %v1732
    %v1735 = vunpack.c.l.s4 1983009808
    %v1736 = vunpack.c.0.s8 %v1735
    %v1737 = vperm.slane %v1729, %v1736
    %v1738 = vrot.slane %v1733, 4
    %v1739 = vsel %vm610, %v1738, %v1721
    %v1740 = vrot.slane %v1721, 4
    %v1741 = vsel %vm610, %v1733, %v1740
    %v1743 = vunpack.c.l.s4 1934713408
    %v1744 = vunpack.c.0.s8 %v1743
    %v1745 = vperm.slane %v1739, %v1744
    %v1747 = vunpack.c.l.s4 1934713408
    %v1748 = vunpack.c.0.s8 %v1747
    %v1749 = vperm.slane %v1741, %v1748
    %v1750 = vrot.slane %v1737, 4
    %v1751 = vsel %vm610, %v1750, %v1725
    %v1752 = vrot.slane %v1725, 4
    %v1753 = vsel %vm610, %v1737, %v1752
    %v1755 = vunpack.c.l.s4 1934713408
    %v1756 = vunpack.c.0.s8 %v1755
    %v1757 = vperm.slane %v1751, %v1756
    %v1759 = vunpack.c.l.s4 1934713408
    %v1760 = vunpack.c.0.s8 %v1759
    %v1761 = vperm.slane %v1753, %v1760
    %v1762 = vrot.slane %v1745, 4
    %v1763 = vsel %vm610, 0.0, %v1762
    %v1764 = vrot.slane %v1749, 4
    %v1765 = vsel %vm610, 0.0, %v1764
    %v1766 = vrot.slane %v1757, 4
    %v1767 = vsel %vm610, 0.0, %v1766
    %v1768 = vrot.slane %v1761, 4
    %v1769 = vsel %vm610, 0.0, %v1768
    %v1770 = vrot.slane %v1585, 4
    %v1771 = vsel %vm610, %v1770, %v567
    %v1772 = vrot.slane %v567, 4
    %v1773 = vsel %vm610, %v1585, %v1772
    %v1775 = vunpack.c.l.s4 1983009808
    %v1776 = vunpack.c.0.s8 %v1775
    %v1777 = vperm.slane %v1771, %v1776
    %v1779 = vunpack.c.l.s4 1983009808
    %v1780 = vunpack.c.0.s8 %v1779
    %v1781 = vperm.slane %v1773, %v1780
    %v1782 = vrot.slane %v1597, 4
    %v1783 = vsel %vm610, %v1782, %v1573
    %v1784 = vrot.slane %v1573, 4
    %v1785 = vsel %vm610, %v1597, %v1784
    %v1787 = vunpack.c.l.s4 1983009808
    %v1788 = vunpack.c.0.s8 %v1787
    %v1789 = vperm.slane %v1783, %v1788
    %v1791 = vunpack.c.l.s4 1983009808
    %v1792 = vunpack.c.0.s8 %v1791
    %v1793 = vperm.slane %v1785, %v1792
    %v1794 = vrot.slane %v1789, 4
    %v1795 = vsel %vm610, %v1794, %v1777
    %v1796 = vrot.slane %v1777, 4
    %v1797 = vsel %vm610, %v1789, %v1796
    %v1799 = vunpack.c.l.s4 1934713408
    %v1800 = vunpack.c.0.s8 %v1799
    %v1801 = vperm.slane %v1795, %v1800
    %v1803 = vunpack.c.l.s4 1934713408
    %v1804 = vunpack.c.0.s8 %v1803
    %v1805 = vperm.slane %v1797, %v1804
    %v1806 = vrot.slane %v1793, 4
    %v1807 = vsel %vm610, %v1806, %v1781
    %v1808 = vrot.slane %v1781, 4
    %v1809 = vsel %vm610, %v1793, %v1808
    %v1811 = vunpack.c.l.s4 1934713408
    %v1812 = vunpack.c.0.s8 %v1811
    %v1813 = vperm.slane %v1807, %v1812
    %v1815 = vunpack.c.l.s4 1934713408
    %v1816 = vunpack.c.0.s8 %v1815
    %v1817 = vperm.slane %v1809, %v1816
    %v1818 = vrot.slane %v1801, 4
    %v1819 = vsel %vm610, 0.0, %v1818
    %v1820 = vrot.slane %v1805, 4
    %v1821 = vsel %vm610, 0.0, %v1820
    %v1822 = vrot.slane %v1813, 4
    %v1823 = vsel %vm610, 0.0, %v1822
    %v1824 = vrot.slane %v1817, 4
    %v1825 = vsel %vm610, 0.0, %v1824
    %v1826 = vsel %vm610, %v1652, %v1633
    %v1828 = vunpack.c.l.s4 1983009808
    %v1829 = vunpack.c.0.s8 %v1828
    %v1830 = vperm.slane %v1826, %v1829
    %v1831 = vrot.slane %v1653, 4
    %v1832 = vsel %vm610, %v1831, %v1651
    %v1834 = vunpack.c.l.s4 1983009808
    %v1835 = vunpack.c.0.s8 %v1834
    %v1836 = vperm.slane %v1832, %v1835
    %v1837 = vsel %vm610, %v1656, %v1645
    %v1839 = vunpack.c.l.s4 1983009808
    %v1840 = vunpack.c.0.s8 %v1839
    %v1841 = vperm.slane %v1837, %v1840
    %v1842 = vrot.slane %v1657, 4
    %v1843 = vsel %vm610, %v1842, %v1655
    %v1845 = vunpack.c.l.s4 1983009808
    %v1846 = vunpack.c.0.s8 %v1845
    %v1847 = vperm.slane %v1843, %v1846
    %v1848 = vrot.slane %v1836, 4
    %v1849 = vsel %vm610, %v1848, %v1830
    %v1850 = vrot.slane %v1830, 4
    %v1851 = vsel %vm610, %v1836, %v1850
    %v1853 = vunpack.c.l.s4 1934713408
    %v1854 = vunpack.c.0.s8 %v1853
    %v1855 = vperm.slane %v1849, %v1854
    %v1857 = vunpack.c.l.s4 1934713408
    %v1858 = vunpack.c.0.s8 %v1857
    %v1859 = vperm.slane %v1851, %v1858
    %v1860 = vrot.slane %v1847, 4
    %v1861 = vsel %vm610, %v1860, %v1841
    %v1862 = vrot.slane %v1841, 4
    %v1863 = vsel %vm610, %v1847, %v1862
    %v1865 = vunpack.c.l.s4 1934713408
    %v1866 = vunpack.c.0.s8 %v1865
    %v1867 = vperm.slane %v1861, %v1866
    %v1869 = vunpack.c.l.s4 1934713408
    %v1870 = vunpack.c.0.s8 %v1869
    %v1871 = vperm.slane %v1863, %v1870
    %v1872 = vrot.slane %v1867, 4
    %v1873 = vsel %vm610, %v1872, %v1855
    %v1874 = vrot.slane %v1855, 4
    %v1875 = vsel %vm610, %v1867, %v1874
    %v1876 = vrot.slane %v1871, 4
    %v1877 = vsel %vm610, %v1876, %v1859
    %v1878 = vrot.slane %v1859, 4
    %v1879 = vsel %vm610, %v1871, %v1878
    %v1880 = vsel %vm610, %v1708, %v1689
    %v1882 = vunpack.c.l.s4 1983009808
    %v1883 = vunpack.c.0.s8 %v1882
    %v1884 = vperm.slane %v1880, %v1883
    %v1885 = vrot.slane %v1709, 4
    %v1886 = vsel %vm610, %v1885, %v1707
    %v1888 = vunpack.c.l.s4 1983009808
    %v1889 = vunpack.c.0.s8 %v1888
    %v1890 = vperm.slane %v1886, %v1889
    %v1891 = vsel %vm610, %v1712, %v1701
    %v1893 = vunpack.c.l.s4 1983009808
    %v1894 = vunpack.c.0.s8 %v1893
    %v1895 = vperm.slane %v1891, %v1894
    %v1896 = vrot.slane %v1713, 4
    %v1897 = vsel %vm610, %v1896, %v1711
    %v1899 = vunpack.c.l.s4 1983009808
    %v1900 = vunpack.c.0.s8 %v1899
    %v1901 = vperm.slane %v1897, %v1900
    %v1902 = vrot.slane %v1890, 4
    %v1903 = vsel %vm610, %v1902, %v1884
    %v1904 = vrot.slane %v1884, 4
    %v1905 = vsel %vm610, %v1890, %v1904
    %v1907 = vunpack.c.l.s4 1934713408
    %v1908 = vunpack.c.0.s8 %v1907
    %v1909 = vperm.slane %v1903, %v1908
    %v1911 = vunpack.c.l.s4 1934713408
    %v1912 = vunpack.c.0.s8 %v1911
    %v1913 = vperm.slane %v1905, %v1912
    %v1914 = vrot.slane %v1901, 4
    %v1915 = vsel %vm610, %v1914, %v1895
    %v1916 = vrot.slane %v1895, 4
    %v1917 = vsel %vm610, %v1901, %v1916
    %v1919 = vunpack.c.l.s4 1934713408
    %v1920 = vunpack.c.0.s8 %v1919
    %v1921 = vperm.slane %v1915, %v1920
    %v1923 = vunpack.c.l.s4 1934713408
    %v1924 = vunpack.c.0.s8 %v1923
    %v1925 = vperm.slane %v1917, %v1924
    %v1926 = vrot.slane %v1921, 4
    %v1927 = vsel %vm610, %v1926, %v1909
    %v1928 = vrot.slane %v1909, 4
    %v1929 = vsel %vm610, %v1921, %v1928
    %v1930 = vrot.slane %v1925, 4
    %v1931 = vsel %vm610, %v1930, %v1913
    %v1932 = vrot.slane %v1913, 4
    %v1933 = vsel %vm610, %v1925, %v1932
    %v1934 = vsel %vm610, %v1764, %v1745
    %v1936 = vunpack.c.l.s4 1983009808
    %v1937 = vunpack.c.0.s8 %v1936
    %v1938 = vperm.slane %v1934, %v1937
    %v1939 = vrot.slane %v1765, 4
    %v1940 = vsel %vm610, %v1939, %v1763
    %v1942 = vunpack.c.l.s4 1983009808
    %v1943 = vunpack.c.0.s8 %v1942
    %v1944 = vperm.slane %v1940, %v1943
    %v1945 = vsel %vm610, %v1768, %v1757
    %v1947 = vunpack.c.l.s4 1983009808
    %v1948 = vunpack.c.0.s8 %v1947
    %v1949 = vperm.slane %v1945, %v1948
    %v1950 = vrot.slane %v1769, 4
    %v1951 = vsel %vm610, %v1950, %v1767
    %v1953 = vunpack.c.l.s4 1983009808
    %v1954 = vunpack.c.0.s8 %v1953
    %v1955 = vperm.slane %v1951, %v1954
    %v1956 = vrot.slane %v1944, 4
    %v1957 = vsel %vm610, %v1956, %v1938
    %v1958 = vrot.slane %v1938, 4
    %v1959 = vsel %vm610, %v1944, %v1958
    %v1961 = vunpack.c.l.s4 1934713408
    %v1962 = vunpack.c.0.s8 %v1961
    %v1963 = vperm.slane %v1957, %v1962
    %v1965 = vunpack.c.l.s4 1934713408
    %v1966 = vunpack.c.0.s8 %v1965
    %v1967 = vperm.slane %v1959, %v1966
    %v1968 = vrot.slane %v1955, 4
    %v1969 = vsel %vm610, %v1968, %v1949
    %v1970 = vrot.slane %v1949, 4
    %v1971 = vsel %vm610, %v1955, %v1970
    %v1973 = vunpack.c.l.s4 1934713408
    %v1974 = vunpack.c.0.s8 %v1973
    %v1975 = vperm.slane %v1969, %v1974
    %v1977 = vunpack.c.l.s4 1934713408
    %v1978 = vunpack.c.0.s8 %v1977
    %v1979 = vperm.slane %v1971, %v1978
    %v1980 = vrot.slane %v1975, 4
    %v1981 = vsel %vm610, %v1980, %v1963
    %v1982 = vrot.slane %v1963, 4
    %v1983 = vsel %vm610, %v1975, %v1982
    %v1984 = vrot.slane %v1979, 4
    %v1985 = vsel %vm610, %v1984, %v1967
    %v1986 = vrot.slane %v1967, 4
    %v1987 = vsel %vm610, %v1979, %v1986
    %v1988 = vsel %vm610, %v1820, %v1801
    %v1990 = vunpack.c.l.s4 1983009808
    %v1991 = vunpack.c.0.s8 %v1990
    %v1992 = vperm.slane %v1988, %v1991
    %v1993 = vrot.slane %v1821, 4
    %v1994 = vsel %vm610, %v1993, %v1819
    %v1996 = vunpack.c.l.s4 1983009808
    %v1997 = vunpack.c.0.s8 %v1996
    %v1998 = vperm.slane %v1994, %v1997
    %v1999 = vsel %vm610, %v1824, %v1813
    %v2001 = vunpack.c.l.s4 1983009808
    %v2002 = vunpack.c.0.s8 %v2001
    %v2003 = vperm.slane %v1999, %v2002
    %v2004 = vrot.slane %v1825, 4
    %v2005 = vsel %vm610, %v2004, %v1823
    %v2007 = vunpack.c.l.s4 1983009808
    %v2008 = vunpack.c.0.s8 %v2007
    %v2009 = vperm.slane %v2005, %v2008
    %v2010 = vrot.slane %v1998, 4
    %v2011 = vsel %vm610, %v2010, %v1992
    %v2012 = vrot.slane %v1992, 4
    %v2013 = vsel %vm610, %v1998, %v2012
    %v2015 = vunpack.c.l.s4 1934713408
    %v2016 = vunpack.c.0.s8 %v2015
    %v2017 = vperm.slane %v2011, %v2016
    %v2019 = vunpack.c.l.s4 1934713408
    %v2020 = vunpack.c.0.s8 %v2019
    %v2021 = vperm.slane %v2013, %v2020
    %v2022 = vrot.slane %v2009, 4
    %v2023 = vsel %vm610, %v2022, %v2003
    %v2024 = vrot.slane %v2003, 4
    %v2025 = vsel %vm610, %v2009, %v2024
    %v2027 = vunpack.c.l.s4 1934713408
    %v2028 = vunpack.c.0.s8 %v2027
    %v2029 = vperm.slane %v2023, %v2028
    %v2031 = vunpack.c.l.s4 1934713408
    %v2032 = vunpack.c.0.s8 %v2031
    %v2033 = vperm.slane %v2025, %v2032
    %v2034 = vrot.slane %v2029, 4
    %v2035 = vsel %vm610, %v2034, %v2017
    %v2036 = vrot.slane %v2017, 4
    %v2037 = vsel %vm610, %v2029, %v2036
    %v2038 = vrot.slane %v2033, 4
    %v2039 = vsel %vm610, %v2038, %v2021
    %v2040 = vrot.slane %v2021, 4
    %v2041 = vsel %vm610, %v2033, %v2040
    %v2042 = vpack.c.bf16 %v1873, %v1873
    %v2043 = vpack.c.bf16 %v1927, %v1927
    %v2044 = vpack.c.bf16 %v1875, %v1875
    %v2045 = vpack.c.bf16 %v1929, %v1929
    %v2046 = vpack.c.bf16 %v1877, %v1877
    %v2047 = vpack.c.bf16 %v1931, %v1931
    %v2048 = vpack.c.bf16 %v1879, %v1879
    %v2049 = vpack.c.bf16 %v1933, %v1933
    %v2050 = vpack.c.bf16 %v1981, %v1981
    %v2051 = vpack.c.bf16 %v2035, %v2035
    %v2052 = vpack.c.bf16 %v1983, %v1983
    %v2053 = vpack.c.bf16 %v2037, %v2037
    %v2054 = vpack.c.bf16 %v1985, %v1985
    %v2055 = vpack.c.bf16 %v2039, %v2039
    %v2056 = vpack.c.bf16 %v1987, %v1987
    %v2057 = vpack.c.bf16 %v2041, %v2041
    %v2060 = vunpack.c.l.b16 %v1050
    %v2061 = vunpack.c.l.b16 %v1051
    %v2062 = vpack.c.b16 %v2061, %v2060
    %v2065 = vunpack.c.l.b16 %v1546
    %v2066 = vunpack.c.l.b16 %v1547
    %v2067 = vpack.c.b16 %v2066, %v2065
    %vm2068 = vcmask 261120
    %v2070 = vsel %vm2068, %v2062, 0
    %v2073 = vsel %vm2068, %v2067, 0
    %2075 = vmatpush.bf16.xpose.msra.mxu0 0
    %2076 = vmatpush.bf16.xpose.msra.mxu0 0
    %2077 = vmatpush.bf16.xpose.msra.mxu0 0
    %2078 = vmatpush.bf16.xpose.msra.mxu0 0
    %2079 = vmatpush.bf16.xpose.msra.mxu0 0
    %2080 = vmatpush.bf16.xpose.msra.mxu0 0
    %2081 = vmatpush.bf16.xpose.msra.mxu0 0
    %2082 = vmatpush.bf16.xpose.msra.mxu0 %v2073
    %2083 = vmatmul.bf16.gmra.mxu0 %v2070
    %v2084 = vpop.f32.mrf.mxu0
    %v2085 = vadd.f32 0.0, %v2084
    %v2086 = vpop.f32.mrf.mxu0
    %v2087 = vadd.f32 0.0, %v2086
    %2088 = vdwg.mxu0
    %v2091 = vunpack.c.l.b16 %v1052
    %v2092 = vunpack.c.l.b16 %v1053
    %v2093 = vpack.c.b16 %v2092, %v2091
    %v2096 = vunpack.c.l.b16 %v1548
    %v2097 = vunpack.c.l.b16 %v1549
    %v2098 = vpack.c.b16 %v2097, %v2096
    %v2100 = vsel %vm2068, %v2093, 0
    %v2103 = vsel %vm2068, %v2098, 0
    %2105 = vmatpush.bf16.xpose.msra.mxu0 0
    %2106 = vmatpush.bf16.xpose.msra.mxu0 0
    %2107 = vmatpush.bf16.xpose.msra.mxu0 0
    %2108 = vmatpush.bf16.xpose.msra.mxu0 0
    %2109 = vmatpush.bf16.xpose.msra.mxu0 0
    %2110 = vmatpush.bf16.xpose.msra.mxu0 0
    %2111 = vmatpush.bf16.xpose.msra.mxu0 0
    %2112 = vmatpush.bf16.xpose.msra.mxu0 %v2103
    %2113 = vmatmul.bf16.gmra.mxu0 %v2100
    %v2114 = vpop.f32.mrf.mxu0
    %v2115 = vadd.f32 0.0, %v2114
    %v2116 = vpop.f32.mrf.mxu0
    %v2117 = vadd.f32 0.0, %v2116
    %2118 = vdwg.mxu0
    %v2121 = vunpack.c.l.b16 %v1054
    %v2122 = vunpack.c.l.b16 %v1055
    %v2123 = vpack.c.b16 %v2122, %v2121
    %v2126 = vunpack.c.l.b16 %v1550
    %v2127 = vunpack.c.l.b16 %v1551
    %v2128 = vpack.c.b16 %v2127, %v2126
    %v2130 = vsel %vm2068, %v2123, 0
    %v2133 = vsel %vm2068, %v2128, 0
    %2135 = vmatpush.bf16.xpose.msra.mxu0 0
    %2136 = vmatpush.bf16.xpose.msra.mxu0 0
    %2137 = vmatpush.bf16.xpose.msra.mxu0 0
    %2138 = vmatpush.bf16.xpose.msra.mxu0 0
    %2139 = vmatpush.bf16.xpose.msra.mxu0 0
    %2140 = vmatpush.bf16.xpose.msra.mxu0 0
    %2141 = vmatpush.bf16.xpose.msra.mxu0 0
    %2142 = vmatpush.bf16.xpose.msra.mxu0 %v2133
    %2143 = vmatmul.bf16.gmra.mxu0 %v2130
    %v2144 = vpop.f32.mrf.mxu0
    %v2145 = vadd.f32 0.0, %v2144
    %v2146 = vpop.f32.mrf.mxu0
    %v2147 = vadd.f32 0.0, %v2146
    %2148 = vdwg.mxu0
    %v2151 = vunpack.c.l.b16 %v1056
    %v2152 = vunpack.c.l.b16 %v1057
    %v2153 = vpack.c.b16 %v2152, %v2151
    %v2156 = vunpack.c.l.b16 %v1552
    %v2157 = vunpack.c.l.b16 %v1553
    %v2158 = vpack.c.b16 %v2157, %v2156
    %v2160 = vsel %vm2068, %v2153, 0
    %v2163 = vsel %vm2068, %v2158, 0
    %2165 = vmatpush.bf16.xpose.msra.mxu0 0
    %2166 = vmatpush.bf16.xpose.msra.mxu0 0
    %2167 = vmatpush.bf16.xpose.msra.mxu0 0
    %2168 = vmatpush.bf16.xpose.msra.mxu0 0
    %2169 = vmatpush.bf16.xpose.msra.mxu0 0
    %2170 = vmatpush.bf16.xpose.msra.mxu0 0
    %2171 = vmatpush.bf16.xpose.msra.mxu0 0
    %2172 = vmatpush.bf16.xpose.msra.mxu0 %v2163
    %2173 = vmatmul.bf16.gmra.mxu0 %v2160
    %v2174 = vpop.f32.mrf.mxu0
    %v2175 = vadd.f32 0.0, %v2174
    %v2176 = vpop.f32.mrf.mxu0
    %v2177 = vadd.f32 0.0, %v2176
    %2178 = vdwg.mxu0
    %v2181 = vunpack.c.l.b16 %v1058
    %v2182 = vunpack.c.l.b16 %v1059
    %v2183 = vpack.c.b16 %v2182, %v2181
    %v2186 = vunpack.c.l.b16 %v1554
    %v2187 = vunpack.c.l.b16 %v1555
    %v2188 = vpack.c.b16 %v2187, %v2186
    %v2190 = vsel %vm2068, %v2183, 0
    %v2193 = vsel %vm2068, %v2188, 0
    %2195 = vmatpush.bf16.xpose.msra.mxu0 0
    %2196 = vmatpush.bf16.xpose.msra.mxu0 0
    %2197 = vmatpush.bf16.xpose.msra.mxu0 0
    %2198 = vmatpush.bf16.xpose.msra.mxu0 0
    %2199 = vmatpush.bf16.xpose.msra.mxu0 0
    %2200 = vmatpush.bf16.xpose.msra.mxu0 0
    %2201 = vmatpush.bf16.xpose.msra.mxu0 0
    %2202 = vmatpush.bf16.xpose.msra.mxu0 %v2193
    %2203 = vmatmul.bf16.gmra.mxu0 %v2190
    %v2204 = vpop.f32.mrf.mxu0
    %v2205 = vadd.f32 0.0, %v2204
    %v2206 = vpop.f32.mrf.mxu0
    %v2207 = vadd.f32 0.0, %v2206
    %2208 = vdwg.mxu0
    %v2211 = vunpack.c.l.b16 %v1060
    %v2212 = vunpack.c.l.b16 %v1061
    %v2213 = vpack.c.b16 %v2212, %v2211
    %v2216 = vunpack.c.l.b16 %v1556
    %v2217 = vunpack.c.l.b16 %v1557
    %v2218 = vpack.c.b16 %v2217, %v2216
    %v2220 = vsel %vm2068, %v2213, 0
    %v2223 = vsel %vm2068, %v2218, 0
    %2225 = vmatpush.bf16.xpose.msra.mxu0 0
    %2226 = vmatpush.bf16.xpose.msra.mxu0 0
    %2227 = vmatpush.bf16.xpose.msra.mxu0 0
    %2228 = vmatpush.bf16.xpose.msra.mxu0 0
    %2229 = vmatpush.bf16.xpose.msra.mxu0 0
    %2230 = vmatpush.bf16.xpose.msra.mxu0 0
    %2231 = vmatpush.bf16.xpose.msra.mxu0 0
    %2232 = vmatpush.bf16.xpose.msra.mxu0 %v2223
    %2233 = vmatmul.bf16.gmra.mxu0 %v2220
    %v2234 = vpop.f32.mrf.mxu0
    %v2235 = vadd.f32 0.0, %v2234
    %v2236 = vpop.f32.mrf.mxu0
    %v2237 = vadd.f32 0.0, %v2236
    %2238 = vdwg.mxu0
    %v2241 = vunpack.c.l.b16 %v1062
    %v2242 = vunpack.c.l.b16 %v1063
    %v2243 = vpack.c.b16 %v2242, %v2241
    %v2246 = vunpack.c.l.b16 %v1558
    %v2247 = vunpack.c.l.b16 %v1559
    %v2248 = vpack.c.b16 %v2247, %v2246
    %v2250 = vsel %vm2068, %v2243, 0
    %v2253 = vsel %vm2068, %v2248, 0
    %2255 = vmatpush.bf16.xpose.msra.mxu0 0
    %2256 = vmatpush.bf16.xpose.msra.mxu0 0
    %2257 = vmatpush.bf16.xpose.msra.mxu0 0
    %2258 = vmatpush.bf16.xpose.msra.mxu0 0
    %2259 = vmatpush.bf16.xpose.msra.mxu0 0
    %2260 = vmatpush.bf16.xpose.msra.mxu0 0
    %2261 = vmatpush.bf16.xpose.msra.mxu0 0
    %2262 = vmatpush.bf16.xpose.msra.mxu0 %v2253
    %2263 = vmatmul.bf16.gmra.mxu0 %v2250
    %v2264 = vpop.f32.mrf.mxu0
    %v2265 = vadd.f32 0.0, %v2264
    %v2266 = vpop.f32.mrf.mxu0
    %v2267 = vadd.f32 0.0, %v2266
    %2268 = vdwg.mxu0
    %v2271 = vunpack.c.l.b16 %v1064
    %v2272 = vunpack.c.l.b16 %v1065
    %v2273 = vpack.c.b16 %v2272, %v2271
    %v2276 = vunpack.c.l.b16 %v1560
    %v2277 = vunpack.c.l.b16 %v1561
    %v2278 = vpack.c.b16 %v2277, %v2276
    %v2280 = vsel %vm2068, %v2273, 0
    %v2283 = vsel %vm2068, %v2278, 0
    %2285 = vmatpush.bf16.xpose.msra.mxu0 0
    %2286 = vmatpush.bf16.xpose.msra.mxu0 0
    %2287 = vmatpush.bf16.xpose.msra.mxu0 0
    %2288 = vmatpush.bf16.xpose.msra.mxu0 0
    %2289 = vmatpush.bf16.xpose.msra.mxu0 0
    %2290 = vmatpush.bf16.xpose.msra.mxu0 0
    %2291 = vmatpush.bf16.xpose.msra.mxu0 0
    %2292 = vmatpush.bf16.xpose.msra.mxu0 %v2283
    %2293 = vmatmul.bf16.gmra.mxu0 %v2280
    %v2294 = vpop.f32.mrf.mxu0
    %v2295 = vadd.f32 0.0, %v2294
    %v2296 = vpop.f32.mrf.mxu0
    %v2297 = vadd.f32 0.0, %v2296
    %2298 = vdwg.mxu0
    %vm2299 = vcmask 130048
    %v2300 = vsel %vm2299, %v2085, -inf
    %2301 = vmax.xlane.f32.xlu0 %v2300
    %v2302 = vpop.xlane.xlu0 %2301
    %v2303 = vsel %vm2299, %v2087, -inf
    %2304 = vmax.xlane.f32.xlu0 %v2303
    %v2305 = vpop.xlane.xlu0 %2304
    %v2306 = vsel %vm2299, %v2115, -inf
    %2307 = vmax.xlane.f32.xlu0 %v2306
    %v2308 = vpop.xlane.xlu0 %2307
    %v2309 = vsel %vm2299, %v2117, -inf
    %2310 = vmax.xlane.f32.xlu0 %v2309
    %v2311 = vpop.xlane.xlu0 %2310
    %v2312 = vsel %vm2299, %v2145, -inf
    %2313 = vmax.xlane.f32.xlu0 %v2312
    %v2314 = vpop.xlane.xlu0 %2313
    %v2315 = vsel %vm2299, %v2147, -inf
    %2316 = vmax.xlane.f32.xlu0 %v2315
    %v2317 = vpop.xlane.xlu0 %2316
    %v2318 = vsel %vm2299, %v2175, -inf
    %2319 = vmax.xlane.f32.xlu0 %v2318
    %v2320 = vpop.xlane.xlu0 %2319
    %v2321 = vsel %vm2299, %v2177, -inf
    %2322 = vmax.xlane.f32.xlu0 %v2321
    %v2323 = vpop.xlane.xlu0 %2322
    %v2324 = vsel %vm2299, %v2205, -inf
    %2325 = vmax.xlane.f32.xlu0 %v2324
    %v2326 = vpop.xlane.xlu0 %2325
    %v2327 = vsel %vm2299, %v2207, -inf
    %2328 = vmax.xlane.f32.xlu0 %v2327
    %v2329 = vpop.xlane.xlu0 %2328
    %v2330 = vsel %vm2299, %v2235, -inf
    %2331 = vmax.xlane.f32.xlu0 %v2330
    %v2332 = vpop.xlane.xlu0 %2331
    %v2333 = vsel %vm2299, %v2237, -inf
    %2334 = vmax.xlane.f32.xlu0 %v2333
    %v2335 = vpop.xlane.xlu0 %2334
    %v2336 = vsel %vm2299, %v2265, -inf
    %2337 = vmax.xlane.f32.xlu0 %v2336
    %v2338 = vpop.xlane.xlu0 %2337
    %v2339 = vsel %vm2299, %v2267, -inf
    %2340 = vmax.xlane.f32.xlu0 %v2339
    %v2341 = vpop.xlane.xlu0 %2340
    %v2342 = vsel %vm2299, %v2295, -inf
    %2343 = vmax.xlane.f32.xlu0 %v2342
    %v2344 = vpop.xlane.xlu0 %2343
    %v2345 = vsel %vm2299, %v2297, -inf
    %2346 = vmax.xlane.f32.xlu0 %v2345
    %v2347 = vpop.xlane.xlu0 %2346
    %v2348 = vsub.f32 %v2085, %v2302
    %v2349 = vsub.f32 %v2087, %v2305
    %v2350 = vsub.f32 %v2115, %v2308
    %v2351 = vsub.f32 %v2117, %v2311
    %v2352 = vsub.f32 %v2145, %v2314
    %v2353 = vsub.f32 %v2147, %v2317
    %v2354 = vsub.f32 %v2175, %v2320
    %v2355 = vsub.f32 %v2177, %v2323
    %v2356 = vsub.f32 %v2205, %v2326
    %v2357 = vsub.f32 %v2207, %v2329
    %v2358 = vsub.f32 %v2235, %v2332
    %v2359 = vsub.f32 %v2237, %v2335
    %v2360 = vsub.f32 %v2265, %v2338
    %v2361 = vsub.f32 %v2267, %v2341
    %v2362 = vsub.f32 %v2295, %v2344
    %v2363 = vsub.f32 %v2297, %v2347
    %v2364 = vmul.f32 %v2348, 1.442695
    %v2365 = vpow.pop %v2364
    %v2366 = vmul.f32 %v2349, 1.442695
    %v2367 = vpow.pop %v2366
    %v2368 = vmul.f32 %v2350, 1.442695
    %v2369 = vpow.pop %v2368
    %v2370 = vmul.f32 %v2351, 1.442695
    %v2371 = vpow.pop %v2370
    %v2372 = vmul.f32 %v2352, 1.442695
    %v2373 = vpow.pop %v2372
    %v2374 = vmul.f32 %v2353, 1.442695
    %v2375 = vpow.pop %v2374
    %v2376 = vmul.f32 %v2354, 1.442695
    %v2377 = vpow.pop %v2376
    %v2378 = vmul.f32 %v2355, 1.442695
    %v2379 = vpow.pop %v2378
    %v2380 = vmul.f32 %v2356, 1.442695
    %v2381 = vpow.pop %v2380
    %v2382 = vmul.f32 %v2357, 1.442695
    %v2383 = vpow.pop %v2382
    %v2384 = vmul.f32 %v2358, 1.442695
    %v2385 = vpow.pop %v2384
    %v2386 = vmul.f32 %v2359, 1.442695
    %v2387 = vpow.pop %v2386
    %v2388 = vmul.f32 %v2360, 1.442695
    %v2389 = vpow.pop %v2388
    %v2390 = vmul.f32 %v2361, 1.442695
    %v2391 = vpow.pop %v2390
    %v2392 = vmul.f32 %v2362, 1.442695
    %v2393 = vpow.pop %v2392
    %v2394 = vmul.f32 %v2363, 1.442695
    %v2395 = vpow.pop %v2394
    %v2396 = vsel %vm2299, %v2365, 0.0
    %2397 = vadd.xlane.f32.xlu0 %v2396
    %v2398 = vpop.xlane.xlu0 %2397
    %v2399 = vsel %vm2299, %v2367, 0.0
    %2400 = vadd.xlane.f32.xlu0 %v2399
    %v2401 = vpop.xlane.xlu0 %2400
    %v2402 = vsel %vm2299, %v2369, 0.0
    %2403 = vadd.xlane.f32.xlu0 %v2402
    %v2404 = vpop.xlane.xlu0 %2403
    %v2405 = vsel %vm2299, %v2371, 0.0
    %2406 = vadd.xlane.f32.xlu0 %v2405
    %v2407 = vpop.xlane.xlu0 %2406
    %v2408 = vsel %vm2299, %v2373, 0.0
    %2409 = vadd.xlane.f32.xlu0 %v2408
    %v2410 = vpop.xlane.xlu0 %2409
    %v2411 = vsel %vm2299, %v2375, 0.0
    %2412 = vadd.xlane.f32.xlu0 %v2411
    %v2413 = vpop.xlane.xlu0 %2412
    %v2414 = vsel %vm2299, %v2377, 0.0
    %2415 = vadd.xlane.f32.xlu0 %v2414
    %v2416 = vpop.xlane.xlu0 %2415
    %v2417 = vsel %vm2299, %v2379, 0.0
    %2418 = vadd.xlane.f32.xlu0 %v2417
    %v2419 = vpop.xlane.xlu0 %2418
    %v2420 = vsel %vm2299, %v2381, 0.0
    %2421 = vadd.xlane.f32.xlu0 %v2420
    %v2422 = vpop.xlane.xlu0 %2421
    %v2423 = vsel %vm2299, %v2383, 0.0
    %2424 = vadd.xlane.f32.xlu0 %v2423
    %v2425 = vpop.xlane.xlu0 %2424
    %v2426 = vsel %vm2299, %v2385, 0.0
    %2427 = vadd.xlane.f32.xlu0 %v2426
    %v2428 = vpop.xlane.xlu0 %2427
    %v2429 = vsel %vm2299, %v2387, 0.0
    %2430 = vadd.xlane.f32.xlu0 %v2429
    %v2431 = vpop.xlane.xlu0 %2430
    %v2432 = vsel %vm2299, %v2389, 0.0
    %2433 = vadd.xlane.f32.xlu0 %v2432
    %v2434 = vpop.xlane.xlu0 %2433
    %v2435 = vsel %vm2299, %v2391, 0.0
    %2436 = vadd.xlane.f32.xlu0 %v2435
    %v2437 = vpop.xlane.xlu0 %2436
    %v2438 = vsel %vm2299, %v2393, 0.0
    %2439 = vadd.xlane.f32.xlu0 %v2438
    %v2440 = vpop.xlane.xlu0 %2439
    %v2441 = vsel %vm2299, %v2395, 0.0
    %2442 = vadd.xlane.f32.xlu0 %v2441
    %v2443 = vpop.xlane.xlu0 %2442
    %v2444 = vrcp.pop %v2398
    %v2445 = vrcp.pop %v2401
    %v2446 = vrcp.pop %v2404
    %v2447 = vrcp.pop %v2407
    %v2448 = vrcp.pop %v2410
    %v2449 = vrcp.pop %v2413
    %v2450 = vrcp.pop %v2416
    %v2451 = vrcp.pop %v2419
    %v2452 = vrcp.pop %v2422
    %v2453 = vrcp.pop %v2425
    %v2454 = vrcp.pop %v2428
    %v2455 = vrcp.pop %v2431
    %v2456 = vrcp.pop %v2434
    %v2457 = vrcp.pop %v2437
    %v2458 = vrcp.pop %v2440
    %v2459 = vrcp.pop %v2443
    %v2460 = vmul.f32 %v2365, %v2444
    %v2461 = vmul.f32 %v2367, %v2445
    %v2462 = vmul.f32 %v2369, %v2446
    %v2463 = vmul.f32 %v2371, %v2447
    %v2464 = vmul.f32 %v2373, %v2448
    %v2465 = vmul.f32 %v2375, %v2449
    %v2466 = vmul.f32 %v2377, %v2450
    %v2467 = vmul.f32 %v2379, %v2451
    %v2468 = vmul.f32 %v2381, %v2452
    %v2469 = vmul.f32 %v2383, %v2453
    %v2470 = vmul.f32 %v2385, %v2454
    %v2471 = vmul.f32 %v2387, %v2455
    %v2472 = vmul.f32 %v2389, %v2456
    %v2473 = vmul.f32 %v2391, %v2457
    %v2474 = vmul.f32 %v2393, %v2458
    %v2475 = vmul.f32 %v2395, %v2459
    %v2476 = vpack.c.bf16 %v2460, %v2460
    %v2477 = vpack.c.bf16 %v2461, %v2461
    %v2478 = vpack.c.bf16 %v2462, %v2462
    %v2479 = vpack.c.bf16 %v2463, %v2463
    %v2480 = vpack.c.bf16 %v2464, %v2464
    %v2481 = vpack.c.bf16 %v2465, %v2465
    %v2482 = vpack.c.bf16 %v2466, %v2466
    %v2483 = vpack.c.bf16 %v2467, %v2467
    %v2484 = vpack.c.bf16 %v2468, %v2468
    %v2485 = vpack.c.bf16 %v2469, %v2469
    %v2486 = vpack.c.bf16 %v2470, %v2470
    %v2487 = vpack.c.bf16 %v2471, %v2471
    %v2488 = vpack.c.bf16 %v2472, %v2472
    %v2489 = vpack.c.bf16 %v2473, %v2473
    %v2490 = vpack.c.bf16 %v2474, %v2474
    %v2491 = vpack.c.bf16 %v2475, %v2475
    %v2494 = vunpack.c.l.b16 %v2476
    %v2495 = vunpack.c.l.b16 %v2477
    %v2496 = vpack.c.b16 %v2495, %v2494
    %v2499 = vunpack.c.l.b16 %v2042
    %v2500 = vunpack.c.l.b16 %v2043
    %v2501 = vpack.c.b16 %v2500, %v2499
    %v2504 = vsel %vm2299, %v2496, 0
    %2506 = vmatpush.bf16.msra.mxu0 0
    %2507 = vmatpush.bf16.msra.mxu0 0
    %2508 = vmatpush.bf16.msra.mxu0 0
    %2509 = vmatpush.bf16.msra.mxu0 0
    %2510 = vmatpush.bf16.msra.mxu0 0
    %2511 = vmatpush.bf16.msra.mxu0 0
    %2512 = vmatpush.bf16.msra.mxu0 0
    %2513 = vmatpush.bf16.msra.mxu0 %v2501
    %2514 = vmatmul.bf16.gmra.mxu0 %v2504
    %v2515 = vpop.f32.mrf.mxu0
    %v2516 = vadd.f32 0.0, %v2515
    %v2517 = vpop.f32.mrf.mxu0
    %v2518 = vadd.f32 0.0, %v2517
    %2519 = vdwg.mxu0
    %v2522 = vunpack.c.l.b16 %v2478
    %v2523 = vunpack.c.l.b16 %v2479
    %v2524 = vpack.c.b16 %v2523, %v2522
    %v2527 = vunpack.c.l.b16 %v2044
    %v2528 = vunpack.c.l.b16 %v2045
    %v2529 = vpack.c.b16 %v2528, %v2527
    %v2532 = vsel %vm2299, %v2524, 0
    %2534 = vmatpush.bf16.msra.mxu0 0
    %2535 = vmatpush.bf16.msra.mxu0 0
    %2536 = vmatpush.bf16.msra.mxu0 0
    %2537 = vmatpush.bf16.msra.mxu0 0
    %2538 = vmatpush.bf16.msra.mxu0 0
    %2539 = vmatpush.bf16.msra.mxu0 0
    %2540 = vmatpush.bf16.msra.mxu0 0
    %2541 = vmatpush.bf16.msra.mxu0 %v2529
    %2542 = vmatmul.bf16.gmra.mxu0 %v2532
    %v2543 = vpop.f32.mrf.mxu0
    %v2544 = vadd.f32 0.0, %v2543
    %v2545 = vpop.f32.mrf.mxu0
    %v2546 = vadd.f32 0.0, %v2545
    %2547 = vdwg.mxu0
    %v2550 = vunpack.c.l.b16 %v2480
    %v2551 = vunpack.c.l.b16 %v2481
    %v2552 = vpack.c.b16 %v2551, %v2550
    %v2555 = vunpack.c.l.b16 %v2046
    %v2556 = vunpack.c.l.b16 %v2047
    %v2557 = vpack.c.b16 %v2556, %v2555
    %v2560 = vsel %vm2299, %v2552, 0
    %2562 = vmatpush.bf16.msra.mxu0 0
    %2563 = vmatpush.bf16.msra.mxu0 0
    %2564 = vmatpush.bf16.msra.mxu0 0
    %2565 = vmatpush.bf16.msra.mxu0 0
    %2566 = vmatpush.bf16.msra.mxu0 0
    %2567 = vmatpush.bf16.msra.mxu0 0
    %2568 = vmatpush.bf16.msra.mxu0 0
    %2569 = vmatpush.bf16.msra.mxu0 %v2557
    %2570 = vmatmul.bf16.gmra.mxu0 %v2560
    %v2571 = vpop.f32.mrf.mxu0
    %v2572 = vadd.f32 0.0, %v2571
    %v2573 = vpop.f32.mrf.mxu0
    %v2574 = vadd.f32 0.0, %v2573
    %2575 = vdwg.mxu0
    %v2578 = vunpack.c.l.b16 %v2482
    %v2579 = vunpack.c.l.b16 %v2483
    %v2580 = vpack.c.b16 %v2579, %v2578
    %v2583 = vunpack.c.l.b16 %v2048
    %v2584 = vunpack.c.l.b16 %v2049
    %v2585 = vpack.c.b16 %v2584, %v2583
    %v2588 = vsel %vm2299, %v2580, 0
    %2590 = vmatpush.bf16.msra.mxu0 0
    %2591 = vmatpush.bf16.msra.mxu0 0
    %2592 = vmatpush.bf16.msra.mxu0 0
    %2593 = vmatpush.bf16.msra.mxu0 0
    %2594 = vmatpush.bf16.msra.mxu0 0
    %2595 = vmatpush.bf16.msra.mxu0 0
    %2596 = vmatpush.bf16.msra.mxu0 0
    %2597 = vmatpush.bf16.msra.mxu0 %v2585
    %2598 = vmatmul.bf16.gmra.mxu0 %v2588
    %v2599 = vpop.f32.mrf.mxu0
    %v2600 = vadd.f32 0.0, %v2599
    %v2601 = vpop.f32.mrf.mxu0
    %v2602 = vadd.f32 0.0, %v2601
    %2603 = vdwg.mxu0
    %v2606 = vunpack.c.l.b16 %v2484
    %v2607 = vunpack.c.l.b16 %v2485
    %v2608 = vpack.c.b16 %v2607, %v2606
    %v2611 = vunpack.c.l.b16 %v2050
    %v2612 = vunpack.c.l.b16 %v2051
    %v2613 = vpack.c.b16 %v2612, %v2611
    %v2616 = vsel %vm2299, %v2608, 0
    %2618 = vmatpush.bf16.msra.mxu0 0
    %2619 = vmatpush.bf16.msra.mxu0 0
    %2620 = vmatpush.bf16.msra.mxu0 0
    %2621 = vmatpush.bf16.msra.mxu0 0
    %2622 = vmatpush.bf16.msra.mxu0 0
    %2623 = vmatpush.bf16.msra.mxu0 0
    %2624 = vmatpush.bf16.msra.mxu0 0
    %2625 = vmatpush.bf16.msra.mxu0 %v2613
    %2626 = vmatmul.bf16.gmra.mxu0 %v2616
    %v2627 = vpop.f32.mrf.mxu0
    %v2628 = vadd.f32 0.0, %v2627
    %v2629 = vpop.f32.mrf.mxu0
    %v2630 = vadd.f32 0.0, %v2629
    %2631 = vdwg.mxu0
    %v2634 = vunpack.c.l.b16 %v2486
    %v2635 = vunpack.c.l.b16 %v2487
    %v2636 = vpack.c.b16 %v2635, %v2634
    %v2639 = vunpack.c.l.b16 %v2052
    %v2640 = vunpack.c.l.b16 %v2053
    %v2641 = vpack.c.b16 %v2640, %v2639
    %v2644 = vsel %vm2299, %v2636, 0
    %2646 = vmatpush.bf16.msra.mxu0 0
    %2647 = vmatpush.bf16.msra.mxu0 0
    %2648 = vmatpush.bf16.msra.mxu0 0
    %2649 = vmatpush.bf16.msra.mxu0 0
    %2650 = vmatpush.bf16.msra.mxu0 0
    %2651 = vmatpush.bf16.msra.mxu0 0
    %2652 = vmatpush.bf16.msra.mxu0 0
    %2653 = vmatpush.bf16.msra.mxu0 %v2641
    %2654 = vmatmul.bf16.gmra.mxu0 %v2644
    %v2655 = vpop.f32.mrf.mxu0
    %v2656 = vadd.f32 0.0, %v2655
    %v2657 = vpop.f32.mrf.mxu0
    %v2658 = vadd.f32 0.0, %v2657
    %2659 = vdwg.mxu0
    %v2662 = vunpack.c.l.b16 %v2488
    %v2663 = vunpack.c.l.b16 %v2489
    %v2664 = vpack.c.b16 %v2663, %v2662
    %v2667 = vunpack.c.l.b16 %v2054
    %v2668 = vunpack.c.l.b16 %v2055
    %v2669 = vpack.c.b16 %v2668, %v2667
    %v2672 = vsel %vm2299, %v2664, 0
    %2674 = vmatpush.bf16.msra.mxu0 0
    %2675 = vmatpush.bf16.msra.mxu0 0
    %2676 = vmatpush.bf16.msra.mxu0 0
    %2677 = vmatpush.bf16.msra.mxu0 0
    %2678 = vmatpush.bf16.msra.mxu0 0
    %2679 = vmatpush.bf16.msra.mxu0 0
    %2680 = vmatpush.bf16.msra.mxu0 0
    %2681 = vmatpush.bf16.msra.mxu0 %v2669
    %2682 = vmatmul.bf16.gmra.mxu0 %v2672
    %v2683 = vpop.f32.mrf.mxu0
    %v2684 = vadd.f32 0.0, %v2683
    %v2685 = vpop.f32.mrf.mxu0
    %v2686 = vadd.f32 0.0, %v2685
    %2687 = vdwg.mxu0
    %v2690 = vunpack.c.l.b16 %v2490
    %v2691 = vunpack.c.l.b16 %v2491
    %v2692 = vpack.c.b16 %v2691, %v2690
    %v2695 = vunpack.c.l.b16 %v2056
    %v2696 = vunpack.c.l.b16 %v2057
    %v2697 = vpack.c.b16 %v2696, %v2695
    %v2700 = vsel %vm2299, %v2692, 0
    %2702 = vmatpush.bf16.msra.mxu0 0
    %2703 = vmatpush.bf16.msra.mxu0 0
    %2704 = vmatpush.bf16.msra.mxu0 0
    %2705 = vmatpush.bf16.msra.mxu0 0
    %2706 = vmatpush.bf16.msra.mxu0 0
    %2707 = vmatpush.bf16.msra.mxu0 0
    %2708 = vmatpush.bf16.msra.mxu0 0
    %2709 = vmatpush.bf16.msra.mxu0 %v2697
    %2710 = vmatmul.bf16.gmra.mxu0 %v2700
    %v2711 = vpop.f32.mrf.mxu0
    %v2712 = vadd.f32 0.0, %v2711
    %v2713 = vpop.f32.mrf.mxu0
    %v2714 = vadd.f32 0.0, %v2713
    %2715 = vdwg.mxu0
    %v2716 = vrot.slane %v2572, 4
    %v2717 = vsel %vm610, %v2716, %v2516
    %v2718 = vrot.slane %v2516, 4
    %v2719 = vsel %vm610, %v2572, %v2718
    %v2721 = vunpack.c.l.s4 1983009808
    %v2722 = vunpack.c.0.s8 %v2721
    %v2723 = vperm.slane %v2717, %v2722
    %v2725 = vunpack.c.l.s4 1983009808
    %v2726 = vunpack.c.0.s8 %v2725
    %v2727 = vperm.slane %v2719, %v2726
    %v2728 = vrot.slane %v2600, 4
    %v2729 = vsel %vm610, %v2728, %v2544
    %v2730 = vrot.slane %v2544, 4
    %v2731 = vsel %vm610, %v2600, %v2730
    %v2733 = vunpack.c.l.s4 1983009808
    %v2734 = vunpack.c.0.s8 %v2733
    %v2735 = vperm.slane %v2729, %v2734
    %v2737 = vunpack.c.l.s4 1983009808
    %v2738 = vunpack.c.0.s8 %v2737
    %v2739 = vperm.slane %v2731, %v2738
    %v2740 = vrot.slane %v2735, 4
    %v2741 = vsel %vm610, %v2740, %v2723
    %v2742 = vrot.slane %v2723, 4
    %v2743 = vsel %vm610, %v2735, %v2742
    %v2745 = vunpack.c.l.s4 1934713408
    %v2746 = vunpack.c.0.s8 %v2745
    %v2747 = vperm.slane %v2741, %v2746
    %v2749 = vunpack.c.l.s4 1934713408
    %v2750 = vunpack.c.0.s8 %v2749
    %v2751 = vperm.slane %v2743, %v2750
    %v2752 = vrot.slane %v2739, 4
    %v2753 = vsel %vm610, %v2752, %v2727
    %v2754 = vrot.slane %v2727, 4
    %v2755 = vsel %vm610, %v2739, %v2754
    %v2757 = vunpack.c.l.s4 1934713408
    %v2758 = vunpack.c.0.s8 %v2757
    %v2759 = vperm.slane %v2753, %v2758
    %v2761 = vunpack.c.l.s4 1934713408
    %v2762 = vunpack.c.0.s8 %v2761
    %v2763 = vperm.slane %v2755, %v2762
    %v2764 = vrot.slane %v2747, 4
    %v2765 = vsel %vm610, 0.0, %v2764
    %v2766 = vrot.slane %v2751, 4
    %v2767 = vsel %vm610, 0.0, %v2766
    %v2768 = vrot.slane %v2759, 4
    %v2769 = vsel %vm610, 0.0, %v2768
    %v2770 = vrot.slane %v2763, 4
    %v2771 = vsel %vm610, 0.0, %v2770
    %v2772 = vrot.slane %v2574, 4
    %v2773 = vsel %vm610, %v2772, %v2518
    %v2774 = vrot.slane %v2518, 4
    %v2775 = vsel %vm610, %v2574, %v2774
    %v2777 = vunpack.c.l.s4 1983009808
    %v2778 = vunpack.c.0.s8 %v2777
    %v2779 = vperm.slane %v2773, %v2778
    %v2781 = vunpack.c.l.s4 1983009808
    %v2782 = vunpack.c.0.s8 %v2781
    %v2783 = vperm.slane %v2775, %v2782
    %v2784 = vrot.slane %v2602, 4
    %v2785 = vsel %vm610, %v2784, %v2546
    %v2786 = vrot.slane %v2546, 4
    %v2787 = vsel %vm610, %v2602, %v2786
    %v2789 = vunpack.c.l.s4 1983009808
    %v2790 = vunpack.c.0.s8 %v2789
    %v2791 = vperm.slane %v2785, %v2790
    %v2793 = vunpack.c.l.s4 1983009808
    %v2794 = vunpack.c.0.s8 %v2793
    %v2795 = vperm.slane %v2787, %v2794
    %v2796 = vrot.slane %v2791, 4
    %v2797 = vsel %vm610, %v2796, %v2779
    %v2798 = vrot.slane %v2779, 4
    %v2799 = vsel %vm610, %v2791, %v2798
    %v2801 = vunpack.c.l.s4 1934713408
    %v2802 = vunpack.c.0.s8 %v2801
    %v2803 = vperm.slane %v2797, %v2802
    %v2805 = vunpack.c.l.s4 1934713408
    %v2806 = vunpack.c.0.s8 %v2805
    %v2807 = vperm.slane %v2799, %v2806
    %v2808 = vrot.slane %v2795, 4
    %v2809 = vsel %vm610, %v2808, %v2783
    %v2810 = vrot.slane %v2783, 4
    %v2811 = vsel %vm610, %v2795, %v2810
    %v2813 = vunpack.c.l.s4 1934713408
    %v2814 = vunpack.c.0.s8 %v2813
    %v2815 = vperm.slane %v2809, %v2814
    %v2817 = vunpack.c.l.s4 1934713408
    %v2818 = vunpack.c.0.s8 %v2817
    %v2819 = vperm.slane %v2811, %v2818
    %v2820 = vrot.slane %v2803, 4
    %v2821 = vsel %vm610, 0.0, %v2820
    %v2822 = vrot.slane %v2807, 4
    %v2823 = vsel %vm610, 0.0, %v2822
    %v2824 = vrot.slane %v2815, 4
    %v2825 = vsel %vm610, 0.0, %v2824
    %v2826 = vrot.slane %v2819, 4
    %v2827 = vsel %vm610, 0.0, %v2826
    %v2828 = vrot.slane %v2684, 4
    %v2829 = vsel %vm610, %v2828, %v2628
    %v2830 = vrot.slane %v2628, 4
    %v2831 = vsel %vm610, %v2684, %v2830
    %v2833 = vunpack.c.l.s4 1983009808
    %v2834 = vunpack.c.0.s8 %v2833
    %v2835 = vperm.slane %v2829, %v2834
    %v2837 = vunpack.c.l.s4 1983009808
    %v2838 = vunpack.c.0.s8 %v2837
    %v2839 = vperm.slane %v2831, %v2838
    %v2840 = vrot.slane %v2712, 4
    %v2841 = vsel %vm610, %v2840, %v2656
    %v2842 = vrot.slane %v2656, 4
    %v2843 = vsel %vm610, %v2712, %v2842
    %v2845 = vunpack.c.l.s4 1983009808
    %v2846 = vunpack.c.0.s8 %v2845
    %v2847 = vperm.slane %v2841, %v2846
    %v2849 = vunpack.c.l.s4 1983009808
    %v2850 = vunpack.c.0.s8 %v2849
    %v2851 = vperm.slane %v2843, %v2850
    %v2852 = vrot.slane %v2847, 4
    %v2853 = vsel %vm610, %v2852, %v2835
    %v2854 = vrot.slane %v2835, 4
    %v2855 = vsel %vm610, %v2847, %v2854
    %v2857 = vunpack.c.l.s4 1934713408
    %v2858 = vunpack.c.0.s8 %v2857
    %v2859 = vperm.slane %v2853, %v2858
    %v2861 = vunpack.c.l.s4 1934713408
    %v2862 = vunpack.c.0.s8 %v2861
    %v2863 = vperm.slane %v2855, %v2862
    %v2864 = vrot.slane %v2851, 4
    %v2865 = vsel %vm610, %v2864, %v2839
    %v2866 = vrot.slane %v2839, 4
    %v2867 = vsel %vm610, %v2851, %v2866
    %v2869 = vunpack.c.l.s4 1934713408
    %v2870 = vunpack.c.0.s8 %v2869
    %v2871 = vperm.slane %v2865, %v2870
    %v2873 = vunpack.c.l.s4 1934713408
    %v2874 = vunpack.c.0.s8 %v2873
    %v2875 = vperm.slane %v2867, %v2874
    %v2876 = vrot.slane %v2859, 4
    %v2877 = vsel %vm610, 0.0, %v2876
    %v2878 = vrot.slane %v2863, 4
    %v2879 = vsel %vm610, 0.0, %v2878
    %v2880 = vrot.slane %v2871, 4
    %v2881 = vsel %vm610, 0.0, %v2880
    %v2882 = vrot.slane %v2875, 4
    %v2883 = vsel %vm610, 0.0, %v2882
    %v2884 = vrot.slane %v2686, 4
    %v2885 = vsel %vm610, %v2884, %v2630
    %v2886 = vrot.slane %v2630, 4
    %v2887 = vsel %vm610, %v2686, %v2886
    %v2889 = vunpack.c.l.s4 1983009808
    %v2890 = vunpack.c.0.s8 %v2889
    %v2891 = vperm.slane %v2885, %v2890
    %v2893 = vunpack.c.l.s4 1983009808
    %v2894 = vunpack.c.0.s8 %v2893
    %v2895 = vperm.slane %v2887, %v2894
    %v2896 = vrot.slane %v2714, 4
    %v2897 = vsel %vm610, %v2896, %v2658
    %v2898 = vrot.slane %v2658, 4
    %v2899 = vsel %vm610, %v2714, %v2898
    %v2901 = vunpack.c.l.s4 1983009808
    %v2902 = vunpack.c.0.s8 %v2901
    %v2903 = vperm.slane %v2897, %v2902
    %v2905 = vunpack.c.l.s4 1983009808
    %v2906 = vunpack.c.0.s8 %v2905
    %v2907 = vperm.slane %v2899, %v2906
    %v2908 = vrot.slane %v2903, 4
    %v2909 = vsel %vm610, %v2908, %v2891
    %v2910 = vrot.slane %v2891, 4
    %v2911 = vsel %vm610, %v2903, %v2910
    %v2913 = vunpack.c.l.s4 1934713408
    %v2914 = vunpack.c.0.s8 %v2913
    %v2915 = vperm.slane %v2909, %v2914
    %v2917 = vunpack.c.l.s4 1934713408
    %v2918 = vunpack.c.0.s8 %v2917
    %v2919 = vperm.slane %v2911, %v2918
    %v2920 = vrot.slane %v2907, 4
    %v2921 = vsel %vm610, %v2920, %v2895
    %v2922 = vrot.slane %v2895, 4
    %v2923 = vsel %vm610, %v2907, %v2922
    %v2925 = vunpack.c.l.s4 1934713408
    %v2926 = vunpack.c.0.s8 %v2925
    %v2927 = vperm.slane %v2921, %v2926
    %v2929 = vunpack.c.l.s4 1934713408
    %v2930 = vunpack.c.0.s8 %v2929
    %v2931 = vperm.slane %v2923, %v2930
    %v2932 = vrot.slane %v2915, 4
    %v2933 = vsel %vm610, 0.0, %v2932
    %v2934 = vrot.slane %v2919, 4
    %v2935 = vsel %vm610, 0.0, %v2934
    %v2936 = vrot.slane %v2927, 4
    %v2937 = vsel %vm610, 0.0, %v2936
    %v2938 = vrot.slane %v2931, 4
    %v2939 = vsel %vm610, 0.0, %v2938
    %v2940 = vsel %vm610, %v2766, %v2747
    %v2942 = vunpack.c.l.s4 1983009808
    %v2943 = vunpack.c.0.s8 %v2942
    %v2944 = vperm.slane %v2940, %v2943
    %v2945 = vrot.slane %v2767, 4
    %v2946 = vsel %vm610, %v2945, %v2765
    %v2948 = vunpack.c.l.s4 1983009808
    %v2949 = vunpack.c.0.s8 %v2948
    %v2950 = vperm.slane %v2946, %v2949
    %v2951 = vsel %vm610, %v2770, %v2759
    %v2953 = vunpack.c.l.s4 1983009808
    %v2954 = vunpack.c.0.s8 %v2953
    %v2955 = vperm.slane %v2951, %v2954
    %v2956 = vrot.slane %v2771, 4
    %v2957 = vsel %vm610, %v2956, %v2769
    %v2959 = vunpack.c.l.s4 1983009808
    %v2960 = vunpack.c.0.s8 %v2959
    %v2961 = vperm.slane %v2957, %v2960
    %v2962 = vrot.slane %v2950, 4
    %v2963 = vsel %vm610, %v2962, %v2944
    %v2964 = vrot.slane %v2944, 4
    %v2965 = vsel %vm610, %v2950, %v2964
    %v2967 = vunpack.c.l.s4 1934713408
    %v2968 = vunpack.c.0.s8 %v2967
    %v2969 = vperm.slane %v2963, %v2968
    %v2971 = vunpack.c.l.s4 1934713408
    %v2972 = vunpack.c.0.s8 %v2971
    %v2973 = vperm.slane %v2965, %v2972
    %v2974 = vrot.slane %v2961, 4
    %v2975 = vsel %vm610, %v2974, %v2955
    %v2976 = vrot.slane %v2955, 4
    %v2977 = vsel %vm610, %v2961, %v2976
    %v2979 = vunpack.c.l.s4 1934713408
    %v2980 = vunpack.c.0.s8 %v2979
    %v2981 = vperm.slane %v2975, %v2980
    %v2983 = vunpack.c.l.s4 1934713408
    %v2984 = vunpack.c.0.s8 %v2983
    %v2985 = vperm.slane %v2977, %v2984
    %v2986 = vrot.slane %v2981, 4
    %v2987 = vsel %vm610, %v2986, %v2969
    %v2988 = vrot.slane %v2969, 4
    %v2989 = vsel %vm610, %v2981, %v2988
    %v2990 = vrot.slane %v2985, 4
    %v2991 = vsel %vm610, %v2990, %v2973
    %v2992 = vrot.slane %v2973, 4
    %v2993 = vsel %vm610, %v2985, %v2992
    %v2994 = vsel %vm610, %v2822, %v2803
    %v2996 = vunpack.c.l.s4 1983009808
    %v2997 = vunpack.c.0.s8 %v2996
    %v2998 = vperm.slane %v2994, %v2997
    %v2999 = vrot.slane %v2823, 4
    %v3000 = vsel %vm610, %v2999, %v2821
    %v3002 = vunpack.c.l.s4 1983009808
    %v3003 = vunpack.c.0.s8 %v3002
    %v3004 = vperm.slane %v3000, %v3003
    %v3005 = vsel %vm610, %v2826, %v2815
    %v3007 = vunpack.c.l.s4 1983009808
    %v3008 = vunpack.c.0.s8 %v3007
    %v3009 = vperm.slane %v3005, %v3008
    %v3010 = vrot.slane %v2827, 4
    %v3011 = vsel %vm610, %v3010, %v2825
    %v3013 = vunpack.c.l.s4 1983009808
    %v3014 = vunpack.c.0.s8 %v3013
    %v3015 = vperm.slane %v3011, %v3014
    %v3016 = vrot.slane %v3004, 4
    %v3017 = vsel %vm610, %v3016, %v2998
    %v3018 = vrot.slane %v2998, 4
    %v3019 = vsel %vm610, %v3004, %v3018
    %v3021 = vunpack.c.l.s4 1934713408
    %v3022 = vunpack.c.0.s8 %v3021
    %v3023 = vperm.slane %v3017, %v3022
    %v3025 = vunpack.c.l.s4 1934713408
    %v3026 = vunpack.c.0.s8 %v3025
    %v3027 = vperm.slane %v3019, %v3026
    %v3028 = vrot.slane %v3015, 4
    %v3029 = vsel %vm610, %v3028, %v3009
    %v3030 = vrot.slane %v3009, 4
    %v3031 = vsel %vm610, %v3015, %v3030
    %v3033 = vunpack.c.l.s4 1934713408
    %v3034 = vunpack.c.0.s8 %v3033
    %v3035 = vperm.slane %v3029, %v3034
    %v3037 = vunpack.c.l.s4 1934713408
    %v3038 = vunpack.c.0.s8 %v3037
    %v3039 = vperm.slane %v3031, %v3038
    %v3040 = vrot.slane %v3035, 4
    %v3041 = vsel %vm610, %v3040, %v3023
    %v3042 = vrot.slane %v3023, 4
    %v3043 = vsel %vm610, %v3035, %v3042
    %v3044 = vrot.slane %v3039, 4
    %v3045 = vsel %vm610, %v3044, %v3027
    %v3046 = vrot.slane %v3027, 4
    %v3047 = vsel %vm610, %v3039, %v3046
    %v3048 = vsel %vm610, %v2878, %v2859
    %v3050 = vunpack.c.l.s4 1983009808
    %v3051 = vunpack.c.0.s8 %v3050
    %v3052 = vperm.slane %v3048, %v3051
    %v3053 = vrot.slane %v2879, 4
    %v3054 = vsel %vm610, %v3053, %v2877
    %v3056 = vunpack.c.l.s4 1983009808
    %v3057 = vunpack.c.0.s8 %v3056
    %v3058 = vperm.slane %v3054, %v3057
    %v3059 = vsel %vm610, %v2882, %v2871
    %v3061 = vunpack.c.l.s4 1983009808
    %v3062 = vunpack.c.0.s8 %v3061
    %v3063 = vperm.slane %v3059, %v3062
    %v3064 = vrot.slane %v2883, 4
    %v3065 = vsel %vm610, %v3064, %v2881
    %v3067 = vunpack.c.l.s4 1983009808
    %v3068 = vunpack.c.0.s8 %v3067
    %v3069 = vperm.slane %v3065, %v3068
    %v3070 = vrot.slane %v3058, 4
    %v3071 = vsel %vm610, %v3070, %v3052
    %v3072 = vrot.slane %v3052, 4
    %v3073 = vsel %vm610, %v3058, %v3072
    %v3075 = vunpack.c.l.s4 1934713408
    %v3076 = vunpack.c.0.s8 %v3075
    %v3077 = vperm.slane %v3071, %v3076
    %v3079 = vunpack.c.l.s4 1934713408
    %v3080 = vunpack.c.0.s8 %v3079
    %v3081 = vperm.slane %v3073, %v3080
    %v3082 = vrot.slane %v3069, 4
    %v3083 = vsel %vm610, %v3082, %v3063
    %v3084 = vrot.slane %v3063, 4
    %v3085 = vsel %vm610, %v3069, %v3084
    %v3087 = vunpack.c.l.s4 1934713408
    %v3088 = vunpack.c.0.s8 %v3087
    %v3089 = vperm.slane %v3083, %v3088
    %v3091 = vunpack.c.l.s4 1934713408
    %v3092 = vunpack.c.0.s8 %v3091
    %v3093 = vperm.slane %v3085, %v3092
    %v3094 = vrot.slane %v3089, 4
    %v3095 = vsel %vm610, %v3094, %v3077
    %v3096 = vrot.slane %v3077, 4
    %v3097 = vsel %vm610, %v3089, %v3096
    %v3098 = vrot.slane %v3093, 4
    %v3099 = vsel %vm610, %v3098, %v3081
    %v3100 = vrot.slane %v3081, 4
    %v3101 = vsel %vm610, %v3093, %v3100
    %v3102 = vsel %vm610, %v2934, %v2915
    %v3104 = vunpack.c.l.s4 1983009808
    %v3105 = vunpack.c.0.s8 %v3104
    %v3106 = vperm.slane %v3102, %v3105
    %v3107 = vrot.slane %v2935, 4
    %v3108 = vsel %vm610, %v3107, %v2933
    %v3110 = vunpack.c.l.s4 1983009808
    %v3111 = vunpack.c.0.s8 %v3110
    %v3112 = vperm.slane %v3108, %v3111
    %v3113 = vsel %vm610, %v2938, %v2927
    %v3115 = vunpack.c.l.s4 1983009808
    %v3116 = vunpack.c.0.s8 %v3115
    %v3117 = vperm.slane %v3113, %v3116
    %v3118 = vrot.slane %v2939, 4
    %v3119 = vsel %vm610, %v3118, %v2937
    %v3121 = vunpack.c.l.s4 1983009808
    %v3122 = vunpack.c.0.s8 %v3121
    %v3123 = vperm.slane %v3119, %v3122
    %v3124 = vrot.slane %v3112, 4
    %v3125 = vsel %vm610, %v3124, %v3106
    %v3126 = vrot.slane %v3106, 4
    %v3127 = vsel %vm610, %v3112, %v3126
    %v3129 = vunpack.c.l.s4 1934713408
    %v3130 = vunpack.c.0.s8 %v3129
    %v3131 = vperm.slane %v3125, %v3130
    %v3133 = vunpack.c.l.s4 1934713408
    %v3134 = vunpack.c.0.s8 %v3133
    %v3135 = vperm.slane %v3127, %v3134
    %v3136 = vrot.slane %v3123, 4
    %v3137 = vsel %vm610, %v3136, %v3117
    %v3138 = vrot.slane %v3117, 4
    %v3139 = vsel %vm610, %v3123, %v3138
    %v3141 = vunpack.c.l.s4 1934713408
    %v3142 = vunpack.c.0.s8 %v3141
    %v3143 = vperm.slane %v3137, %v3142
    %v3145 = vunpack.c.l.s4 1934713408
    %v3146 = vunpack.c.0.s8 %v3145
    %v3147 = vperm.slane %v3139, %v3146
    %v3148 = vrot.slane %v3143, 4
    %v3149 = vsel %vm610, %v3148, %v3131
    %v3150 = vrot.slane %v3131, 4
    %v3151 = vsel %vm610, %v3143, %v3150
    %v3152 = vrot.slane %v3147, 4
    %v3153 = vsel %vm610, %v3152, %v3135
    %v3154 = vrot.slane %v3135, 4
    %v3155 = vsel %vm610, %v3147, %v3154
    %3160 = vrot.lane.b32.xlu0 %v2989, 32
    %v3161 = vpop.permute.xlu0 %3160
    %3162 = vrot.lane.b32.xlu0 %v3043, 32
    %v3163 = vpop.permute.xlu0 %3162
    %3164 = vrot.lane.b32.xlu0 %v3097, 32
    %v3165 = vpop.permute.xlu0 %3164
    %3166 = vrot.lane.b32.xlu0 %v3151, 32
    %v3167 = vpop.permute.xlu0 %3166
    %3176 = vrot.lane.b32.xlu0 %v2991, 64
    %v3177 = vpop.permute.xlu0 %3176
    %3178 = vrot.lane.b32.xlu0 %v3045, 64
    %v3179 = vpop.permute.xlu0 %3178
    %3180 = vrot.lane.b32.xlu0 %v3099, 64
    %v3181 = vpop.permute.xlu0 %3180
    %3182 = vrot.lane.b32.xlu0 %v3153, 64
    %v3183 = vpop.permute.xlu0 %3182
    %3192 = vrot.lane.b32.xlu0 %v2993, 96
    %v3193 = vpop.permute.xlu0 %3192
    %3194 = vrot.lane.b32.xlu0 %v3047, 96
    %v3195 = vpop.permute.xlu0 %3194
    %3196 = vrot.lane.b32.xlu0 %v3101, 96
    %v3197 = vpop.permute.xlu0 %3196
    %3198 = vrot.lane.b32.xlu0 %v3155, 96
    %v3199 = vpop.permute.xlu0 %3198
    %v3204 = vsel %vm2068, %v2987, %v3161
    %v3205 = vsel %vm2068, %v3041, %v3163
    %v3206 = vsel %vm2068, %v3095, %v3165
    %v3207 = vsel %vm2068, %v3149, %v3167
    %vm3208 = vcmask 523264
    %v3209 = vsel %vm3208, %v3204, %v3177
    %v3210 = vsel %vm3208, %v3205, %v3179
    %v3211 = vsel %vm3208, %v3206, %v3181
    %v3212 = vsel %vm3208, %v3207, %v3183
    %vm3213 = vcmask 785408
    %v3214 = vsel %vm3213, %v3209, %v3193
    %v3215 = vsel %vm3213, %v3210, %v3195
    %v3216 = vsel %vm3213, %v3211, %v3197
    %v3217 = vsel %vm3213, %v3212, %v3199
    %v3218 = vpack.c.bf16 %v3215, %v3214
    %v3219 = vpack.c.bf16 %v3217, %v3216
    %v3220 = vld [vmem:[#allocation8] sm:$0xf]
    %v3221 = vld [vmem:[#allocation8 + $0x4] sm:$0xf]
    %v3222 = vld [vmem:[#allocation8 + $0x8] sm:$0xf]
    %v3223 = vld [vmem:[#allocation8 + $0xc] sm:$0xf]
    %v3224 = vld [vmem:[#allocation8 + $0x10] sm:$0xf]
    %v3225 = vld [vmem:[#allocation8 + $0x14] sm:$0xf]
    %v3226 = vld [vmem:[#allocation8 + $0x18] sm:$0xf]
    %v3227 = vld [vmem:[#allocation8 + $0x1c] sm:$0xf]
    %v3228 = vld [vmem:[#allocation8 + $0x20] sm:$0xf]
    %v3229 = vld [vmem:[#allocation8 + $0x24] sm:$0xf]
    %v3230 = vld [vmem:[#allocation8 + $0x28] sm:$0xf]
    %v3231 = vld [vmem:[#allocation8 + $0x2c] sm:$0xf]
    %v3232 = vld [vmem:[#allocation8 + $0x30] sm:$0xf]
    %v3233 = vld [vmem:[#allocation8 + $0x34] sm:$0xf]
    %v3234 = vld [vmem:[#allocation8 + $0x38] sm:$0xf]
    %v3235 = vld [vmem:[#allocation8 + $0x3c] sm:$0xf]
    %v3252 = vunpack.c.l.b16 %v3220
    %v3253 = vunpack.c.l.b16 %v3221
    %v3254 = vunpack.c.l.b16 %v3222
    %v3255 = vunpack.c.l.b16 %v3223
    %v3256 = vunpack.c.l.b16 %v3224
    %v3257 = vunpack.c.l.b16 %v3225
    %v3258 = vunpack.c.l.b16 %v3226
    %v3259 = vunpack.c.l.b16 %v3227
    %v3260 = vunpack.c.l.b16 %v3228
    %v3261 = vunpack.c.l.b16 %v3229
    %v3262 = vunpack.c.l.b16 %v3230
    %v3263 = vunpack.c.l.b16 %v3231
    %v3264 = vunpack.c.l.b16 %v3232
    %v3265 = vunpack.c.l.b16 %v3233
    %v3266 = vunpack.c.l.b16 %v3234
    %v3267 = vunpack.c.l.b16 %v3235
    %v3268 = vpack.c.b16 %v3253, %v3252
    %v3269 = vpack.c.b16 %v3255, %v3254
    %v3270 = vpack.c.b16 %v3257, %v3256
    %v3271 = vpack.c.b16 %v3259, %v3258
    %v3272 = vpack.c.b16 %v3261, %v3260
    %v3273 = vpack.c.b16 %v3263, %v3262
    %v3274 = vpack.c.b16 %v3265, %v3264
    %v3275 = vpack.c.b16 %v3267, %v3266
    %3284 = vmatpush.bf16.msra.mxu0 %v3275
    %3285 = vmatpush.bf16.msra.mxu0 %v3274
    %3286 = vmatpush.bf16.msra.mxu0 %v3273
    %3287 = vmatpush.bf16.msra.mxu0 %v3272
    %3288 = vmatpush.bf16.msra.mxu0 %v3271
    %3289 = vmatpush.bf16.msra.mxu0 %v3270
    %3290 = vmatpush.bf16.msra.mxu0 %v3269
    %3291 = vmatpush.bf16.msra.mxu0 %v3268
    %3292 = vmatmul.bf16.gmra.mxu0 %v3218
    %v3293 = vpop.f32.mrf.mxu0
    %v3294 = vadd.f32 0.0, %v3293
    %v3295 = vpop.f32.mrf.mxu0
    %v3296 = vadd.f32 0.0, %v3295
    %3297 = vmatmul.bf16.gmra.mxu0 %v3219
    %v3298 = vpop.f32.mrf.mxu0
    %v3299 = vadd.f32 0.0, %v3298
    %v3300 = vpop.f32.mrf.mxu0
    %v3301 = vadd.f32 0.0, %v3300
    %3302 = vdwg.mxu0
    %v3303 = vadd.f32 %v235, %v3294
    %v3304 = vadd.f32 %v236, %v3296
    %v3305 = vadd.f32 %v237, %v3299
    %v3306 = vadd.f32 %v238, %v3301
    %v3307 = vld [vmem:[#allocation10] sm:$0x1]
    %v3308 = vld [vmem:[#allocation11] sm:$0x1]
    %3309 = vadd.xlane.f32.xlu0 %v3303
    %v3310 = vpop.xlane.xlu0 %3309
    %3311 = vadd.xlane.f32.xlu0 %v3304
    %v3312 = vpop.xlane.xlu0 %3311
    %3313 = vadd.xlane.f32.xlu0 %v3305
    %v3314 = vpop.xlane.xlu0 %3313
    %3315 = vadd.xlane.f32.xlu0 %v3306
    %v3316 = vpop.xlane.xlu0 %3315
    %v3317 = vmul.f32 %v3310, %v255
    %v3318 = vmul.f32 %v3312, %v255
    %v3319 = vmul.f32 %v3314, %v255
    %v3320 = vmul.f32 %v3316, %v255
    %v3321 = vmul.f32 %v3303, %v3303
    %v3322 = vmul.f32 %v3304, %v3304
    %v3323 = vmul.f32 %v3305, %v3305
    %v3324 = vmul.f32 %v3306, %v3306
    %3325 = vadd.xlane.f32.xlu0 %v3321
    %v3326 = vpop.xlane.xlu0 %3325
    %3327 = vadd.xlane.f32.xlu0 %v3322
    %v3328 = vpop.xlane.xlu0 %3327
    %3329 = vadd.xlane.f32.xlu0 %v3323
    %v3330 = vpop.xlane.xlu0 %3329
    %3331 = vadd.xlane.f32.xlu0 %v3324
    %v3332 = vpop.xlane.xlu0 %3331
    %v3333 = vmul.f32 %v3326, %v255
    %v3334 = vmul.f32 %v3328, %v255
    %v3335 = vmul.f32 %v3330, %v255
    %v3336 = vmul.f32 %v3332, %v255
    %v3337 = vmul.f32 %v3317, %v3317
    %v3338 = vmul.f32 %v3318, %v3318
    %v3339 = vmul.f32 %v3319, %v3319
    %v3340 = vmul.f32 %v3320, %v3320
    %v3341 = vsub.f32 %v3333, %v3337
    %v3342 = vsub.f32 %v3334, %v3338
    %v3343 = vsub.f32 %v3335, %v3339
    %v3344 = vsub.f32 %v3336, %v3340
    %v3345 = vsub.f32 %v3303, %v3317
    %v3346 = vsub.f32 %v3304, %v3318
    %v3347 = vsub.f32 %v3305, %v3319
    %v3348 = vsub.f32 %v3306, %v3320
    %v3349 = vadd.f32 %v3341, 1e-05
    %v3350 = vadd.f32 %v3342, 1e-05
    %v3351 = vadd.f32 %v3343, 1e-05
    %v3352 = vadd.f32 %v3344, 1e-05
    %v3353 = vrsqrt.pop %v3349
    %v3354 = vmul.f32 %v3353, %v3349
    %v3355 = vmul.f32 %v3354, %v3353
    %v3356 = vmul.f32 0.5, %v3355
    %v3357 = vsub.f32 1.5, %v3356
    %v3358 = vmul.f32 %v3353, %v3357
    %vm3359 = vweird.f32 %v3349
    %vm3360 = vweird.f32 %v3353
    %vm3361 = vmor %vm3359, %vm3360
    %v3362 = vsel %vm3361, %v3353, %v3358
    %v3363 = vrsqrt.pop %v3350
    %v3364 = vmul.f32 %v3363, %v3350
    %v3365 = vmul.f32 %v3364, %v3363
    %v3366 = vmul.f32 0.5, %v3365
    %v3367 = vsub.f32 1.5, %v3366
    %v3368 = vmul.f32 %v3363, %v3367
    %vm3369 = vweird.f32 %v3350
    %vm3370 = vweird.f32 %v3363
    %vm3371 = vmor %vm3369, %vm3370
    %v3372 = vsel %vm3371, %v3363, %v3368
    %v3373 = vrsqrt.pop %v3351
    %v3374 = vmul.f32 %v3373, %v3351
    %v3375 = vmul.f32 %v3374, %v3373
    %v3376 = vmul.f32 0.5, %v3375
    %v3377 = vsub.f32 1.5, %v3376
    %v3378 = vmul.f32 %v3373, %v3377
    %vm3379 = vweird.f32 %v3351
    %vm3380 = vweird.f32 %v3373
    %vm3381 = vmor %vm3379, %vm3380
    %v3382 = vsel %vm3381, %v3373, %v3378
    %v3383 = vrsqrt.pop %v3352
    %v3384 = vmul.f32 %v3383, %v3352
    %v3385 = vmul.f32 %v3384, %v3383
    %v3386 = vmul.f32 0.5, %v3385
    %v3387 = vsub.f32 1.5, %v3386
    %v3388 = vmul.f32 %v3383, %v3387
    %vm3389 = vweird.f32 %v3352
    %vm3390 = vweird.f32 %v3383
    %vm3391 = vmor %vm3389, %vm3390
    %v3392 = vsel %vm3391, %v3383, %v3388
    %v3393 = vmul.f32 %v3345, %v3362
    %v3394 = vmul.f32 %v3346, %v3372
    %v3395 = vmul.f32 %v3347, %v3382
    %v3396 = vmul.f32 %v3348, %v3392
    %v3398 = vperm.slane %v3307, 0
    %v3400 = vmul.f32 %v3393, %v3398
    %v3401 = vmul.f32 %v3394, %v3398
    %v3402 = vmul.f32 %v3395, %v3398
    %v3403 = vmul.f32 %v3396, %v3398
    %v3405 = vperm.slane %v3308, 0
    %v3407 = vadd.f32 %v3400, %v3405
    %v3408 = vadd.f32 %v3401, %v3405
    %v3409 = vadd.f32 %v3402, %v3405
    %v3410 = vadd.f32 %v3403, %v3405
    %v3411 = vpack.c.bf16 %v3408, %v3407
    %v3412 = vpack.c.bf16 %v3410, %v3409
    %v3413 = vld [vmem:[#allocation13] sm:$0xff]
    %v3414 = vld [vmem:[#allocation13 + $0x8] sm:$0xff]
    %v3415 = vld [vmem:[#allocation13 + $0x10] sm:$0xff]
    %v3416 = vld [vmem:[#allocation13 + $0x18] sm:$0xff]
    %v3417 = vld [vmem:[#allocation13 + $0x20] sm:$0xff]
    %v3418 = vld [vmem:[#allocation13 + $0x28] sm:$0xff]
    %v3419 = vld [vmem:[#allocation13 + $0x30] sm:$0xff]
    %v3420 = vld [vmem:[#allocation13 + $0x38] sm:$0xff]
    %v3421 = vld [vmem:[#allocation13 + $0x40] sm:$0xff]
    %v3422 = vld [vmem:[#allocation13 + $0x48] sm:$0xff]
    %v3423 = vld [vmem:[#allocation13 + $0x50] sm:$0xff]
    %v3424 = vld [vmem:[#allocation13 + $0x58] sm:$0xff]
    %v3425 = vld [vmem:[#allocation13 + $0x60] sm:$0xff]
    %v3426 = vld [vmem:[#allocation13 + $0x68] sm:$0xff]
    %v3427 = vld [vmem:[#allocation13 + $0x70] sm:$0xff]
    %v3428 = vld [vmem:[#allocation13 + $0x78] sm:$0xff]
    %v3429 = vld [vmem:[%s8] sm:$0x3]
    %v3431 = vperm.slane %v3429, 0
    %v3432 = vperm.slane %v3429, 1
    %v3451 = vunpack.c.l.b16 %v3413
    %v3452 = vunpack.c.h.b16 %v3413
    %v3453 = vunpack.c.l.b16 %v3414
    %v3454 = vunpack.c.h.b16 %v3414
    %v3455 = vunpack.c.l.b16 %v3415
    %v3456 = vunpack.c.h.b16 %v3415
    %v3457 = vunpack.c.l.b16 %v3416
    %v3458 = vunpack.c.h.b16 %v3416
    %v3459 = vunpack.c.l.b16 %v3417
    %v3460 = vunpack.c.h.b16 %v3417
    %v3461 = vunpack.c.l.b16 %v3418
    %v3462 = vunpack.c.h.b16 %v3418
    %v3463 = vunpack.c.l.b16 %v3419
    %v3464 = vunpack.c.h.b16 %v3419
    %v3465 = vunpack.c.l.b16 %v3420
    %v3466 = vunpack.c.h.b16 %v3420
    %v3467 = vunpack.c.l.b16 %v3421
    %v3468 = vunpack.c.h.b16 %v3421
    %v3469 = vunpack.c.l.b16 %v3422
    %v3470 = vunpack.c.h.b16 %v3422
    %v3471 = vunpack.c.l.b16 %v3423
    %v3472 = vunpack.c.h.b16 %v3423
    %v3473 = vunpack.c.l.b16 %v3424
    %v3474 = vunpack.c.h.b16 %v3424
    %v3475 = vunpack.c.l.b16 %v3425
    %v3476 = vunpack.c.h.b16 %v3425
    %v3477 = vunpack.c.l.b16 %v3426
    %v3478 = vunpack.c.h.b16 %v3426
    %v3479 = vunpack.c.l.b16 %v3427
    %v3480 = vunpack.c.h.b16 %v3427
    %v3481 = vunpack.c.l.b16 %v3428
    %v3482 = vunpack.c.h.b16 %v3428
    %v3483 = vpack.c.b16 %v3453, %v3451
    %v3484 = vpack.c.b16 %v3454, %v3452
    %v3485 = vpack.c.b16 %v3457, %v3455
    %v3486 = vpack.c.b16 %v3458, %v3456
    %v3487 = vpack.c.b16 %v3461, %v3459
    %v3488 = vpack.c.b16 %v3462, %v3460
    %v3489 = vpack.c.b16 %v3465, %v3463
    %v3490 = vpack.c.b16 %v3466, %v3464
    %v3491 = vpack.c.b16 %v3469, %v3467
    %v3492 = vpack.c.b16 %v3470, %v3468
    %v3493 = vpack.c.b16 %v3473, %v3471
    %v3494 = vpack.c.b16 %v3474, %v3472
    %v3495 = vpack.c.b16 %v3477, %v3475
    %v3496 = vpack.c.b16 %v3478, %v3476
    %v3497 = vpack.c.b16 %v3481, %v3479
    %v3498 = vpack.c.b16 %v3482, %v3480
    %3515 = vmatpush.bf16.msra.mxu0 %v3497
    %3516 = vmatpush.bf16.msra.mxu0 %v3495
    %3517 = vmatpush.bf16.msra.mxu0 %v3493
    %3518 = vmatpush.bf16.msra.mxu0 %v3491
    %3519 = vmatpush.bf16.msra.mxu0 %v3489
    %3520 = vmatpush.bf16.msra.mxu0 %v3487
    %3521 = vmatpush.bf16.msra.mxu0 %v3485
    %3522 = vmatpush.bf16.msra.mxu0 %v3483
    %3523 = vmatmul.bf16.gmra.mxu0 %v3411
    %v3524 = vpop.f32.mrf.mxu0
    %v3525 = vadd.f32 %v3431, %v3524
    %v3526 = vpop.f32.mrf.mxu0
    %v3527 = vadd.f32 %v3431, %v3526
    %3528 = vmatmul.bf16.gmra.mxu0 %v3412
    %v3529 = vpop.f32.mrf.mxu0
    %v3530 = vadd.f32 %v3431, %v3529
    %v3531 = vpop.f32.mrf.mxu0
    %v3532 = vadd.f32 %v3431, %v3531
    %3533 = vdwg.mxu0
    %3534 = vmatpush.bf16.msra.mxu0 %v3498
    %3535 = vmatpush.bf16.msra.mxu0 %v3496
    %3536 = vmatpush.bf16.msra.mxu0 %v3494
    %3537 = vmatpush.bf16.msra.mxu0 %v3492
    %3538 = vmatpush.bf16.msra.mxu0 %v3490
    %3539 = vmatpush.bf16.msra.mxu0 %v3488
    %3540 = vmatpush.bf16.msra.mxu0 %v3486
    %3541 = vmatpush.bf16.msra.mxu0 %v3484
    %3542 = vmatmul.bf16.gmra.mxu0 %v3411
    %v3543 = vpop.f32.mrf.mxu0
    %v3544 = vadd.f32 %v3432, %v3543
    %v3545 = vpop.f32.mrf.mxu0
    %v3546 = vadd.f32 %v3432, %v3545
    %3547 = vmatmul.bf16.gmra.mxu0 %v3412
    %v3548 = vpop.f32.mrf.mxu0
    %v3549 = vadd.f32 %v3432, %v3548
    %v3550 = vpop.f32.mrf.mxu0
    %v3551 = vadd.f32 %v3432, %v3550
    %3552 = vdwg.mxu0
    %v3553 = vmul.f32 %v3525, 0.5
    %v3554 = vmul.f32 %v3544, 0.5
    %v3555 = vmul.f32 %v3527, 0.5
    %v3556 = vmul.f32 %v3546, 0.5
    %v3557 = vmul.f32 %v3530, 0.5
    %v3558 = vmul.f32 %v3549, 0.5
    %v3559 = vmul.f32 %v3532, 0.5
    %v3560 = vmul.f32 %v3551, 0.5
    %v3561 = vmul.f32 %v3525, %v3525
    %v3562 = vmul.f32 %v3544, %v3544
    %v3563 = vmul.f32 %v3527, %v3527
    %v3564 = vmul.f32 %v3546, %v3546
    %v3565 = vmul.f32 %v3530, %v3530
    %v3566 = vmul.f32 %v3549, %v3549
    %v3567 = vmul.f32 %v3532, %v3532
    %v3568 = vmul.f32 %v3551, %v3551
    %v3569 = vmul.f32 %v3561, %v3525
    %v3570 = vmul.f32 %v3562, %v3544
    %v3571 = vmul.f32 %v3563, %v3527
    %v3572 = vmul.f32 %v3564, %v3546
    %v3573 = vmul.f32 %v3565, %v3530
    %v3574 = vmul.f32 %v3566, %v3549
    %v3575 = vmul.f32 %v3567, %v3532
    %v3576 = vmul.f32 %v3568, %v3551
    %v3577 = vmul.f32 %v3569, 0.044715
    %v3578 = vmul.f32 %v3570, 0.044715
    %v3579 = vmul.f32 %v3571, 0.044715
    %v3580 = vmul.f32 %v3572, 0.044715
    %v3581 = vmul.f32 %v3573, 0.044715
    %v3582 = vmul.f32 %v3574, 0.044715
    %v3583 = vmul.f32 %v3575, 0.044715
    %v3584 = vmul.f32 %v3576, 0.044715
    %v3585 = vadd.f32 %v3525, %v3577
    %v3586 = vadd.f32 %v3544, %v3578
    %v3587 = vadd.f32 %v3527, %v3579
    %v3588 = vadd.f32 %v3546, %v3580
    %v3589 = vadd.f32 %v3530, %v3581
    %v3590 = vadd.f32 %v3549, %v3582
    %v3591 = vadd.f32 %v3532, %v3583
    %v3592 = vadd.f32 %v3551, %v3584
    %v3593 = vmul.f32 %v3585, 0.7978846
    %v3594 = vmul.f32 %v3586, 0.7978846
    %v3595 = vmul.f32 %v3587, 0.7978846
    %v3596 = vmul.f32 %v3588, 0.7978846
    %v3597 = vmul.f32 %v3589, 0.7978846
    %v3598 = vmul.f32 %v3590, 0.7978846
    %v3599 = vmul.f32 %v3591, 0.7978846
    %v3600 = vmul.f32 %v3592, 0.7978846
    %v3601 = vtanh.pop %v3593
    %v3602 = vtanh.pop %v3594
    %v3603 = vtanh.pop %v3595
    %v3604 = vtanh.pop %v3596
    %v3605 = vtanh.pop %v3597
    %v3606 = vtanh.pop %v3598
    %v3607 = vtanh.pop %v3599
    %v3608 = vtanh.pop %v3600
    %v3609 = vadd.f32 %v3601, 1.0
    %v3610 = vadd.f32 %v3602, 1.0
    %v3611 = vadd.f32 %v3603, 1.0
    %v3612 = vadd.f32 %v3604, 1.0
    %v3613 = vadd.f32 %v3605, 1.0
    %v3614 = vadd.f32 %v3606, 1.0
    %v3615 = vadd.f32 %v3607, 1.0
    %v3616 = vadd.f32 %v3608, 1.0
    %v3617 = vmul.f32 %v3553, %v3609
    %v3618 = vmul.f32 %v3554, %v3610
    %v3619 = vmul.f32 %v3555, %v3611
    %v3620 = vmul.f32 %v3556, %v3612
    %v3621 = vmul.f32 %v3557, %v3613
    %v3622 = vmul.f32 %v3558, %v3614
    %v3623 = vmul.f32 %v3559, %v3615
    %v3624 = vmul.f32 %v3560, %v3616
    %v3625 = vpack.c.bf16 %v3619, %v3617
    %v3626 = vpack.c.bf16 %v3620, %v3618
    %v3627 = vpack.c.bf16 %v3623, %v3621
    %v3628 = vpack.c.bf16 %v3624, %v3622
    %v3629 = vld [vmem:[#allocation14] sm:$0xf]
    %v3630 = vld [vmem:[#allocation14 + $0x4] sm:$0xf]
    %v3631 = vld [vmem:[#allocation14 + $0x8] sm:$0xf]
    %v3632 = vld [vmem:[#allocation14 + $0xc] sm:$0xf]
    %v3633 = vld [vmem:[#allocation14 + $0x10] sm:$0xf]
    %v3634 = vld [vmem:[#allocation14 + $0x14] sm:$0xf]
    %v3635 = vld [vmem:[#allocation14 + $0x18] sm:$0xf]
    %v3636 = vld [vmem:[#allocation14 + $0x1c] sm:$0xf]
    %v3637 = vld [vmem:[#allocation14 + $0x20] sm:$0xf]
    %v3638 = vld [vmem:[#allocation14 + $0x24] sm:$0xf]
    %v3639 = vld [vmem:[#allocation14 + $0x28] sm:$0xf]
    %v3640 = vld [vmem:[#allocation14 + $0x2c] sm:$0xf]
    %v3641 = vld [vmem:[#allocation14 + $0x30] sm:$0xf]
    %v3642 = vld [vmem:[#allocation14 + $0x34] sm:$0xf]
    %v3643 = vld [vmem:[#allocation14 + $0x38] sm:$0xf]
    %v3644 = vld [vmem:[#allocation14 + $0x3c] sm:$0xf]
    %v3645 = vld [vmem:[#allocation14 + $0x40] sm:$0xf]
    %v3646 = vld [vmem:[#allocation14 + $0x44] sm:$0xf]
    %v3647 = vld [vmem:[#allocation14 + $0x48] sm:$0xf]
    %v3648 = vld [vmem:[#allocation14 + $0x4c] sm:$0xf]
    %v3649 = vld [vmem:[#allocation14 + $0x50] sm:$0xf]
    %v3650 = vld [vmem:[#allocation14 + $0x54] sm:$0xf]
    %v3651 = vld [vmem:[#allocation14 + $0x58] sm:$0xf]
    %v3652 = vld [vmem:[#allocation14 + $0x5c] sm:$0xf]
    %v3653 = vld [vmem:[#allocation14 + $0x60] sm:$0xf]
    %v3654 = vld [vmem:[#allocation14 + $0x64] sm:$0xf]
    %v3655 = vld [vmem:[#allocation14 + $0x68] sm:$0xf]
    %v3656 = vld [vmem:[#allocation14 + $0x6c] sm:$0xf]
    %v3657 = vld [vmem:[#allocation14 + $0x70] sm:$0xf]
    %v3658 = vld [vmem:[#allocation14 + $0x74] sm:$0xf]
    %v3659 = vld [vmem:[#allocation14 + $0x78] sm:$0xf]
    %v3660 = vld [vmem:[#allocation14 + $0x7c] sm:$0xf]
    %v3661 = vld [vmem:[%s10] sm:$0x1]
    %v3663 = vperm.slane %v3661, 0
    %v3697 = vunpack.c.l.b16 %v3629
    %v3698 = vunpack.c.l.b16 %v3630
    %v3699 = vunpack.c.l.b16 %v3631
    %v3700 = vunpack.c.l.b16 %v3632
    %v3701 = vunpack.c.l.b16 %v3633
    %v3702 = vunpack.c.l.b16 %v3634
    %v3703 = vunpack.c.l.b16 %v3635
    %v3704 = vunpack.c.l.b16 %v3636
    %v3705 = vunpack.c.l.b16 %v3637
    %v3706 = vunpack.c.l.b16 %v3638
    %v3707 = vunpack.c.l.b16 %v3639
    %v3708 = vunpack.c.l.b16 %v3640
    %v3709 = vunpack.c.l.b16 %v3641
    %v3710 = vunpack.c.l.b16 %v3642
    %v3711 = vunpack.c.l.b16 %v3643
    %v3712 = vunpack.c.l.b16 %v3644
    %v3713 = vunpack.c.l.b16 %v3645
    %v3714 = vunpack.c.l.b16 %v3646
    %v3715 = vunpack.c.l.b16 %v3647
    %v3716 = vunpack.c.l.b16 %v3648
    %v3717 = vunpack.c.l.b16 %v3649
    %v3718 = vunpack.c.l.b16 %v3650
    %v3719 = vunpack.c.l.b16 %v3651
    %v3720 = vunpack.c.l.b16 %v3652
    %v3721 = vunpack.c.l.b16 %v3653
    %v3722 = vunpack.c.l.b16 %v3654
    %v3723 = vunpack.c.l.b16 %v3655
    %v3724 = vunpack.c.l.b16 %v3656
    %v3725 = vunpack.c.l.b16 %v3657
    %v3726 = vunpack.c.l.b16 %v3658
    %v3727 = vunpack.c.l.b16 %v3659
    %v3728 = vunpack.c.l.b16 %v3660
    %v3729 = vpack.c.b16 %v3698, %v3697
    %v3730 = vpack.c.b16 %v3700, %v3699
    %v3731 = vpack.c.b16 %v3702, %v3701
    %v3732 = vpack.c.b16 %v3704, %v3703
    %v3733 = vpack.c.b16 %v3706, %v3705
    %v3734 = vpack.c.b16 %v3708, %v3707
    %v3735 = vpack.c.b16 %v3710, %v3709
    %v3736 = vpack.c.b16 %v3712, %v3711
    %v3737 = vpack.c.b16 %v3714, %v3713
    %v3738 = vpack.c.b16 %v3716, %v3715
    %v3739 = vpack.c.b16 %v3718, %v3717
    %v3740 = vpack.c.b16 %v3720, %v3719
    %v3741 = vpack.c.b16 %v3722, %v3721
    %v3742 = vpack.c.b16 %v3724, %v3723
    %v3743 = vpack.c.b16 %v3726, %v3725
    %v3744 = vpack.c.b16 %v3728, %v3727
    %3761 = vmatpush.bf16.msra.mxu0 %v3736
    %3762 = vmatpush.bf16.msra.mxu0 %v3735
    %3763 = vmatpush.bf16.msra.mxu0 %v3734
    %3764 = vmatpush.bf16.msra.mxu0 %v3733
    %3765 = vmatpush.bf16.msra.mxu0 %v3732
    %3766 = vmatpush.bf16.msra.mxu0 %v3731
    %3767 = vmatpush.bf16.msra.mxu0 %v3730
    %3768 = vmatpush.bf16.msra.mxu0 %v3729
    %3769 = vmatmul.bf16.gmra.mxu0 %v3625
    %v3770 = vpop.f32.mrf.mxu0
    %v3771 = vadd.f32 %v3663, %v3770
    %v3772 = vpop.f32.mrf.mxu0
    %v3773 = vadd.f32 %v3663, %v3772
    %3774 = vmatmul.bf16.gmra.mxu0 %v3627
    %v3775 = vpop.f32.mrf.mxu0
    %v3776 = vadd.f32 %v3663, %v3775
    %v3777 = vpop.f32.mrf.mxu0
    %v3778 = vadd.f32 %v3663, %v3777
    %3779 = vdwg.mxu0
    %3780 = vmatpush.bf16.msra.mxu0 %v3744
    %3781 = vmatpush.bf16.msra.mxu0 %v3743
    %3782 = vmatpush.bf16.msra.mxu0 %v3742
    %3783 = vmatpush.bf16.msra.mxu0 %v3741
    %3784 = vmatpush.bf16.msra.mxu0 %v3740
    %3785 = vmatpush.bf16.msra.mxu0 %v3739
    %3786 = vmatpush.bf16.msra.mxu0 %v3738
    %3787 = vmatpush.bf16.msra.mxu0 %v3737
    %3788 = vmatmul.bf16.gmra.mxu0 %v3626
    %v3789 = vpop.f32.mrf.mxu0
    %v3790 = vadd.f32 %v3771, %v3789
    %v3791 = vpop.f32.mrf.mxu0
    %v3792 = vadd.f32 %v3773, %v3791
    %3793 = vmatmul.bf16.gmra.mxu0 %v3628
    %v3794 = vpop.f32.mrf.mxu0
    %v3795 = vadd.f32 %v3776, %v3794
    %v3796 = vpop.f32.mrf.mxu0
    %v3797 = vadd.f32 %v3778, %v3796
    %3798 = vdwg.mxu0
    %v3799 = vadd.f32 %v3407, %v3790
    %v3800 = vadd.f32 %v3408, %v3792
    %v3801 = vadd.f32 %v3409, %v3795
    %v3802 = vadd.f32 %v3410, %v3797
    %v3803 = vld [vmem:[%s11] sm:$0x1]
    %v3804 = vld [vmem:[%s12] sm:$0x1]
    %3805 = vadd.xlane.f32.xlu0 %v3799
    %v3806 = vpop.xlane.xlu0 %3805
    %3807 = vadd.xlane.f32.xlu0 %v3800
    %v3808 = vpop.xlane.xlu0 %3807
    %3809 = vadd.xlane.f32.xlu0 %v3801
    %v3810 = vpop.xlane.xlu0 %3809
    %3811 = vadd.xlane.f32.xlu0 %v3802
    %v3812 = vpop.xlane.xlu0 %3811
    %v3813 = vmul.f32 %v3806, %v255
    %v3814 = vmul.f32 %v3808, %v255
    %v3815 = vmul.f32 %v3810, %v255
    %v3816 = vmul.f32 %v3812, %v255
    %v3817 = vmul.f32 %v3799, %v3799
    %v3818 = vmul.f32 %v3800, %v3800
    %v3819 = vmul.f32 %v3801, %v3801
    %v3820 = vmul.f32 %v3802, %v3802
    %3821 = vadd.xlane.f32.xlu0 %v3817
    %v3822 = vpop.xlane.xlu0 %3821
    %3823 = vadd.xlane.f32.xlu0 %v3818
    %v3824 = vpop.xlane.xlu0 %3823
    %3825 = vadd.xlane.f32.xlu0 %v3819
    %v3826 = vpop.xlane.xlu0 %3825
    %3827 = vadd.xlane.f32.xlu0 %v3820
    %v3828 = vpop.xlane.xlu0 %3827
    %v3829 = vmul.f32 %v3822, %v255
    %v3830 = vmul.f32 %v3824, %v255
    %v3831 = vmul.f32 %v3826, %v255
    %v3832 = vmul.f32 %v3828, %v255
    %v3833 = vmul.f32 %v3813, %v3813
    %v3834 = vmul.f32 %v3814, %v3814
    %v3835 = vmul.f32 %v3815, %v3815
    %v3836 = vmul.f32 %v3816, %v3816
    %v3837 = vsub.f32 %v3829, %v3833
    %v3838 = vsub.f32 %v3830, %v3834
    %v3839 = vsub.f32 %v3831, %v3835
    %v3840 = vsub.f32 %v3832, %v3836
    %v3841 = vsub.f32 %v3799, %v3813
    %v3842 = vsub.f32 %v3800, %v3814
    %v3843 = vsub.f32 %v3801, %v3815
    %v3844 = vsub.f32 %v3802, %v3816
    %v3845 = vadd.f32 %v3837, 1e-05
    %v3846 = vadd.f32 %v3838, 1e-05
    %v3847 = vadd.f32 %v3839, 1e-05
    %v3848 = vadd.f32 %v3840, 1e-05
    %v3849 = vrsqrt.pop %v3845
    %v3850 = vmul.f32 %v3849, %v3845
    %v3851 = vmul.f32 %v3850, %v3849
    %v3852 = vmul.f32 0.5, %v3851
    %v3853 = vsub.f32 1.5, %v3852
    %v3854 = vmul.f32 %v3849, %v3853
    %vm3855 = vweird.f32 %v3845
    %vm3856 = vweird.f32 %v3849
    %vm3857 = vmor %vm3855, %vm3856
    %v3858 = vsel %vm3857, %v3849, %v3854
    %v3859 = vrsqrt.pop %v3846
    %v3860 = vmul.f32 %v3859, %v3846
    %v3861 = vmul.f32 %v3860, %v3859
    %v3862 = vmul.f32 0.5, %v3861
    %v3863 = vsub.f32 1.5, %v3862
    %v3864 = vmul.f32 %v3859, %v3863
    %vm3865 = vweird.f32 %v3846
    %vm3866 = vweird.f32 %v3859
    %vm3867 = vmor %vm3865, %vm3866
    %v3868 = vsel %vm3867, %v3859, %v3864
    %v3869 = vrsqrt.pop %v3847
    %v3870 = vmul.f32 %v3869, %v3847
    %v3871 = vmul.f32 %v3870, %v3869
    %v3872 = vmul.f32 0.5, %v3871
    %v3873 = vsub.f32 1.5, %v3872
    %v3874 = vmul.f32 %v3869, %v3873
    %vm3875 = vweird.f32 %v3847
    %vm3876 = vweird.f32 %v3869
    %vm3877 = vmor %vm3875, %vm3876
    %v3878 = vsel %vm3877, %v3869, %v3874
    %v3879 = vrsqrt.pop %v3848
    %v3880 = vmul.f32 %v3879, %v3848
    %v3881 = vmul.f32 %v3880, %v3879
    %v3882 = vmul.f32 0.5, %v3881
    %v3883 = vsub.f32 1.5, %v3882
    %v3884 = vmul.f32 %v3879, %v3883
    %vm3885 = vweird.f32 %v3848
    %vm3886 = vweird.f32 %v3879
    %vm3887 = vmor %vm3885, %vm3886
    %v3888 = vsel %vm3887, %v3879, %v3884
    %v3889 = vmul.f32 %v3841, %v3858
    %v3890 = vmul.f32 %v3842, %v3868
    %v3891 = vmul.f32 %v3843, %v3878
    %v3892 = vmul.f32 %v3844, %v3888
    %v3894 = vperm.slane %v3803, 0
    %v3896 = vmul.f32 %v3889, %v3894
    %v3897 = vmul.f32 %v3890, %v3894
    %v3898 = vmul.f32 %v3891, %v3894
    %v3899 = vmul.f32 %v3892, %v3894
    %v3901 = vperm.slane %v3804, 0
    %v3903 = vadd.f32 %v3896, %v3901
    %v3904 = vadd.f32 %v3897, %v3901
    %v3905 = vadd.f32 %v3898, %v3901
    %v3906 = vadd.f32 %v3899, %v3901
    %v3907 = vpack.c.bf16 %v3904, %v3903
    %v3908 = vpack.c.bf16 %v3906, %v3905
    %v3909 = vld [vmem:[#allocation16] sm:$0xf]
    %v3910 = vld [vmem:[#allocation16 + $0x4] sm:$0xf]
    %v3911 = vld [vmem:[#allocation16 + $0x8] sm:$0xf]
    %v3912 = vld [vmem:[#allocation16 + $0xc] sm:$0xf]
    %v3913 = vld [vmem:[#allocation16 + $0x10] sm:$0xf]
    %v3914 = vld [vmem:[#allocation16 + $0x14] sm:$0xf]
    %v3915 = vld [vmem:[#allocation16 + $0x18] sm:$0xf]
    %v3916 = vld [vmem:[#allocation16 + $0x1c] sm:$0xf]
    %v3917 = vld [vmem:[#allocation16 + $0x20] sm:$0xf]
    %v3918 = vld [vmem:[#allocation16 + $0x24] sm:$0xf]
    %v3919 = vld [vmem:[#allocation16 + $0x28] sm:$0xf]
    %v3920 = vld [vmem:[#allocation16 + $0x2c] sm:$0xf]
    %v3921 = vld [vmem:[#allocation16 + $0x30] sm:$0xf]
    %v3922 = vld [vmem:[#allocation16 + $0x34] sm:$0xf]
    %v3923 = vld [vmem:[#allocation16 + $0x38] sm:$0xf]
    %v3924 = vld [vmem:[#allocation16 + $0x3c] sm:$0xf]
    %v3925 = vld [vmem:[%s14] sm:$0x1]
    %v3927 = vperm.slane %v3925, 0
    %v3945 = vunpack.c.l.b16 %v3909
    %v3946 = vunpack.c.l.b16 %v3910
    %v3947 = vunpack.c.l.b16 %v3911
    %v3948 = vunpack.c.l.b16 %v3912
    %v3949 = vunpack.c.l.b16 %v3913
    %v3950 = vunpack.c.l.b16 %v3914
    %v3951 = vunpack.c.l.b16 %v3915
    %v3952 = vunpack.c.l.b16 %v3916
    %v3953 = vunpack.c.l.b16 %v3917
    %v3954 = vunpack.c.l.b16 %v3918
    %v3955 = vunpack.c.l.b16 %v3919
    %v3956 = vunpack.c.l.b16 %v3920
    %v3957 = vunpack.c.l.b16 %v3921
    %v3958 = vunpack.c.l.b16 %v3922
    %v3959 = vunpack.c.l.b16 %v3923
    %v3960 = vunpack.c.l.b16 %v3924
    %v3961 = vpack.c.b16 %v3946, %v3945
    %v3962 = vpack.c.b16 %v3948, %v3947
    %v3963 = vpack.c.b16 %v3950, %v3949
    %v3964 = vpack.c.b16 %v3952, %v3951
    %v3965 = vpack.c.b16 %v3954, %v3953
    %v3966 = vpack.c.b16 %v3956, %v3955
    %v3967 = vpack.c.b16 %v3958, %v3957
    %v3968 = vpack.c.b16 %v3960, %v3959
    %3977 = vmatpush.bf16.msra.mxu0 %v3968
    %3978 = vmatpush.bf16.msra.mxu0 %v3967
    %3979 = vmatpush.bf16.msra.mxu0 %v3966
    %3980 = vmatpush.bf16.msra.mxu0 %v3965
    %3981 = vmatpush.bf16.msra.mxu0 %v3964
    %3982 = vmatpush.bf16.msra.mxu0 %v3963
    %3983 = vmatpush.bf16.msra.mxu0 %v3962
    %3984 = vmatpush.bf16.msra.mxu0 %v3961
    %3985 = vmatmul.bf16.gmra.mxu0 %v3907
    %v3986 = vpop.f32.mrf.mxu0
    %v3987 = vadd.f32 %v3927, %v3986
    %v3988 = vpop.f32.mrf.mxu0
    %v3989 = vadd.f32 %v3927, %v3988
    %3990 = vmatmul.bf16.gmra.mxu0 %v3908
    %v3991 = vpop.f32.mrf.mxu0
    %v3992 = vadd.f32 %v3927, %v3991
    %v3993 = vpop.f32.mrf.mxu0
    %v3994 = vadd.f32 %v3927, %v3993
    %3995 = vdwg.mxu0
    %v3996 = vadd.f32 %v3903, %v3987
    %v3997 = vadd.f32 %v3904, %v3989
    %v3998 = vadd.f32 %v3905, %v3992
    %v3999 = vadd.f32 %v3906, %v3994
    %v4000 = vld [vmem:[%s15] sm:$0x1]
    %v4001 = vld [vmem:[%s16] sm:$0x1]
    %4002 = vadd.xlane.f32.xlu0 %v3996
    %v4003 = vpop.xlane.xlu0 %4002
    %4004 = vadd.xlane.f32.xlu0 %v3997
    %v4005 = vpop.xlane.xlu0 %4004
    %4006 = vadd.xlane.f32.xlu0 %v3998
    %v4007 = vpop.xlane.xlu0 %4006
    %4008 = vadd.xlane.f32.xlu0 %v3999
    %v4009 = vpop.xlane.xlu0 %4008
    %v4010 = vmul.f32 %v4003, %v255
    %v4011 = vmul.f32 %v4005, %v255
    %v4012 = vmul.f32 %v4007, %v255
    %v4013 = vmul.f32 %v4009, %v255
    %v4014 = vmul.f32 %v3996, %v3996
    %v4015 = vmul.f32 %v3997, %v3997
    %v4016 = vmul.f32 %v3998, %v3998
    %v4017 = vmul.f32 %v3999, %v3999
    %4018 = vadd.xlane.f32.xlu0 %v4014
    %v4019 = vpop.xlane.xlu0 %4018
    %4020 = vadd.xlane.f32.xlu0 %v4015
    %v4021 = vpop.xlane.xlu0 %4020
    %4022 = vadd.xlane.f32.xlu0 %v4016
    %v4023 = vpop.xlane.xlu0 %4022
    %4024 = vadd.xlane.f32.xlu0 %v4017
    %v4025 = vpop.xlane.xlu0 %4024
    %v4026 = vmul.f32 %v4019, %v255
    %v4027 = vmul.f32 %v4021, %v255
    %v4028 = vmul.f32 %v4023, %v255
    %v4029 = vmul.f32 %v4025, %v255
    %v4030 = vmul.f32 %v4010, %v4010
    %v4031 = vmul.f32 %v4011, %v4011
    %v4032 = vmul.f32 %v4012, %v4012
    %v4033 = vmul.f32 %v4013, %v4013
    %v4034 = vsub.f32 %v4026, %v4030
    %v4035 = vsub.f32 %v4027, %v4031
    %v4036 = vsub.f32 %v4028, %v4032
    %v4037 = vsub.f32 %v4029, %v4033
    %v4038 = vsub.f32 %v3996, %v4010
    %v4039 = vsub.f32 %v3997, %v4011
    %v4040 = vsub.f32 %v3998, %v4012
    %v4041 = vsub.f32 %v3999, %v4013
    %v4042 = vadd.f32 %v4034, 1e-05
    %v4043 = vadd.f32 %v4035, 1e-05
    %v4044 = vadd.f32 %v4036, 1e-05
    %v4045 = vadd.f32 %v4037, 1e-05
    %v4046 = vrsqrt.pop %v4042
    %v4047 = vmul.f32 %v4046, %v4042
    %v4048 = vmul.f32 %v4047, %v4046
    %v4049 = vmul.f32 0.5, %v4048
    %v4050 = vsub.f32 1.5, %v4049
    %v4051 = vmul.f32 %v4046, %v4050
    %vm4052 = vweird.f32 %v4042
    %vm4053 = vweird.f32 %v4046
    %vm4054 = vmor %vm4052, %vm4053
    %v4055 = vsel %vm4054, %v4046, %v4051
    %v4056 = vrsqrt.pop %v4043
    %v4057 = vmul.f32 %v4056, %v4043
    %v4058 = vmul.f32 %v4057, %v4056
    %v4059 = vmul.f32 0.5, %v4058
    %v4060 = vsub.f32 1.5, %v4059
    %v4061 = vmul.f32 %v4056, %v4060
    %vm4062 = vweird.f32 %v4043
    %vm4063 = vweird.f32 %v4056
    %vm4064 = vmor %vm4062, %vm4063
    %v4065 = vsel %vm4064, %v4056, %v4061
    %v4066 = vrsqrt.pop %v4044
    %v4067 = vmul.f32 %v4066, %v4044
    %v4068 = vmul.f32 %v4067, %v4066
    %v4069 = vmul.f32 0.5, %v4068
    %v4070 = vsub.f32 1.5, %v4069
    %v4071 = vmul.f32 %v4066, %v4070
    %vm4072 = vweird.f32 %v4044
    %vm4073 = vweird.f32 %v4066
    %vm4074 = vmor %vm4072, %vm4073
    %v4075 = vsel %vm4074, %v4066, %v4071
    %v4076 = vrsqrt.pop %v4045
    %v4077 = vmul.f32 %v4076, %v4045
    %v4078 = vmul.f32 %v4077, %v4076
    %v4079 = vmul.f32 0.5, %v4078
    %v4080 = vsub.f32 1.5, %v4079
    %v4081 = vmul.f32 %v4076, %v4080
    %vm4082 = vweird.f32 %v4045
    %vm4083 = vweird.f32 %v4076
    %vm4084 = vmor %vm4082, %vm4083
    %v4085 = vsel %vm4084, %v4076, %v4081
    %v4086 = vmul.f32 %v4038, %v4055
    %v4087 = vmul.f32 %v4039, %v4065
    %v4088 = vmul.f32 %v4040, %v4075
    %v4089 = vmul.f32 %v4041, %v4085
    %v4091 = vperm.slane %v4000, 0
    %v4093 = vmul.f32 %v4086, %v4091
    %v4094 = vmul.f32 %v4087, %v4091
    %v4095 = vmul.f32 %v4088, %v4091
    %v4096 = vmul.f32 %v4089, %v4091
    %v4098 = vperm.slane %v4001, 0
    %v4100 = vadd.f32 %v4093, %v4098
    %v4101 = vadd.f32 %v4094, %v4098
    %v4102 = vadd.f32 %v4095, %v4098
    %v4103 = vadd.f32 %v4096, %v4098
    %v4104 = vpack.c.bf16 %v4101, %v4100
    %v4105 = vpack.c.bf16 %v4103, %v4102
    %v4106 = vld [vmem:[#allocation17] sm:$0xff]
    %v4107 = vld [vmem:[#allocation17 + $0x8] sm:$0xff]
    %v4108 = vld [vmem:[#allocation17 + $0x10] sm:$0xff]
    %v4109 = vld [vmem:[#allocation17 + $0x18] sm:$0xff]
    %v4110 = vld [vmem:[#allocation17 + $0x20] sm:$0xff]
    %v4111 = vld [vmem:[#allocation17 + $0x28] sm:$0xff]
    %v4112 = vld [vmem:[#allocation17 + $0x30] sm:$0xff]
    %v4113 = vld [vmem:[#allocation17 + $0x38] sm:$0xff]
    %v4114 = vld [vmem:[#allocation17 + $0x40] sm:$0xff]
    %v4115 = vld [vmem:[#allocation17 + $0x48] sm:$0xff]
    %v4116 = vld [vmem:[#allocation17 + $0x50] sm:$0xff]
    %v4117 = vld [vmem:[#allocation17 + $0x58] sm:$0xff]
    %v4118 = vld [vmem:[#allocation17 + $0x60] sm:$0xff]
    %v4119 = vld [vmem:[#allocation17 + $0x68] sm:$0xff]
    %v4120 = vld [vmem:[#allocation17 + $0x70] sm:$0xff]
    %v4121 = vld [vmem:[#allocation17 + $0x78] sm:$0xff]
    %v4122 = vld [vmem:[#allocation17 + $0x80] sm:$0xff]
    %v4123 = vld [vmem:[#allocation17 + $0x88] sm:$0xff]
    %v4124 = vld [vmem:[#allocation17 + $0x90] sm:$0xff]
    %v4125 = vld [vmem:[#allocation17 + $0x98] sm:$0xff]
    %v4126 = vld [vmem:[#allocation17 + $0xa0] sm:$0xff]
    %v4127 = vld [vmem:[#allocation17 + $0xa8] sm:$0xff]
    %v4128 = vld [vmem:[#allocation17 + $0xb0] sm:$0xff]
    %v4129 = vld [vmem:[#allocation17 + $0xb8] sm:$0xff]
    %v4130 = vld [vmem:[#allocation17 + $0xc0] sm:$0xff]
    %v4131 = vld [vmem:[#allocation17 + $0xc8] sm:$0xff]
    %v4132 = vld [vmem:[#allocation17 + $0xd0] sm:$0xff]
    %v4133 = vld [vmem:[#allocation17 + $0xd8] sm:$0xff]
    %v4134 = vld [vmem:[#allocation17 + $0xe0] sm:$0xff]
    %v4135 = vld [vmem:[#allocation17 + $0xe8] sm:$0xff]
    %v4136 = vld [vmem:[#allocation17 + $0xf0] sm:$0xff]
    %v4137 = vld [vmem:[#allocation17 + $0xf8] sm:$0xff]
    %v4138 = vld [vmem:[%s18] sm:$0xf]
    %v4140 = vperm.slane %v4138, 0
    %v4141 = vperm.slane %v4138, 1
    %v4142 = vperm.slane %v4138, 2
    %v4143 = vperm.slane %v4138, 3
    %v4180 = vunpack.c.l.b16 %v4106
    %v4181 = vunpack.c.h.b16 %v4106
    %v4182 = vunpack.c.l.b16 %v4107
    %v4183 = vunpack.c.h.b16 %v4107
    %v4184 = vunpack.c.l.b16 %v4108
    %v4185 = vunpack.c.h.b16 %v4108
    %v4186 = vunpack.c.l.b16 %v4109
    %v4187 = vunpack.c.h.b16 %v4109
    %v4188 = vunpack.c.l.b16 %v4110
    %v4189 = vunpack.c.h.b16 %v4110
    %v4190 = vunpack.c.l.b16 %v4111
    %v4191 = vunpack.c.h.b16 %v4111
    %v4192 = vunpack.c.l.b16 %v4112
    %v4193 = vunpack.c.h.b16 %v4112
    %v4194 = vunpack.c.l.b16 %v4113
    %v4195 = vunpack.c.h.b16 %v4113
    %v4196 = vunpack.c.l.b16 %v4114
    %v4197 = vunpack.c.h.b16 %v4114
    %v4198 = vunpack.c.l.b16 %v4115
    %v4199 = vunpack.c.h.b16 %v4115
    %v4200 = vunpack.c.l.b16 %v4116
    %v4201 = vunpack.c.h.b16 %v4116
    %v4202 = vunpack.c.l.b16 %v4117
    %v4203 = vunpack.c.h.b16 %v4117
    %v4204 = vunpack.c.l.b16 %v4118
    %v4205 = vunpack.c.h.b16 %v4118
    %v4206 = vunpack.c.l.b16 %v4119
    %v4207 = vunpack.c.h.b16 %v4119
    %v4208 = vunpack.c.l.b16 %v4120
    %v4209 = vunpack.c.h.b16 %v4120
    %v4210 = vunpack.c.l.b16 %v4121
    %v4211 = vunpack.c.h.b16 %v4121
    %v4212 = vunpack.c.l.b16 %v4122
    %v4213 = vunpack.c.h.b16 %v4122
    %v4214 = vunpack.c.l.b16 %v4123
    %v4215 = vunpack.c.h.b16 %v4123
    %v4216 = vunpack.c.l.b16 %v4124
    %v4217 = vunpack.c.h.b16 %v4124
    %v4218 = vunpack.c.l.b16 %v4125
    %v4219 = vunpack.c.h.b16 %v4125
    %v4220 = vunpack.c.l.b16 %v4126
    %v4221 = vunpack.c.h.b16 %v4126
    %v4222 = vunpack.c.l.b16 %v4127
    %v4223 = vunpack.c.h.b16 %v4127
    %v4224 = vunpack.c.l.b16 %v4128
    %v4225 = vunpack.c.h.b16 %v4128
    %v4226 = vunpack.c.l.b16 %v4129
    %v4227 = vunpack.c.h.b16 %v4129
    %v4228 = vunpack.c.l.b16 %v4130
    %v4229 = vunpack.c.h.b16 %v4130
    %v4230 = vunpack.c.l.b16 %v4131
    %v4231 = vunpack.c.h.b16 %v4131
    %v4232 = vunpack.c.l.b16 %v4132
    %v4233 = vunpack.c.h.b16 %v4132
    %v4234 = vunpack.c.l.b16 %v4133
    %v4235 = vunpack.c.h.b16 %v4133
    %v4236 = vunpack.c.l.b16 %v4134
    %v4237 = vunpack.c.h.b16 %v4134
    %v4238 = vunpack.c.l.b16 %v4135
    %v4239 = vunpack.c.h.b16 %v4135
    %v4240 = vunpack.c.l.b16 %v4136
    %v4241 = vunpack.c.h.b16 %v4136
    %v4242 = vunpack.c.l.b16 %v4137
    %v4243 = vunpack.c.h.b16 %v4137
    %v4244 = vpack.c.b16 %v4184, %v4180
    %v4245 = vpack.c.b16 %v4185, %v4181
    %v4246 = vpack.c.b16 %v4186, %v4182
    %v4247 = vpack.c.b16 %v4187, %v4183
    %v4248 = vpack.c.b16 %v4192, %v4188
    %v4249 = vpack.c.b16 %v4193, %v4189
    %v4250 = vpack.c.b16 %v4194, %v4190
    %v4251 = vpack.c.b16 %v4195, %v4191
    %v4252 = vpack.c.b16 %v4200, %v4196
    %v4253 = vpack.c.b16 %v4201, %v4197
    %v4254 = vpack.c.b16 %v4202, %v4198
    %v4255 = vpack.c.b16 %v4203, %v4199
    %v4256 = vpack.c.b16 %v4208, %v4204
    %v4257 = vpack.c.b16 %v4209, %v4205
    %v4258 = vpack.c.b16 %v4210, %v4206
    %v4259 = vpack.c.b16 %v4211, %v4207
    %v4260 = vpack.c.b16 %v4216, %v4212
    %v4261 = vpack.c.b16 %v4217, %v4213
    %v4262 = vpack.c.b16 %v4218, %v4214
    %v4263 = vpack.c.b16 %v4219, %v4215
    %v4264 = vpack.c.b16 %v4224, %v4220
    %v4265 = vpack.c.b16 %v4225, %v4221
    %v4266 = vpack.c.b16 %v4226, %v4222
    %v4267 = vpack.c.b16 %v4227, %v4223
    %v4268 = vpack.c.b16 %v4232, %v4228
    %v4269 = vpack.c.b16 %v4233, %v4229
    %v4270 = vpack.c.b16 %v4234, %v4230
    %v4271 = vpack.c.b16 %v4235, %v4231
    %v4272 = vpack.c.b16 %v4240, %v4236
    %v4273 = vpack.c.b16 %v4241, %v4237
    %v4274 = vpack.c.b16 %v4242, %v4238
    %v4275 = vpack.c.b16 %v4243, %v4239
    %4308 = vmatpush.bf16.msra.mxu0 %v4272
    %4309 = vmatpush.bf16.msra.mxu0 %v4268
    %4310 = vmatpush.bf16.msra.mxu0 %v4264
    %4311 = vmatpush.bf16.msra.mxu0 %v4260
    %4312 = vmatpush.bf16.msra.mxu0 %v4256
    %4313 = vmatpush.bf16.msra.mxu0 %v4252
    %4314 = vmatpush.bf16.msra.mxu0 %v4248
    %4315 = vmatpush.bf16.msra.mxu0 %v4244
    %4316 = vmatmul.bf16.gmra.mxu0 %v4104
    %v4317 = vpop.f32.mrf.mxu0
    %v4318 = vadd.f32 %v4140, %v4317
    %v4319 = vpop.f32.mrf.mxu0
    %v4320 = vadd.f32 %v4140, %v4319
    %4321 = vmatmul.bf16.gmra.mxu0 %v4105
    %v4322 = vpop.f32.mrf.mxu0
    %v4323 = vadd.f32 %v4140, %v4322
    %v4324 = vpop.f32.mrf.mxu0
    %v4325 = vadd.f32 %v4140, %v4324
    %4326 = vdwg.mxu0
    %4327 = vmatpush.bf16.msra.mxu0 %v4273
    %4328 = vmatpush.bf16.msra.mxu0 %v4269
    %4329 = vmatpush.bf16.msra.mxu0 %v4265
    %4330 = vmatpush.bf16.msra.mxu0 %v4261
    %4331 = vmatpush.bf16.msra.mxu0 %v4257
    %4332 = vmatpush.bf16.msra.mxu0 %v4253
    %4333 = vmatpush.bf16.msra.mxu0 %v4249
    %4334 = vmatpush.bf16.msra.mxu0 %v4245
    %4335 = vmatmul.bf16.gmra.mxu0 %v4104
    %v4336 = vpop.f32.mrf.mxu0
    %v4337 = vadd.f32 %v4141, %v4336
    %v4338 = vpop.f32.mrf.mxu0
    %v4339 = vadd.f32 %v4141, %v4338
    %4340 = vmatmul.bf16.gmra.mxu0 %v4105
    %v4341 = vpop.f32.mrf.mxu0
    %v4342 = vadd.f32 %v4141, %v4341
    %v4343 = vpop.f32.mrf.mxu0
    %v4344 = vadd.f32 %v4141, %v4343
    %4345 = vdwg.mxu0
    %4346 = vmatpush.bf16.msra.mxu0 %v4274
    %4347 = vmatpush.bf16.msra.mxu0 %v4270
    %4348 = vmatpush.bf16.msra.mxu0 %v4266
    %4349 = vmatpush.bf16.msra.mxu0 %v4262
    %4350 = vmatpush.bf16.msra.mxu0 %v4258
    %4351 = vmatpush.bf16.msra.mxu0 %v4254
    %4352 = vmatpush.bf16.msra.mxu0 %v4250
    %4353 = vmatpush.bf16.msra.mxu0 %v4246
    %4354 = vmatmul.bf16.gmra.mxu0 %v4104
    %v4355 = vpop.f32.mrf.mxu0
    %v4356 = vadd.f32 %v4142, %v4355
    %v4357 = vpop.f32.mrf.mxu0
    %v4358 = vadd.f32 %v4142, %v4357
    %4359 = vmatmul.bf16.gmra.mxu0 %v4105
    %v4360 = vpop.f32.mrf.mxu0
    %v4361 = vadd.f32 %v4142, %v4360
    %v4362 = vpop.f32.mrf.mxu0
    %v4363 = vadd.f32 %v4142, %v4362
    %4364 = vdwg.mxu0
    %4365 = vmatpush.bf16.msra.mxu0 %v4275
    %4366 = vmatpush.bf16.msra.mxu0 %v4271
    %4367 = vmatpush.bf16.msra.mxu0 %v4267
    %4368 = vmatpush.bf16.msra.mxu0 %v4263
    %4369 = vmatpush.bf16.msra.mxu0 %v4259
    %4370 = vmatpush.bf16.msra.mxu0 %v4255
    %4371 = vmatpush.bf16.msra.mxu0 %v4251
    %4372 = vmatpush.bf16.msra.mxu0 %v4247
    %4373 = vmatmul.bf16.gmra.mxu0 %v4104
    %v4374 = vpop.f32.mrf.mxu0
    %v4375 = vadd.f32 %v4143, %v4374
    %v4376 = vpop.f32.mrf.mxu0
    %v4377 = vadd.f32 %v4143, %v4376
    %4378 = vmatmul.bf16.gmra.mxu0 %v4105
    %v4379 = vpop.f32.mrf.mxu0
    %v4380 = vadd.f32 %v4143, %v4379
    %v4381 = vpop.f32.mrf.mxu0
    %v4382 = vadd.f32 %v4143, %v4381
    %4383 = vdwg.mxu0
    %v4384 = vmul.f32 %v4318, 0.5
    %v4385 = vmul.f32 %v4337, 0.5
    %v4386 = vmul.f32 %v4356, 0.5
    %v4387 = vmul.f32 %v4375, 0.5
    %v4388 = vmul.f32 %v4320, 0.5
    %v4389 = vmul.f32 %v4339, 0.5
    %v4390 = vmul.f32 %v4358, 0.5
    %v4391 = vmul.f32 %v4377, 0.5
    %v4392 = vmul.f32 %v4323, 0.5
    %v4393 = vmul.f32 %v4342, 0.5
    %v4394 = vmul.f32 %v4361, 0.5
    %v4395 = vmul.f32 %v4380, 0.5
    %v4396 = vmul.f32 %v4325, 0.5
    %v4397 = vmul.f32 %v4344, 0.5
    %v4398 = vmul.f32 %v4363, 0.5
    %v4399 = vmul.f32 %v4382, 0.5
    %v4400 = vmul.f32 %v4318, %v4318
    %v4401 = vmul.f32 %v4337, %v4337
    %v4402 = vmul.f32 %v4356, %v4356
    %v4403 = vmul.f32 %v4375, %v4375
    %v4404 = vmul.f32 %v4320, %v4320
    %v4405 = vmul.f32 %v4339, %v4339
    %v4406 = vmul.f32 %v4358, %v4358
    %v4407 = vmul.f32 %v4377, %v4377
    %v4408 = vmul.f32 %v4323, %v4323
    %v4409 = vmul.f32 %v4342, %v4342
    %v4410 = vmul.f32 %v4361, %v4361
    %v4411 = vmul.f32 %v4380, %v4380
    %v4412 = vmul.f32 %v4325, %v4325
    %v4413 = vmul.f32 %v4344, %v4344
    %v4414 = vmul.f32 %v4363, %v4363
    %v4415 = vmul.f32 %v4382, %v4382
    %v4416 = vmul.f32 %v4400, %v4318
    %v4417 = vmul.f32 %v4401, %v4337
    %v4418 = vmul.f32 %v4402, %v4356
    %v4419 = vmul.f32 %v4403, %v4375
    %v4420 = vmul.f32 %v4404, %v4320
    %v4421 = vmul.f32 %v4405, %v4339
    %v4422 = vmul.f32 %v4406, %v4358
    %v4423 = vmul.f32 %v4407, %v4377
    %v4424 = vmul.f32 %v4408, %v4323
    %v4425 = vmul.f32 %v4409, %v4342
    %v4426 = vmul.f32 %v4410, %v4361
    %v4427 = vmul.f32 %v4411, %v4380
    %v4428 = vmul.f32 %v4412, %v4325
    %v4429 = vmul.f32 %v4413, %v4344
    %v4430 = vmul.f32 %v4414, %v4363
    %v4431 = vmul.f32 %v4415, %v4382
    %v4432 = vmul.f32 %v4416, 0.044715
    %v4433 = vmul.f32 %v4417, 0.044715
    %v4434 = vmul.f32 %v4418, 0.044715
    %v4435 = vmul.f32 %v4419, 0.044715
    %v4436 = vmul.f32 %v4420, 0.044715
    %v4437 = vmul.f32 %v4421, 0.044715
    %v4438 = vmul.f32 %v4422, 0.044715
    %v4439 = vmul.f32 %v4423, 0.044715
    %v4440 = vmul.f32 %v4424, 0.044715
    %v4441 = vmul.f32 %v4425, 0.044715
    %v4442 = vmul.f32 %v4426, 0.044715
    %v4443 = vmul.f32 %v4427, 0.044715
    %v4444 = vmul.f32 %v4428, 0.044715
    %v4445 = vmul.f32 %v4429, 0.044715
    %v4446 = vmul.f32 %v4430, 0.044715
    %v4447 = vmul.f32 %v4431, 0.044715
    %v4448 = vadd.f32 %v4318, %v4432
    %v4449 = vadd.f32 %v4337, %v4433
    %v4450 = vadd.f32 %v4356, %v4434
    %v4451 = vadd.f32 %v4375, %v4435
    %v4452 = vadd.f32 %v4320, %v4436
    %v4453 = vadd.f32 %v4339, %v4437
    %v4454 = vadd.f32 %v4358, %v4438
    %v4455 = vadd.f32 %v4377, %v4439
    %v4456 = vadd.f32 %v4323, %v4440
    %v4457 = vadd.f32 %v4342, %v4441
    %v4458 = vadd.f32 %v4361, %v4442
    %v4459 = vadd.f32 %v4380, %v4443
    %v4460 = vadd.f32 %v4325, %v4444
    %v4461 = vadd.f32 %v4344, %v4445
    %v4462 = vadd.f32 %v4363, %v4446
    %v4463 = vadd.f32 %v4382, %v4447
    %v4464 = vmul.f32 %v4448, 0.7978846
    %v4465 = vmul.f32 %v4449, 0.7978846
    %v4466 = vmul.f32 %v4450, 0.7978846
    %v4467 = vmul.f32 %v4451, 0.7978846
    %v4468 = vmul.f32 %v4452, 0.7978846
    %v4469 = vmul.f32 %v4453, 0.7978846
    %v4470 = vmul.f32 %v4454, 0.7978846
    %v4471 = vmul.f32 %v4455, 0.7978846
    %v4472 = vmul.f32 %v4456, 0.7978846
    %v4473 = vmul.f32 %v4457, 0.7978846
    %v4474 = vmul.f32 %v4458, 0.7978846
    %v4475 = vmul.f32 %v4459, 0.7978846
    %v4476 = vmul.f32 %v4460, 0.7978846
    %v4477 = vmul.f32 %v4461, 0.7978846
    %v4478 = vmul.f32 %v4462, 0.7978846
    %v4479 = vmul.f32 %v4463, 0.7978846
    %v4480 = vtanh.pop %v4464
    %v4481 = vtanh.pop %v4465
    %v4482 = vtanh.pop %v4466
    %v4483 = vtanh.pop %v4467
    %v4484 = vtanh.pop %v4468
    %v4485 = vtanh.pop %v4469
    %v4486 = vtanh.pop %v4470
    %v4487 = vtanh.pop %v4471
    %v4488 = vtanh.pop %v4472
    %v4489 = vtanh.pop %v4473
    %v4490 = vtanh.pop %v4474
    %v4491 = vtanh.pop %v4475
    %v4492 = vtanh.pop %v4476
    %v4493 = vtanh.pop %v4477
    %v4494 = vtanh.pop %v4478
    %v4495 = vtanh.pop %v4479
    %v4496 = vadd.f32 %v4480, 1.0
    %v4497 = vadd.f32 %v4481, 1.0
    %v4498 = vadd.f32 %v4482, 1.0
    %v4499 = vadd.f32 %v4483, 1.0
    %v4500 = vadd.f32 %v4484, 1.0
    %v4501 = vadd.f32 %v4485, 1.0
    %v4502 = vadd.f32 %v4486, 1.0
    %v4503 = vadd.f32 %v4487, 1.0
    %v4504 = vadd.f32 %v4488, 1.0
    %v4505 = vadd.f32 %v4489, 1.0
    %v4506 = vadd.f32 %v4490, 1.0
    %v4507 = vadd.f32 %v4491, 1.0
    %v4508 = vadd.f32 %v4492, 1.0
    %v4509 = vadd.f32 %v4493, 1.0
    %v4510 = vadd.f32 %v4494, 1.0
    %v4511 = vadd.f32 %v4495, 1.0
    %v4512 = vmul.f32 %v4384, %v4496
    %v4513 = vmul.f32 %v4385, %v4497
    %v4514 = vmul.f32 %v4386, %v4498
    %v4515 = vmul.f32 %v4387, %v4499
    %v4516 = vmul.f32 %v4388, %v4500
    %v4517 = vmul.f32 %v4389, %v4501
    %v4518 = vmul.f32 %v4390, %v4502
    %v4519 = vmul.f32 %v4391, %v4503
    %v4520 = vmul.f32 %v4392, %v4504
    %v4521 = vmul.f32 %v4393, %v4505
    %v4522 = vmul.f32 %v4394, %v4506
    %v4523 = vmul.f32 %v4395, %v4507
    %v4524 = vmul.f32 %v4396, %v4508
    %v4525 = vmul.f32 %v4397, %v4509
    %v4526 = vmul.f32 %v4398, %v4510
    %v4527 = vmul.f32 %v4399, %v4511
    %v4528 = vpack.c.bf16 %v4516, %v4512
    %v4529 = vpack.c.bf16 %v4517, %v4513
    %v4530 = vpack.c.bf16 %v4518, %v4514
    %v4531 = vpack.c.bf16 %v4519, %v4515
    %v4532 = vpack.c.bf16 %v4524, %v4520
    %v4533 = vpack.c.bf16 %v4525, %v4521
    %v4534 = vpack.c.bf16 %v4526, %v4522
    %v4535 = vpack.c.bf16 %v4527, %v4523
    %v4536 = vld [vmem:[#allocation19] sm:$0xf]
    %v4537 = vld [vmem:[#allocation19 + $0x4] sm:$0xf]
    %v4538 = vld [vmem:[#allocation19 + $0x8] sm:$0xf]
    %v4539 = vld [vmem:[#allocation19 + $0xc] sm:$0xf]
    %v4540 = vld [vmem:[#allocation19 + $0x10] sm:$0xf]
    %v4541 = vld [vmem:[#allocation19 + $0x14] sm:$0xf]
    %v4542 = vld [vmem:[#allocation19 + $0x18] sm:$0xf]
    %v4543 = vld [vmem:[#allocation19 + $0x1c] sm:$0xf]
    %v4544 = vld [vmem:[#allocation19 + $0x20] sm:$0xf]
    %v4545 = vld [vmem:[#allocation19 + $0x24] sm:$0xf]
    %v4546 = vld [vmem:[#allocation19 + $0x28] sm:$0xf]
    %v4547 = vld [vmem:[#allocation19 + $0x2c] sm:$0xf]
    %v4548 = vld [vmem:[#allocation19 + $0x30] sm:$0xf]
    %v4549 = vld [vmem:[#allocation19 + $0x34] sm:$0xf]
    %v4550 = vld [vmem:[#allocation19 + $0x38] sm:$0xf]
    %v4551 = vld [vmem:[#allocation19 + $0x3c] sm:$0xf]
    %v4552 = vld [vmem:[#allocation19 + $0x40] sm:$0xf]
    %v4553 = vld [vmem:[#allocation19 + $0x44] sm:$0xf]
    %v4554 = vld [vmem:[#allocation19 + $0x48] sm:$0xf]
    %v4555 = vld [vmem:[#allocation19 + $0x4c] sm:$0xf]
    %v4556 = vld [vmem:[#allocation19 + $0x50] sm:$0xf]
    %v4557 = vld [vmem:[#allocation19 + $0x54] sm:$0xf]
    %v4558 = vld [vmem:[#allocation19 + $0x58] sm:$0xf]
    %v4559 = vld [vmem:[#allocation19 + $0x5c] sm:$0xf]
    %v4560 = vld [vmem:[#allocation19 + $0x60] sm:$0xf]
    %v4561 = vld [vmem:[#allocation19 + $0x64] sm:$0xf]
    %v4562 = vld [vmem:[#allocation19 + $0x68] sm:$0xf]
    %v4563 = vld [vmem:[#allocation19 + $0x6c] sm:$0xf]
    %v4564 = vld [vmem:[#allocation19 + $0x70] sm:$0xf]
    %v4565 = vld [vmem:[#allocation19 + $0x74] sm:$0xf]
    %v4566 = vld [vmem:[#allocation19 + $0x78] sm:$0xf]
    %v4567 = vld [vmem:[#allocation19 + $0x7c] sm:$0xf]
    %v4568 = vld [vmem:[#allocation19 + $0x80] sm:$0xf]
    %v4569 = vld [vmem:[#allocation19 + $0x84] sm:$0xf]
    %v4570 = vld [vmem:[#allocation19 + $0x88] sm:$0xf]
    %v4571 = vld [vmem:[#allocation19 + $0x8c] sm:$0xf]
    %v4572 = vld [vmem:[#allocation19 + $0x90] sm:$0xf]
    %v4573 = vld [vmem:[#allocation19 + $0x94] sm:$0xf]
    %v4574 = vld [vmem:[#allocation19 + $0x98] sm:$0xf]
    %v4575 = vld [vmem:[#allocation19 + $0x9c] sm:$0xf]
    %v4576 = vld [vmem:[#allocation19 + $0xa0] sm:$0xf]
    %v4577 = vld [vmem:[#allocation19 + $0xa4] sm:$0xf]
    %v4578 = vld [vmem:[#allocation19 + $0xa8] sm:$0xf]
    %v4579 = vld [vmem:[#allocation19 + $0xac] sm:$0xf]
    %v4580 = vld [vmem:[#allocation19 + $0xb0] sm:$0xf]
    %v4581 = vld [vmem:[#allocation19 + $0xb4] sm:$0xf]
    %v4582 = vld [vmem:[#allocation19 + $0xb8] sm:$0xf]
    %v4583 = vld [vmem:[#allocation19 + $0xbc] sm:$0xf]
    %v4584 = vld [vmem:[#allocation19 + $0xc0] sm:$0xf]
    %v4585 = vld [vmem:[#allocation19 + $0xc4] sm:$0xf]
    %v4586 = vld [vmem:[#allocation19 + $0xc8] sm:$0xf]
    %v4587 = vld [vmem:[#allocation19 + $0xcc] sm:$0xf]
    %v4588 = vld [vmem:[#allocation19 + $0xd0] sm:$0xf]
    %v4589 = vld [vmem:[#allocation19 + $0xd4] sm:$0xf]
    %v4590 = vld [vmem:[#allocation19 + $0xd8] sm:$0xf]
    %v4591 = vld [vmem:[#allocation19 + $0xdc] sm:$0xf]
    %v4592 = vld [vmem:[#allocation19 + $0xe0] sm:$0xf]
    %v4593 = vld [vmem:[#allocation19 + $0xe4] sm:$0xf]
    %v4594 = vld [vmem:[#allocation19 + $0xe8] sm:$0xf]
    %v4595 = vld [vmem:[#allocation19 + $0xec] sm:$0xf]
    %v4596 = vld [vmem:[#allocation19 + $0xf0] sm:$0xf]
    %v4597 = vld [vmem:[#allocation19 + $0xf4] sm:$0xf]
    %v4598 = vld [vmem:[#allocation19 + $0xf8] sm:$0xf]
    %v4599 = vld [vmem:[#allocation19 + $0xfc] sm:$0xf]
    %v4600 = vld [vmem:[%s20] sm:$0x1]
    %v4602 = vperm.slane %v4600, 0
    %v4668 = vunpack.c.l.b16 %v4536
    %v4669 = vunpack.c.l.b16 %v4537
    %v4670 = vunpack.c.l.b16 %v4538
    %v4671 = vunpack.c.l.b16 %v4539
    %v4672 = vunpack.c.l.b16 %v4540
    %v4673 = vunpack.c.l.b16 %v4541
    %v4674 = vunpack.c.l.b16 %v4542
    %v4675 = vunpack.c.l.b16 %v4543
    %v4676 = vunpack.c.l.b16 %v4544
    %v4677 = vunpack.c.l.b16 %v4545
    %v4678 = vunpack.c.l.b16 %v4546
    %v4679 = vunpack.c.l.b16 %v4547
    %v4680 = vunpack.c.l.b16 %v4548
    %v4681 = vunpack.c.l.b16 %v4549
    %v4682 = vunpack.c.l.b16 %v4550
    %v4683 = vunpack.c.l.b16 %v4551
    %v4684 = vunpack.c.l.b16 %v4552
    %v4685 = vunpack.c.l.b16 %v4553
    %v4686 = vunpack.c.l.b16 %v4554
    %v4687 = vunpack.c.l.b16 %v4555
    %v4688 = vunpack.c.l.b16 %v4556
    %v4689 = vunpack.c.l.b16 %v4557
    %v4690 = vunpack.c.l.b16 %v4558
    %v4691 = vunpack.c.l.b16 %v4559
    %v4692 = vunpack.c.l.b16 %v4560
    %v4693 = vunpack.c.l.b16 %v4561
    %v4694 = vunpack.c.l.b16 %v4562
    %v4695 = vunpack.c.l.b16 %v4563
    %v4696 = vunpack.c.l.b16 %v4564
    %v4697 = vunpack.c.l.b16 %v4565
    %v4698 = vunpack.c.l.b16 %v4566
    %v4699 = vunpack.c.l.b16 %v4567
    %v4700 = vunpack.c.l.b16 %v4568
    %v4701 = vunpack.c.l.b16 %v4569
    %v4702 = vunpack.c.l.b16 %v4570
    %v4703 = vunpack.c.l.b16 %v4571
    %v4704 = vunpack.c.l.b16 %v4572
    %v4705 = vunpack.c.l.b16 %v4573
    %v4706 = vunpack.c.l.b16 %v4574
    %v4707 = vunpack.c.l.b16 %v4575
    %v4708 = vunpack.c.l.b16 %v4576
    %v4709 = vunpack.c.l.b16 %v4577
    %v4710 = vunpack.c.l.b16 %v4578
    %v4711 = vunpack.c.l.b16 %v4579
    %v4712 = vunpack.c.l.b16 %v4580
    %v4713 = vunpack.c.l.b16 %v4581
    %v4714 = vunpack.c.l.b16 %v4582
    %v4715 = vunpack.c.l.b16 %v4583
    %v4716 = vunpack.c.l.b16 %v4584
    %v4717 = vunpack.c.l.b16 %v4585
    %v4718 = vunpack.c.l.b16 %v4586
    %v4719 = vunpack.c.l.b16 %v4587
    %v4720 = vunpack.c.l.b16 %v4588
    %v4721 = vunpack.c.l.b16 %v4589
    %v4722 = vunpack.c.l.b16 %v4590
    %v4723 = vunpack.c.l.b16 %v4591
    %v4724 = vunpack.c.l.b16 %v4592
    %v4725 = vunpack.c.l.b16 %v4593
    %v4726 = vunpack.c.l.b16 %v4594
    %v4727 = vunpack.c.l.b16 %v4595
    %v4728 = vunpack.c.l.b16 %v4596
    %v4729 = vunpack.c.l.b16 %v4597
    %v4730 = vunpack.c.l.b16 %v4598
    %v4731 = vunpack.c.l.b16 %v4599
    %v4732 = vpack.c.b16 %v4669, %v4668
    %v4733 = vpack.c.b16 %v4671, %v4670
    %v4734 = vpack.c.b16 %v4673, %v4672
    %v4735 = vpack.c.b16 %v4675, %v4674
    %v4736 = vpack.c.b16 %v4677, %v4676
    %v4737 = vpack.c.b16 %v4679, %v4678
    %v4738 = vpack.c.b16 %v4681, %v4680
    %v4739 = vpack.c.b16 %v4683, %v4682
    %v4740 = vpack.c.b16 %v4685, %v4684
    %v4741 = vpack.c.b16 %v4687, %v4686
    %v4742 = vpack.c.b16 %v4689, %v4688
    %v4743 = vpack.c.b16 %v4691, %v4690
    %v4744 = vpack.c.b16 %v4693, %v4692
    %v4745 = vpack.c.b16 %v4695, %v4694
    %v4746 = vpack.c.b16 %v4697, %v4696
    %v4747 = vpack.c.b16 %v4699, %v4698
    %v4748 = vpack.c.b16 %v4701, %v4700
    %v4749 = vpack.c.b16 %v4703, %v4702
    %v4750 = vpack.c.b16 %v4705, %v4704
    %v4751 = vpack.c.b16 %v4707, %v4706
    %v4752 = vpack.c.b16 %v4709, %v4708
    %v4753 = vpack.c.b16 %v4711, %v4710
    %v4754 = vpack.c.b16 %v4713, %v4712
    %v4755 = vpack.c.b16 %v4715, %v4714
    %v4756 = vpack.c.b16 %v4717, %v4716
    %v4757 = vpack.c.b16 %v4719, %v4718
    %v4758 = vpack.c.b16 %v4721, %v4720
    %v4759 = vpack.c.b16 %v4723, %v4722
    %v4760 = vpack.c.b16 %v4725, %v4724
    %v4761 = vpack.c.b16 %v4727, %v4726
    %v4762 = vpack.c.b16 %v4729, %v4728
    %v4763 = vpack.c.b16 %v4731, %v4730
    %4796 = vmatpush.bf16.msra.mxu0 %v4739
    %4797 = vmatpush.bf16.msra.mxu0 %v4738
    %4798 = vmatpush.bf16.msra.mxu0 %v4737
    %4799 = vmatpush.bf16.msra.mxu0 %v4736
    %4800 = vmatpush.bf16.msra.mxu0 %v4735
    %4801 = vmatpush.bf16.msra.mxu0 %v4734
    %4802 = vmatpush.bf16.msra.mxu0 %v4733
    %4803 = vmatpush.bf16.msra.mxu0 %v4732
    %4804 = vmatmul.bf16.gmra.mxu0 %v4528
    %v4805 = vpop.f32.mrf.mxu0
    %v4806 = vadd.f32 %v4602, %v4805
    %v4807 = vpop.f32.mrf.mxu0
    %v4808 = vadd.f32 %v4602, %v4807
    %4809 = vmatmul.bf16.gmra.mxu0 %v4532
    %v4810 = vpop.f32.mrf.mxu0
    %v4811 = vadd.f32 %v4602, %v4810
    %v4812 = vpop.f32.mrf.mxu0
    %v4813 = vadd.f32 %v4602, %v4812
    %4814 = vdwg.mxu0
    %4815 = vmatpush.bf16.msra.mxu0 %v4747
    %4816 = vmatpush.bf16.msra.mxu0 %v4746
    %4817 = vmatpush.bf16.msra.mxu0 %v4745
    %4818 = vmatpush.bf16.msra.mxu0 %v4744
    %4819 = vmatpush.bf16.msra.mxu0 %v4743
    %4820 = vmatpush.bf16.msra.mxu0 %v4742
    %4821 = vmatpush.bf16.msra.mxu0 %v4741
    %4822 = vmatpush.bf16.msra.mxu0 %v4740
    %4823 = vmatmul.bf16.gmra.mxu0 %v4529
    %v4824 = vpop.f32.mrf.mxu0
    %v4825 = vadd.f32 %v4806, %v4824
    %v4826 = vpop.f32.mrf.mxu0
    %v4827 = vadd.f32 %v4808, %v4826
    %4828 = vmatmul.bf16.gmra.mxu0 %v4533
    %v4829 = vpop.f32.mrf.mxu0
    %v4830 = vadd.f32 %v4811, %v4829
    %v4831 = vpop.f32.mrf.mxu0
    %v4832 = vadd.f32 %v4813, %v4831
    %4833 = vdwg.mxu0
    %4834 = vmatpush.bf16.msra.mxu0 %v4755
    %4835 = vmatpush.bf16.msra.mxu0 %v4754
    %4836 = vmatpush.bf16.msra.mxu0 %v4753
    %4837 = vmatpush.bf16.msra.mxu0 %v4752
    %4838 = vmatpush.bf16.msra.mxu0 %v4751
    %4839 = vmatpush.bf16.msra.mxu0 %v4750
    %4840 = vmatpush.bf16.msra.mxu0 %v4749
    %4841 = vmatpush.bf16.msra.mxu0 %v4748
    %4842 = vmatmul.bf16.gmra.mxu0 %v4530
    %v4843 = vpop.f32.mrf.mxu0
    %v4844 = vadd.f32 %v4825, %v4843
    %v4845 = vpop.f32.mrf.mxu0
    %v4846 = vadd.f32 %v4827, %v4845
    %4847 = vmatmul.bf16.gmra.mxu0 %v4534
    %v4848 = vpop.f32.mrf.mxu0
    %v4849 = vadd.f32 %v4830, %v4848
    %v4850 = vpop.f32.mrf.mxu0
    %v4851 = vadd.f32 %v4832, %v4850
    %4852 = vdwg.mxu0
    %4853 = vmatpush.bf16.msra.mxu0 %v4763
    %4854 = vmatpush.bf16.msra.mxu0 %v4762
    %4855 = vmatpush.bf16.msra.mxu0 %v4761
    %4856 = vmatpush.bf16.msra.mxu0 %v4760
    %4857 = vmatpush.bf16.msra.mxu0 %v4759
    %4858 = vmatpush.bf16.msra.mxu0 %v4758
    %4859 = vmatpush.bf16.msra.mxu0 %v4757
    %4860 = vmatpush.bf16.msra.mxu0 %v4756
    %4861 = vmatmul.bf16.gmra.mxu0 %v4531
    %v4862 = vpop.f32.mrf.mxu0
    %v4863 = vadd.f32 %v4844, %v4862
    %v4864 = vpop.f32.mrf.mxu0
    %v4865 = vadd.f32 %v4846, %v4864
    %4866 = vmatmul.bf16.gmra.mxu0 %v4535
    %v4867 = vpop.f32.mrf.mxu0
    %v4868 = vadd.f32 %v4849, %v4867
    %v4869 = vpop.f32.mrf.mxu0
    %v4870 = vadd.f32 %v4851, %v4869
    %4871 = vdwg.mxu0
    %v4872 = vadd.f32 %v3303, %v4863
    %v4873 = vadd.f32 %v3304, %v4865
    %v4874 = vadd.f32 %v3305, %v4868
    %v4875 = vadd.f32 %v3306, %v4870
    %4876 = vst [vmem:[#allocation20] sm:$0xff] %v4872
    %4877 = vst [vmem:[#allocation20 + $0x8] sm:$0xff] %v4873
    %4878 = vst [vmem:[#allocation20 + $0x10] sm:$0xff] %v4874
    %4879 = vst [vmem:[#allocation20 + $0x18] sm:$0xff] %v4875
    // Predicated region
    $region130: #{tpu_custom_call.1} parent=1 // pred_check
      _
    $region131: #{tpu_custom_call.1} parent=1 // pred_check_branch
      %4881 = sbr.rel (0) target = $region133
    $region132: #{tpu_custom_call.1} parent=1 // pred_region
      %4883 = vsyncadd [#allocation4], 0
      %s4884 = sshll.u32 [#allocation20], 4
      %s4885 = int_to_ptr.vmem [resolvable:$true] %s4884
      %s4886 = sshll.u32 %s21, 4
      %s4887 = int_to_ptr.hbm [resolvable:$true] %s4886
      %4892 = dma.vmem_to_hbm [thread:$0]  %s4885, 512, %s4887, [#allocation4], 128, 128, 8
    $region133: #{tpu_custom_call.1} parent=1 // pred_fallthru
      _
    // Predicated region
    $region134: #{tpu_custom_call.1} parent=1 // pred_check
      _
    $region135: #{tpu_custom_call.1} parent=1 // pred_check_branch
      %4894 = sbr.rel (0) target = $region137
    $region136: #{tpu_custom_call.1} parent=1 // pred_region
      %4896 = dma.done [#allocation4], 512
    $region137: #{tpu_custom_call.1} parent=1 // pred_fallthru
      _
    %4897 = vsyncpa [#allocation3], 1
    %4898 = vsyncpa [#allocation6], 1
    %4899 = vsyncpa [#allocation9], 1
    %4900 = vsyncpa [#allocation12], 1
    %4901 = vsyncpa [#allocation15], 1
    %4902 = vsyncpa [#allocation18], 1
    %4903 = vsyncpa [#allocation4], 1

</llo_original>
